<compile_context>
chip_gen: v7x
topology: tpu7x:2x2x1
jax: 0.10.0
libtpu: 0.0.40
codegen_flags: <defaults>
</compile_context>

<pallas_src>
import functools

import jax
import jax.numpy as jnp
from jax import lax
from jax.experimental import pallas as pl
from jax.experimental.pallas import tpu as pltpu

SELU_ALPHA = 1.6732632423543772
SELU_SCALE = 1.0507009873554805


def _selu(x):
    # f32 elementwise; clamp argument of exp (positive-branch value is
    # discarded by the select, clamping is cheap overflow insurance).
    neg = SELU_ALPHA * (jnp.exp(jnp.minimum(x, 0.0)) - 1.0)
    return SELU_SCALE * jnp.where(x > 0, x, neg)


def _vmem():
    return pl.BlockSpec(memory_space=pltpu.MemorySpace.VMEM)


def _vmem_limit_bytes():
    # Per-generation scoped-VMEM budget: leave compiler-scratch headroom on
    # v7x (64 MiB physical), allow ~100 MiB on v5e/v6e (128 MiB physical).
    cap = 128 * 1024 * 1024
    try:
        info = pltpu.get_tpu_info()
        cap = int(getattr(info, "vmem_capacity_bytes", cap))
    except Exception:
        pass
    return int(min(cap - 16 * 1024 * 1024, 100 * 1024 * 1024))


# ---------------------------------------------------------------------------
# Fused kernel: unpool FNN + skip + depth x InteractionNetwork
# ---------------------------------------------------------------------------
def _up_block_kernel(depth,
                     src_col_ref, dst_col_ref, inv_deg_ref,
                     vparent_ref, rel_ref, c_skip_ref, e_skip_ref,
                     uw1_ref, uw1r_ref, ub1_ref, uw2_ref, ub2_ref,
                     we_e_ref, we_s_ref, we_d_ref, be1_ref, we2_ref, be2_ref,
                     wn1_ref, bn1_ref, wn2_ref, bn2_ref,
                     v_out_ref):
    E = src_col_ref.shape[0]
    Nf = inv_deg_ref.shape[0]

    # ---- exact 0/1 bf16 selectors, built ONCE from the int32 indices -------
    node_iota = lax.broadcasted_iota(jnp.int32, (E, Nf), 1)          # [E, Nf]
    sel_src = (src_col_ref[...] == node_iota).astype(jnp.bfloat16)   # gather rows by src
    sel_dst = (dst_col_ref[...] == node_iota).astype(jnp.bfloat16)   # gather / scatter by dst
    inv_deg = inv_deg_ref[...]                                       # [Nf, 1] f32

    # dst scatter-sum = contraction of sel_dst over its E axis (no transposed copy)
    scatter_dims = (((0,), (0,)), ((), ()))

    # ---- MeshUpMP unpool FNN on [v_parent | |rel_pos|] ----------------------
    vp_bf = vparent_ref[...].astype(jnp.bfloat16)
    h = jnp.dot(vp_bf, uw1_ref[...], preferred_element_type=jnp.float32)
    h = h + rel_ref[...] * uw1r_ref[...] + ub1_ref[...]              # rank-1 rel term (VPU)
    h = _selu(h)
    v = jnp.dot(h.astype(jnp.bfloat16), uw2_ref[...],
                preferred_element_type=jnp.float32) + ub2_ref[...]

    # ---- skip connections ---------------------------------------------------
    v = v + c_skip_ref[...]                                          # [Nf, W] f32
    e = e_skip_ref[...]                                              # [E,  W] f32

    # ---- depth x InteractionNetwork, fully fused (depth static, unrolled) ---
    for d in range(depth):
        v_bf = v.astype(jnp.bfloat16)
        e_bf = e.astype(jnp.bfloat16)

        # edge FNN layer 1, algebraically reordered:
        #   he = e@W_e + sel_src@(v@W_src) + sel_dst@(v@W_dst) + b1
        vs = jnp.dot(v_bf, we_s_ref[d],
                     preferred_element_type=jnp.float32).astype(jnp.bfloat16)
        vd = jnp.dot(v_bf, we_d_ref[d],
                     preferred_element_type=jnp.float32).astype(jnp.bfloat16)
        he = (jnp.dot(e_bf, we_e_ref[d], preferred_element_type=jnp.float32)
              + jnp.dot(sel_src, vs, preferred_element_type=jnp.float32)
              + jnp.dot(sel_dst, vd, preferred_element_type=jnp.float32)
              + be1_ref[d])
        he = _selu(he)
        e = jnp.dot(he.astype(jnp.bfloat16), we2_ref[d],
                    preferred_element_type=jnp.float32) + be2_ref[d] + e

        # mean aggregation: scatter-sum on MXU, then f32 1/deg scaling on VPU
        aggr = lax.dot_general(sel_dst, e.astype(jnp.bfloat16),
                               dimension_numbers=scatter_dims,
                               preferred_element_type=jnp.float32) * inv_deg

        # node FNN: merged K=2W matmul on concat([v, aggr]) + residual
        node_in = jnp.concatenate([v_bf, aggr.astype(jnp.bfloat16)], axis=1)
        hn = jnp.dot(node_in, wn1_ref[d],
                     preferred_element_type=jnp.float32) + bn1_ref[d]
        hn = _selu(hn)
        v = jnp.dot(hn.astype(jnp.bfloat16), wn2_ref[d],
                    preferred_element_type=jnp.float32) + bn2_ref[d] + v

    v_out_ref[...] = v                                               # lane-dense f32 store


# ---------------------------------------------------------------------------
# Parameter construction (deterministic, synthetic; matrices bf16, biases f32)
# ---------------------------------------------------------------------------
def _glorot(key, shape, dtype=jnp.bfloat16):
    fan_in, fan_out = shape[-2], shape[-1]
    lim = jnp.sqrt(6.0 / (fan_in + fan_out))
    return jax.random.uniform(key, shape, jnp.float32, -lim, lim).astype(dtype)


def init_up_block_params(key, depth, W):
    ks = jax.random.split(key, 7)
    return {
        # MeshUpMP FNN: (W + 1) -> W -> W  (first layer split: feature / |rel| column)
        "uw1": _glorot(ks[0], (W, W)),
        "uw1r": _glorot(ks[1], (1, W), jnp.float32),
        "ub1": jnp.zeros((1, W), jnp.float32),
        "uw2": _glorot(ks[2], (W, W)),
        "ub2": jnp.zeros((1, W), jnp.float32),
        # InteractionNetwork stacks, leading dim = depth
        "we1": _glorot(ks[3], (depth, 3 * W, W)),   # edge FNN layer 1 (3W -> W)
        "be1": jnp.zeros((depth, 1, W), jnp.float32),
        "we2": _glorot(ks[4], (depth, W, W)),       # edge FNN layer 2
        "be2": jnp.zeros((depth, 1, W), jnp.float32),
        "wn1": _glorot(ks[5], (depth, 2 * W, W)),   # node FNN layer 1 (2W -> W)
        "bn1": jnp.zeros((depth, 1, W), jnp.float32),
        "wn2": _glorot(ks[6], (depth, W, W)),       # node FNN layer 2
        "bn2": jnp.zeros((depth, 1, W), jnp.float32),
    }


# ---------------------------------------------------------------------------
# UpBlock forward: structure preprocessing in the wrapper, hot path in one kernel
# ---------------------------------------------------------------------------
def up_block_forward(params, v_coarse, parent_idx, rel_pos,
                     c_skip, e_skip, edge_index_skip, batch_skip):
    del batch_skip  # only re-labels graph.batch; no compute in forward
    Nf, W = c_skip.shape
    E = e_skip.shape[0]
    depth = params["we1"].shape[0]

    # -- static per-mesh preprocessing (indices + 1/deg, NOT dense matrices) --
    src = edge_index_skip[0].astype(jnp.int32)
    dst = edge_index_skip[1].astype(jnp.int32)
    src_col = src[:, None]                                       # [E, 1] i32
    dst_col = dst[:, None]                                       # [E, 1] i32
    deg = jnp.zeros((Nf,), jnp.float32).at[dst].add(1.0)
    inv_deg = (1.0 / jnp.maximum(deg, 1.0))[:, None]             # [Nf, 1] f32 (mean; 0 if isolated)

    # -- index-based parent gather for the unpool stage (no one-hot matmul) --
    v_parent = jnp.take(v_coarse, parent_idx, axis=0)            # [Nf, W]
    rel_scalar = jnp.sqrt(jnp.sum(rel_pos * rel_pos, axis=1, keepdims=True))  # [Nf, 1]

    # -- pre-split the edge-FNN first-layer weight for the algebraic reorder --
    we_e = params["we1"][:, :W, :]                               # [depth, W, W] (e term)
    we_s = params["we1"][:, W:2 * W, :]                          # [depth, W, W] (v_src term)
    we_d = params["we1"][:, 2 * W:, :]                           # [depth, W, W] (v_dst term)

    args = (src_col, dst_col, inv_deg,
            v_parent, rel_scalar, c_skip, e_skip,
            params["uw1"], params["uw1r"], params["ub1"], params["uw2"], params["ub2"],
            we_e, we_s, we_d, params["be1"], params["we2"], params["be2"],
            params["wn1"], params["bn1"], params["wn2"], params["bn2"])

    # -- advisory cost estimate so XLA schedules surrounding ops sensibly -----
    flops_layer = (2 * E * W * W            # e @ W_e
                   + 4 * Nf * W * W          # v @ W_src, v @ W_dst
                   + 4 * E * Nf * W          # sel_src/sel_dst gathers
                   + 2 * E * W * W           # he @ we2
                   + 2 * E * Nf * W          # dst scatter-sum
                   + 4 * Nf * W * W          # node FNN layer 1 (K=2W)
                   + 2 * Nf * W * W)         # node FNN layer 2
    flops = depth * flops_layer + 4 * Nf * W * W                 # + unpool FNN
    transcend = depth * (E + Nf) * W + Nf * W                    # SELU exps
    bytes_accessed = sum(int(a.size) * a.dtype.itemsize for a in args) + Nf * W * 4

    kernel = functools.partial(_up_block_kernel, depth)
    return pl.pallas_call(
        kernel,
        out_shape=jax.ShapeDtypeStruct((Nf, W), jnp.float32),
        in_specs=[_vmem() for _ in range(len(args))],
        out_specs=_vmem(),
        cost_estimate=pl.CostEstimate(flops=int(flops),
                                      transcendentals=int(transcend),
                                      bytes_accessed=int(bytes_accessed)),
        compiler_params=pltpu.CompilerParams(
            vmem_limit_bytes=_vmem_limit_bytes()),
    )(*args)


# ---------------------------------------------------------------------------
if __name__ == "__main__":
    key = jax.random.PRNGKey(0)
    W = 128         # fnns_width (lane-dense: full 128-lane vregs / full MXU N-width)
    depth = 2       # number of InteractionNetwork blocks
    Nc = 8          # coarse nodes
    Nf = 32         # fine nodes
    E = 64          # skip edges
    dim = 2

    k = jax.random.split(key, 8)
    params = init_up_block_params(k[0], depth, W)

    v_coarse = jax.random.normal(k[1], (Nc, W), jnp.float32)
    c_skip = jax.random.normal(k[2], (Nf, W), jnp.float32)
    e_skip = jax.random.normal(k[3], (E, W), jnp.float32)
    edge_index_skip = jax.random.randint(k[4], (2, E), 0, Nf, jnp.int32)
    batch_skip = jnp.zeros((Nf,), jnp.int32)
    parent_idx = jax.random.randint(k[5], (Nf,), 0, Nc, jnp.int32)
    rel_pos = jax.random.normal(k[6], (Nf, dim), jnp.float32)

    fwd = jax.jit(up_block_forward)
    out = fwd(params, v_coarse, parent_idx, rel_pos,
              c_skip, e_skip, edge_index_skip, batch_skip)
    out = jax.block_until_ready(out)
    assert out.shape == (Nf, W) and out.dtype == jnp.float32
    assert bool(jnp.all(jnp.isfinite(out)))
    print("KERNEL_OK")
</pallas_src>

<mosaic_0001>
module attributes {stable_mosaic.version = 11 : i64} {
  func.func private @main(%arg0: i32) attributes {dimension_semantics = [#tpu.dimension_semantics<core_parallel>], iteration_bounds = array<i64: 2>, tpu.core_type = #tpu.core_type<sc_scalar_subcore>, window_params = []} {
    return
  }
}

module attributes {stable_mosaic.version = 11 : i64} {
  func.func private @main(%arg0: i32) attributes {dimension_semantics = [#tpu.dimension_semantics<core_parallel>], iteration_bounds = array<i64: 2>, tpu.core_type = #tpu.core_type<sc_scalar_subcore>, window_params = []} {
    return
  }
}

module attributes {stable_mosaic.version = 11 : i64} {
  func.func @_up_block_kernel(%arg0: memref<64x1xi32, #tpu.memory_space<vmem>>, %arg1: memref<64x1xi32, #tpu.memory_space<vmem>>, %arg2: memref<32x1xf32, #tpu.memory_space<vmem>>, %arg3: memref<32x128xf32, #tpu.memory_space<vmem>>, %arg4: memref<32x1xf32, #tpu.memory_space<vmem>>, %arg5: memref<32x128xf32, #tpu.memory_space<vmem>>, %arg6: memref<64x128xf32, #tpu.memory_space<vmem>>, %arg7: memref<128x128xbf16, #tpu.memory_space<vmem>>, %arg8: memref<1x128xf32, #tpu.memory_space<vmem>>, %arg9: memref<1x128xf32, #tpu.memory_space<vmem>>, %arg10: memref<128x128xbf16, #tpu.memory_space<vmem>>, %arg11: memref<1x128xf32, #tpu.memory_space<vmem>>, %arg12: memref<2x128x128xbf16, #tpu.memory_space<vmem>>, %arg13: memref<2x128x128xbf16, #tpu.memory_space<vmem>>, %arg14: memref<2x128x128xbf16, #tpu.memory_space<vmem>>, %arg15: memref<2x1x128xf32, #tpu.memory_space<vmem>>, %arg16: memref<2x128x128xbf16, #tpu.memory_space<vmem>>, %arg17: memref<2x1x128xf32, #tpu.memory_space<vmem>>, %arg18: memref<2x256x128xbf16, #tpu.memory_space<vmem>>, %arg19: memref<2x1x128xf32, #tpu.memory_space<vmem>>, %arg20: memref<2x128x128xbf16, #tpu.memory_space<vmem>>, %arg21: memref<2x1x128xf32, #tpu.memory_space<vmem>>, %arg22: memref<32x128xf32, #tpu.memory_space<vmem>>) attributes {dimension_semantics = [], scalar_prefetch = 0 : i64, scratch_operands = 0 : i64, tpu.core_type = #tpu.core_type<tc>} {
    %0 = tpu.iota {dimensions = array<i32: 1>} : vector<64x32xi32>
    %c0 = arith.constant 0 : index
    %c0_0 = arith.constant 0 : index
    %1 = vector.load %arg0[%c0, %c0_0] : memref<64x1xi32, #tpu.memory_space<vmem>>, vector<64x1xi32>
    %2 = vector.broadcast %1 : vector<64x1xi32> to vector<64x32xi32>
    %3 = arith.cmpi eq, %2, %0 : vector<64x32xi32>
    %4 = arith.extui %3 : vector<64x32xi1> to vector<64x32xi32>
    %5 = arith.sitofp %4 : vector<64x32xi32> to vector<64x32xf32>
    %6 = arith.truncf %5 : vector<64x32xf32> to vector<64x32xbf16>
    %c0_1 = arith.constant 0 : index
    %c0_2 = arith.constant 0 : index
    %7 = vector.load %arg1[%c0_1, %c0_2] : memref<64x1xi32, #tpu.memory_space<vmem>>, vector<64x1xi32>
    %8 = vector.broadcast %7 : vector<64x1xi32> to vector<64x32xi32>
    %9 = arith.cmpi eq, %8, %0 : vector<64x32xi32>
    %10 = arith.extui %9 : vector<64x32xi1> to vector<64x32xi32>
    %11 = arith.sitofp %10 : vector<64x32xi32> to vector<64x32xf32>
    %12 = arith.truncf %11 : vector<64x32xf32> to vector<64x32xbf16>
    %c0_3 = arith.constant 0 : index
    %c0_4 = arith.constant 0 : index
    %13 = vector.load %arg2[%c0_3, %c0_4] : memref<32x1xf32, #tpu.memory_space<vmem>>, vector<32x1xf32>
    %c0_5 = arith.constant 0 : index
    %c0_6 = arith.constant 0 : index
    %14 = vector.load %arg3[%c0_5, %c0_6] : memref<32x128xf32, #tpu.memory_space<vmem>>, vector<32x128xf32>
    %15 = arith.truncf %14 : vector<32x128xf32> to vector<32x128xbf16>
    %c0_7 = arith.constant 0 : index
    %c0_8 = arith.constant 0 : index
    %16 = vector.load %arg7[%c0_7, %c0_8] : memref<128x128xbf16, #tpu.memory_space<vmem>>, vector<128x128xbf16>
    %cst = arith.constant dense<0.000000e+00> : vector<32x128xf32>
    %17 = tpu.matmul %15, %16, %cst {dimension_numbers = #tpu.dot_dimension_numbers<[1], [0], [0], [1], [0, 0, 1, 1], [], []>} : vector<32x128xbf16>, vector<128x128xbf16>, vector<32x128xf32> -> vector<32x128xf32>
    %c0_9 = arith.constant 0 : index
    %c0_10 = arith.constant 0 : index
    %18 = vector.load %arg4[%c0_9, %c0_10] : memref<32x1xf32, #tpu.memory_space<vmem>>, vector<32x1xf32>
    %c0_11 = arith.constant 0 : index
    %c0_12 = arith.constant 0 : index
    %19 = vector.load %arg8[%c0_11, %c0_12] : memref<1x128xf32, #tpu.memory_space<vmem>>, vector<1x128xf32>
    %20 = vector.broadcast %18 : vector<32x1xf32> to vector<32x128xf32>
    %21 = vector.broadcast %19 : vector<1x128xf32> to vector<32x128xf32>
    %22 = arith.mulf %20, %21 : vector<32x128xf32>
    %23 = arith.addf %17, %22 : vector<32x128xf32>
    %c0_13 = arith.constant 0 : index
    %c0_14 = arith.constant 0 : index
    %24 = vector.load %arg9[%c0_13, %c0_14] : memref<1x128xf32, #tpu.memory_space<vmem>>, vector<1x128xf32>
    %25 = vector.broadcast %24 : vector<1x128xf32> to vector<32x128xf32>
    %26 = arith.addf %23, %25 : vector<32x128xf32>
    %cst_15 = arith.constant 0.000000e+00 : f32
    %27 = vector.broadcast %cst_15 : f32 to vector<32x128xf32>
    %28 = arith.minimumf %26, %27 : vector<32x128xf32>
    %29 = math.exp %28 : vector<32x128xf32>
    %cst_16 = arith.constant 1.000000e+00 : f32
    %30 = vector.broadcast %cst_16 : f32 to vector<32x128xf32>
    %31 = arith.subf %29, %30 : vector<32x128xf32>
    %cst_17 = arith.constant 1.67326319 : f32
    %32 = vector.broadcast %cst_17 : f32 to vector<32x128xf32>
    %33 = arith.mulf %32, %31 : vector<32x128xf32>
    %cst_18 = arith.constant 0.000000e+00 : f32
    %34 = vector.broadcast %cst_18 : f32 to vector<32x128xf32>
    %35 = arith.cmpf ogt, %26, %34 : vector<32x128xf32>
    %36 = arith.select %35, %26, %33 : vector<32x128xi1>, vector<32x128xf32>
    %cst_19 = arith.constant 1.05070102 : f32
    %37 = vector.broadcast %cst_19 : f32 to vector<32x128xf32>
    %38 = arith.mulf %37, %36 : vector<32x128xf32>
    %39 = arith.truncf %38 : vector<32x128xf32> to vector<32x128xbf16>
    %c0_20 = arith.constant 0 : index
    %c0_21 = arith.constant 0 : index
    %40 = vector.load %arg10[%c0_20, %c0_21] : memref<128x128xbf16, #tpu.memory_space<vmem>>, vector<128x128xbf16>
    %cst_22 = arith.constant dense<0.000000e+00> : vector<32x128xf32>
    %41 = tpu.matmul %39, %40, %cst_22 {dimension_numbers = #tpu.dot_dimension_numbers<[1], [0], [0], [1], [0, 0, 1, 1], [], []>} : vector<32x128xbf16>, vector<128x128xbf16>, vector<32x128xf32> -> vector<32x128xf32>
    %c0_23 = arith.constant 0 : index
    %c0_24 = arith.constant 0 : index
    %42 = vector.load %arg11[%c0_23, %c0_24] : memref<1x128xf32, #tpu.memory_space<vmem>>, vector<1x128xf32>
    %43 = vector.broadcast %42 : vector<1x128xf32> to vector<32x128xf32>
    %44 = arith.addf %41, %43 : vector<32x128xf32>
    %c0_25 = arith.constant 0 : index
    %c0_26 = arith.constant 0 : index
    %45 = vector.load %arg5[%c0_25, %c0_26] : memref<32x128xf32, #tpu.memory_space<vmem>>, vector<32x128xf32>
    %46 = arith.addf %44, %45 : vector<32x128xf32>
    %c0_27 = arith.constant 0 : index
    %c0_28 = arith.constant 0 : index
    %47 = vector.load %arg6[%c0_27, %c0_28] : memref<64x128xf32, #tpu.memory_space<vmem>>, vector<64x128xf32>
    %48 = arith.truncf %46 : vector<32x128xf32> to vector<32x128xbf16>
    %49 = arith.truncf %47 : vector<64x128xf32> to vector<64x128xbf16>
    %c0_29 = arith.constant 0 : index
    %c0_30 = arith.constant 0 : index
    %c0_31 = arith.constant 0 : index
    %50 = vector.load %arg13[%c0_29, %c0_30, %c0_31] : memref<2x128x128xbf16, #tpu.memory_space<vmem>>, vector<1x128x128xbf16>
    %51 = vector.shape_cast %50 : vector<1x128x128xbf16> to vector<128x128xbf16>
    %cst_32 = arith.constant dense<0.000000e+00> : vector<32x128xf32>
    %52 = tpu.matmul %48, %51, %cst_32 {dimension_numbers = #tpu.dot_dimension_numbers<[1], [0], [0], [1], [0, 0, 1, 1], [], []>} : vector<32x128xbf16>, vector<128x128xbf16>, vector<32x128xf32> -> vector<32x128xf32>
    %53 = arith.truncf %52 : vector<32x128xf32> to vector<32x128xbf16>
    %c0_33 = arith.constant 0 : index
    %c0_34 = arith.constant 0 : index
    %c0_35 = arith.constant 0 : index
    %54 = vector.load %arg14[%c0_33, %c0_34, %c0_35] : memref<2x128x128xbf16, #tpu.memory_space<vmem>>, vector<1x128x128xbf16>
    %55 = vector.shape_cast %54 : vector<1x128x128xbf16> to vector<128x128xbf16>
    %cst_36 = arith.constant dense<0.000000e+00> : vector<32x128xf32>
    %56 = tpu.matmul %48, %55, %cst_36 {dimension_numbers = #tpu.dot_dimension_numbers<[1], [0], [0], [1], [0, 0, 1, 1], [], []>} : vector<32x128xbf16>, vector<128x128xbf16>, vector<32x128xf32> -> vector<32x128xf32>
    %57 = arith.truncf %56 : vector<32x128xf32> to vector<32x128xbf16>
    %c0_37 = arith.constant 0 : index
    %c0_38 = arith.constant 0 : index
    %c0_39 = arith.constant 0 : index
    %58 = vector.load %arg12[%c0_37, %c0_38, %c0_39] : memref<2x128x128xbf16, #tpu.memory_space<vmem>>, vector<1x128x128xbf16>
    %59 = vector.shape_cast %58 : vector<1x128x128xbf16> to vector<128x128xbf16>
    %cst_40 = arith.constant dense<0.000000e+00> : vector<64x128xf32>
    %60 = tpu.matmul %49, %59, %cst_40 {dimension_numbers = #tpu.dot_dimension_numbers<[1], [0], [0], [1], [0, 0, 1, 1], [], []>} : vector<64x128xbf16>, vector<128x128xbf16>, vector<64x128xf32> -> vector<64x128xf32>
    %cst_41 = arith.constant dense<0.000000e+00> : vector<64x128xf32>
    %61 = tpu.matmul %6, %53, %cst_41 {dimension_numbers = #tpu.dot_dimension_numbers<[1], [0], [0], [1], [0, 0, 1, 1], [], []>} : vector<64x32xbf16>, vector<32x128xbf16>, vector<64x128xf32> -> vector<64x128xf32>
    %62 = arith.addf %60, %61 : vector<64x128xf32>
    %cst_42 = arith.constant dense<0.000000e+00> : vector<64x128xf32>
    %63 = tpu.matmul %12, %57, %cst_42 {dimension_numbers = #tpu.dot_dimension_numbers<[1], [0], [0], [1], [0, 0, 1, 1], [], []>} : vector<64x32xbf16>, vector<32x128xbf16>, vector<64x128xf32> -> vector<64x128xf32>
    %64 = arith.addf %62, %63 : vector<64x128xf32>
    %c0_43 = arith.constant 0 : index
    %c0_44 = arith.constant 0 : index
    %c0_45 = arith.constant 0 : index
    %65 = vector.load %arg15[%c0_43, %c0_44, %c0_45] : memref<2x1x128xf32, #tpu.memory_space<vmem>>, vector<1x1x128xf32>
    %66 = vector.shape_cast %65 : vector<1x1x128xf32> to vector<1x128xf32>
    %67 = vector.broadcast %66 : vector<1x128xf32> to vector<64x128xf32>
    %68 = arith.addf %64, %67 : vector<64x128xf32>
    %cst_46 = arith.constant 0.000000e+00 : f32
    %69 = vector.broadcast %cst_46 : f32 to vector<64x128xf32>
    %70 = arith.minimumf %68, %69 : vector<64x128xf32>
    %71 = math.exp %70 : vector<64x128xf32>
    %cst_47 = arith.constant 1.000000e+00 : f32
    %72 = vector.broadcast %cst_47 : f32 to vector<64x128xf32>
    %73 = arith.subf %71, %72 : vector<64x128xf32>
    %cst_48 = arith.constant 1.67326319 : f32
    %74 = vector.broadcast %cst_48 : f32 to vector<64x128xf32>
    %75 = arith.mulf %74, %73 : vector<64x128xf32>
    %cst_49 = arith.constant 0.000000e+00 : f32
    %76 = vector.broadcast %cst_49 : f32 to vector<64x128xf32>
    %77 = arith.cmpf ogt, %68, %76 : vector<64x128xf32>
    %78 = arith.select %77, %68, %75 : vector<64x128xi1>, vector<64x128xf32>
    %cst_50 = arith.constant 1.05070102 : f32
    %79 = vector.broadcast %cst_50 : f32 to vector<64x128xf32>
    %80 = arith.mulf %79, %78 : vector<64x128xf32>
    %81 = arith.truncf %80 : vector<64x128xf32> to vector<64x128xbf16>
    %c0_51 = arith.constant 0 : index
    %c0_52 = arith.constant 0 : index
    %c0_53 = arith.constant 0 : index
    %82 = vector.load %arg16[%c0_51, %c0_52, %c0_53] : memref<2x128x128xbf16, #tpu.memory_space<vmem>>, vector<1x128x128xbf16>
    %83 = vector.shape_cast %82 : vector<1x128x128xbf16> to vector<128x128xbf16>
    %cst_54 = arith.constant dense<0.000000e+00> : vector<64x128xf32>
    %84 = tpu.matmul %81, %83, %cst_54 {dimension_numbers = #tpu.dot_dimension_numbers<[1], [0], [0], [1], [0, 0, 1, 1], [], []>} : vector<64x128xbf16>, vector<128x128xbf16>, vector<64x128xf32> -> vector<64x128xf32>
    %c0_55 = arith.constant 0 : index
    %c0_56 = arith.constant 0 : index
    %c0_57 = arith.constant 0 : index
    %85 = vector.load %arg17[%c0_55, %c0_56, %c0_57] : memref<2x1x128xf32, #tpu.memory_space<vmem>>, vector<1x1x128xf32>
    %86 = vector.shape_cast %85 : vector<1x1x128xf32> to vector<1x128xf32>
    %87 = vector.broadcast %86 : vector<1x128xf32> to vector<64x128xf32>
    %88 = arith.addf %84, %87 : vector<64x128xf32>
    %89 = arith.addf %88, %47 : vector<64x128xf32>
    %90 = arith.truncf %89 : vector<64x128xf32> to vector<64x128xbf16>
    %cst_58 = arith.constant dense<0.000000e+00> : vector<32x128xf32>
    %91 = tpu.matmul %12, %90, %cst_58 {dimension_numbers = #tpu.dot_dimension_numbers<[0], [0], [1], [1], [0, 1, 1, 1], [], []>} : vector<64x32xbf16>, vector<64x128xbf16>, vector<32x128xf32> -> vector<32x128xf32>
    %92 = vector.broadcast %13 : vector<32x1xf32> to vector<32x128xf32>
    %93 = arith.mulf %91, %92 : vector<32x128xf32>
    %94 = arith.truncf %93 : vector<32x128xf32> to vector<32x128xbf16>
    %95 = tpu.concatenate %48, %94 in 1 : vector<32x128xbf16>, vector<32x128xbf16> -> vector<32x256xbf16>
    %c0_59 = arith.constant 0 : index
    %c0_60 = arith.constant 0 : index
    %c0_61 = arith.constant 0 : index
    %96 = vector.load %arg18[%c0_59, %c0_60, %c0_61] : memref<2x256x128xbf16, #tpu.memory_space<vmem>>, vector<1x256x128xbf16>
    %97 = vector.shape_cast %96 : vector<1x256x128xbf16> to vector<256x128xbf16>
    %cst_62 = arith.constant dense<0.000000e+00> : vector<32x128xf32>
    %98 = tpu.matmul %95, %97, %cst_62 {dimension_numbers = #tpu.dot_dimension_numbers<[1], [0], [0], [1], [0, 0, 1, 1], [], []>} : vector<32x256xbf16>, vector<256x128xbf16>, vector<32x128xf32> -> vector<32x128xf32>
    %c0_63 = arith.constant 0 : index
    %c0_64 = arith.constant 0 : index
    %c0_65 = arith.constant 0 : index
    %99 = vector.load %arg19[%c0_63, %c0_64, %c0_65] : memref<2x1x128xf32, #tpu.memory_space<vmem>>, vector<1x1x128xf32>
    %100 = vector.shape_cast %99 : vector<1x1x128xf32> to vector<1x128xf32>
    %101 = vector.broadcast %100 : vector<1x128xf32> to vector<32x128xf32>
    %102 = arith.addf %98, %101 : vector<32x128xf32>
    %cst_66 = arith.constant 0.000000e+00 : f32
    %103 = vector.broadcast %cst_66 : f32 to vector<32x128xf32>
    %104 = arith.minimumf %102, %103 : vector<32x128xf32>
    %105 = math.exp %104 : vector<32x128xf32>
    %cst_67 = arith.constant 1.000000e+00 : f32
    %106 = vector.broadcast %cst_67 : f32 to vector<32x128xf32>
    %107 = arith.subf %105, %106 : vector<32x128xf32>
    %cst_68 = arith.constant 1.67326319 : f32
    %108 = vector.broadcast %cst_68 : f32 to vector<32x128xf32>
    %109 = arith.mulf %108, %107 : vector<32x128xf32>
    %cst_69 = arith.constant 0.000000e+00 : f32
    %110 = vector.broadcast %cst_69 : f32 to vector<32x128xf32>
    %111 = arith.cmpf ogt, %102, %110 : vector<32x128xf32>
    %112 = arith.select %111, %102, %109 : vector<32x128xi1>, vector<32x128xf32>
    %cst_70 = arith.constant 1.05070102 : f32
    %113 = vector.broadcast %cst_70 : f32 to vector<32x128xf32>
    %114 = arith.mulf %113, %112 : vector<32x128xf32>
    %115 = arith.truncf %114 : vector<32x128xf32> to vector<32x128xbf16>
    %c0_71 = arith.constant 0 : index
    %c0_72 = arith.constant 0 : index
    %c0_73 = arith.constant 0 : index
    %116 = vector.load %arg20[%c0_71, %c0_72, %c0_73] : memref<2x128x128xbf16, #tpu.memory_space<vmem>>, vector<1x128x128xbf16>
    %117 = vector.shape_cast %116 : vector<1x128x128xbf16> to vector<128x128xbf16>
    %cst_74 = arith.constant dense<0.000000e+00> : vector<32x128xf32>
    %118 = tpu.matmul %115, %117, %cst_74 {dimension_numbers = #tpu.dot_dimension_numbers<[1], [0], [0], [1], [0, 0, 1, 1], [], []>} : vector<32x128xbf16>, vector<128x128xbf16>, vector<32x128xf32> -> vector<32x128xf32>
    %c0_75 = arith.constant 0 : index
    %c0_76 = arith.constant 0 : index
    %c0_77 = arith.constant 0 : index
    %119 = vector.load %arg21[%c0_75, %c0_76, %c0_77] : memref<2x1x128xf32, #tpu.memory_space<vmem>>, vector<1x1x128xf32>
    %120 = vector.shape_cast %119 : vector<1x1x128xf32> to vector<1x128xf32>
    %121 = vector.broadcast %120 : vector<1x128xf32> to vector<32x128xf32>
    %122 = arith.addf %118, %121 : vector<32x128xf32>
    %123 = arith.addf %122, %46 : vector<32x128xf32>
    %124 = arith.truncf %123 : vector<32x128xf32> to vector<32x128xbf16>
    %125 = arith.truncf %89 : vector<64x128xf32> to vector<64x128xbf16>
    %c1 = arith.constant 1 : index
    %c0_78 = arith.constant 0 : index
    %c0_79 = arith.constant 0 : index
    %126 = vector.load %arg13[%c1, %c0_78, %c0_79] : memref<2x128x128xbf16, #tpu.memory_space<vmem>>, vector<1x128x128xbf16>
    %127 = vector.shape_cast %126 : vector<1x128x128xbf16> to vector<128x128xbf16>
    %cst_80 = arith.constant dense<0.000000e+00> : vector<32x128xf32>
    %128 = tpu.matmul %124, %127, %cst_80 {dimension_numbers = #tpu.dot_dimension_numbers<[1], [0], [0], [1], [0, 0, 1, 1], [], []>} : vector<32x128xbf16>, vector<128x128xbf16>, vector<32x128xf32> -> vector<32x128xf32>
    %129 = arith.truncf %128 : vector<32x128xf32> to vector<32x128xbf16>
    %c1_81 = arith.constant 1 : index
    %c0_82 = arith.constant 0 : index
    %c0_83 = arith.constant 0 : index
    %130 = vector.load %arg14[%c1_81, %c0_82, %c0_83] : memref<2x128x128xbf16, #tpu.memory_space<vmem>>, vector<1x128x128xbf16>
    %131 = vector.shape_cast %130 : vector<1x128x128xbf16> to vector<128x128xbf16>
    %cst_84 = arith.constant dense<0.000000e+00> : vector<32x128xf32>
    %132 = tpu.matmul %124, %131, %cst_84 {dimension_numbers = #tpu.dot_dimension_numbers<[1], [0], [0], [1], [0, 0, 1, 1], [], []>} : vector<32x128xbf16>, vector<128x128xbf16>, vector<32x128xf32> -> vector<32x128xf32>
    %133 = arith.truncf %132 : vector<32x128xf32> to vector<32x128xbf16>
    %c1_85 = arith.constant 1 : index
    %c0_86 = arith.constant 0 : index
    %c0_87 = arith.constant 0 : index
    %134 = vector.load %arg12[%c1_85, %c0_86, %c0_87] : memref<2x128x128xbf16, #tpu.memory_space<vmem>>, vector<1x128x128xbf16>
    %135 = vector.shape_cast %134 : vector<1x128x128xbf16> to vector<128x128xbf16>
    %cst_88 = arith.constant dense<0.000000e+00> : vector<64x128xf32>
    %136 = tpu.matmul %125, %135, %cst_88 {dimension_numbers = #tpu.dot_dimension_numbers<[1], [0], [0], [1], [0, 0, 1, 1], [], []>} : vector<64x128xbf16>, vector<128x128xbf16>, vector<64x128xf32> -> vector<64x128xf32>
    %cst_89 = arith.constant dense<0.000000e+00> : vector<64x128xf32>
    %137 = tpu.matmul %6, %129, %cst_89 {dimension_numbers = #tpu.dot_dimension_numbers<[1], [0], [0], [1], [0, 0, 1, 1], [], []>} : vector<64x32xbf16>, vector<32x128xbf16>, vector<64x128xf32> -> vector<64x128xf32>
    %138 = arith.addf %136, %137 : vector<64x128xf32>
    %cst_90 = arith.constant dense<0.000000e+00> : vector<64x128xf32>
    %139 = tpu.matmul %12, %133, %cst_90 {dimension_numbers = #tpu.dot_dimension_numbers<[1], [0], [0], [1], [0, 0, 1, 1], [], []>} : vector<64x32xbf16>, vector<32x128xbf16>, vector<64x128xf32> -> vector<64x128xf32>
    %140 = arith.addf %138, %139 : vector<64x128xf32>
    %c1_91 = arith.constant 1 : index
    %c0_92 = arith.constant 0 : index
    %c0_93 = arith.constant 0 : index
    %141 = vector.load %arg15[%c1_91, %c0_92, %c0_93] : memref<2x1x128xf32, #tpu.memory_space<vmem>>, vector<1x1x128xf32>
    %142 = vector.shape_cast %141 : vector<1x1x128xf32> to vector<1x128xf32>
    %143 = vector.broadcast %142 : vector<1x128xf32> to vector<64x128xf32>
    %144 = arith.addf %140, %143 : vector<64x128xf32>
    %cst_94 = arith.constant 0.000000e+00 : f32
    %145 = vector.broadcast %cst_94 : f32 to vector<64x128xf32>
    %146 = arith.minimumf %144, %145 : vector<64x128xf32>
    %147 = math.exp %146 : vector<64x128xf32>
    %cst_95 = arith.constant 1.000000e+00 : f32
    %148 = vector.broadcast %cst_95 : f32 to vector<64x128xf32>
    %149 = arith.subf %147, %148 : vector<64x128xf32>
    %cst_96 = arith.constant 1.67326319 : f32
    %150 = vector.broadcast %cst_96 : f32 to vector<64x128xf32>
    %151 = arith.mulf %150, %149 : vector<64x128xf32>
    %cst_97 = arith.constant 0.000000e+00 : f32
    %152 = vector.broadcast %cst_97 : f32 to vector<64x128xf32>
    %153 = arith.cmpf ogt, %144, %152 : vector<64x128xf32>
    %154 = arith.select %153, %144, %151 : vector<64x128xi1>, vector<64x128xf32>
    %cst_98 = arith.constant 1.05070102 : f32
    %155 = vector.broadcast %cst_98 : f32 to vector<64x128xf32>
    %156 = arith.mulf %155, %154 : vector<64x128xf32>
    %157 = arith.truncf %156 : vector<64x128xf32> to vector<64x128xbf16>
    %c1_99 = arith.constant 1 : index
    %c0_100 = arith.constant 0 : index
    %c0_101 = arith.constant 0 : index
    %158 = vector.load %arg16[%c1_99, %c0_100, %c0_101] : memref<2x128x128xbf16, #tpu.memory_space<vmem>>, vector<1x128x128xbf16>
    %159 = vector.shape_cast %158 : vector<1x128x128xbf16> to vector<128x128xbf16>
    %cst_102 = arith.constant dense<0.000000e+00> : vector<64x128xf32>
    %160 = tpu.matmul %157, %159, %cst_102 {dimension_numbers = #tpu.dot_dimension_numbers<[1], [0], [0], [1], [0, 0, 1, 1], [], []>} : vector<64x128xbf16>, vector<128x128xbf16>, vector<64x128xf32> -> vector<64x128xf32>
    %c1_103 = arith.constant 1 : index
    %c0_104 = arith.constant 0 : index
    %c0_105 = arith.constant 0 : index
    %161 = vector.load %arg17[%c1_103, %c0_104, %c0_105] : memref<2x1x128xf32, #tpu.memory_space<vmem>>, vector<1x1x128xf32>
    %162 = vector.shape_cast %161 : vector<1x1x128xf32> to vector<1x128xf32>
    %163 = vector.broadcast %162 : vector<1x128xf32> to vector<64x128xf32>
    %164 = arith.addf %160, %163 : vector<64x128xf32>
    %165 = arith.addf %164, %89 : vector<64x128xf32>
    %166 = arith.truncf %165 : vector<64x128xf32> to vector<64x128xbf16>
    %cst_106 = arith.constant dense<0.000000e+00> : vector<32x128xf32>
    %167 = tpu.matmul %12, %166, %cst_106 {dimension_numbers = #tpu.dot_dimension_numbers<[0], [0], [1], [1], [0, 1, 1, 1], [], []>} : vector<64x32xbf16>, vector<64x128xbf16>, vector<32x128xf32> -> vector<32x128xf32>
    %168 = vector.broadcast %13 : vector<32x1xf32> to vector<32x128xf32>
    %169 = arith.mulf %167, %168 : vector<32x128xf32>
    %170 = arith.truncf %169 : vector<32x128xf32> to vector<32x128xbf16>
    %171 = tpu.concatenate %124, %170 in 1 : vector<32x128xbf16>, vector<32x128xbf16> -> vector<32x256xbf16>
    %c1_107 = arith.constant 1 : index
    %c0_108 = arith.constant 0 : index
    %c0_109 = arith.constant 0 : index
    %172 = vector.load %arg18[%c1_107, %c0_108, %c0_109] : memref<2x256x128xbf16, #tpu.memory_space<vmem>>, vector<1x256x128xbf16>
    %173 = vector.shape_cast %172 : vector<1x256x128xbf16> to vector<256x128xbf16>
    %cst_110 = arith.constant dense<0.000000e+00> : vector<32x128xf32>
    %174 = tpu.matmul %171, %173, %cst_110 {dimension_numbers = #tpu.dot_dimension_numbers<[1], [0], [0], [1], [0, 0, 1, 1], [], []>} : vector<32x256xbf16>, vector<256x128xbf16>, vector<32x128xf32> -> vector<32x128xf32>
    %c1_111 = arith.constant 1 : index
    %c0_112 = arith.constant 0 : index
    %c0_113 = arith.constant 0 : index
    %175 = vector.load %arg19[%c1_111, %c0_112, %c0_113] : memref<2x1x128xf32, #tpu.memory_space<vmem>>, vector<1x1x128xf32>
    %176 = vector.shape_cast %175 : vector<1x1x128xf32> to vector<1x128xf32>
    %177 = vector.broadcast %176 : vector<1x128xf32> to vector<32x128xf32>
    %178 = arith.addf %174, %177 : vector<32x128xf32>
    %cst_114 = arith.constant 0.000000e+00 : f32
    %179 = vector.broadcast %cst_114 : f32 to vector<32x128xf32>
    %180 = arith.minimumf %178, %179 : vector<32x128xf32>
    %181 = math.exp %180 : vector<32x128xf32>
    %cst_115 = arith.constant 1.000000e+00 : f32
    %182 = vector.broadcast %cst_115 : f32 to vector<32x128xf32>
    %183 = arith.subf %181, %182 : vector<32x128xf32>
    %cst_116 = arith.constant 1.67326319 : f32
    %184 = vector.broadcast %cst_116 : f32 to vector<32x128xf32>
    %185 = arith.mulf %184, %183 : vector<32x128xf32>
    %cst_117 = arith.constant 0.000000e+00 : f32
    %186 = vector.broadcast %cst_117 : f32 to vector<32x128xf32>
    %187 = arith.cmpf ogt, %178, %186 : vector<32x128xf32>
    %188 = arith.select %187, %178, %185 : vector<32x128xi1>, vector<32x128xf32>
    %cst_118 = arith.constant 1.05070102 : f32
    %189 = vector.broadcast %cst_118 : f32 to vector<32x128xf32>
    %190 = arith.mulf %189, %188 : vector<32x128xf32>
    %191 = arith.truncf %190 : vector<32x128xf32> to vector<32x128xbf16>
    %c1_119 = arith.constant 1 : index
    %c0_120 = arith.constant 0 : index
    %c0_121 = arith.constant 0 : index
    %192 = vector.load %arg20[%c1_119, %c0_120, %c0_121] : memref<2x128x128xbf16, #tpu.memory_space<vmem>>, vector<1x128x128xbf16>
    %193 = vector.shape_cast %192 : vector<1x128x128xbf16> to vector<128x128xbf16>
    %cst_122 = arith.constant dense<0.000000e+00> : vector<32x128xf32>
    %194 = tpu.matmul %191, %193, %cst_122 {dimension_numbers = #tpu.dot_dimension_numbers<[1], [0], [0], [1], [0, 0, 1, 1], [], []>} : vector<32x128xbf16>, vector<128x128xbf16>, vector<32x128xf32> -> vector<32x128xf32>
    %c1_123 = arith.constant 1 : index
    %c0_124 = arith.constant 0 : index
    %c0_125 = arith.constant 0 : index
    %195 = vector.load %arg21[%c1_123, %c0_124, %c0_125] : memref<2x1x128xf32, #tpu.memory_space<vmem>>, vector<1x1x128xf32>
    %196 = vector.shape_cast %195 : vector<1x1x128xf32> to vector<1x128xf32>
    %197 = vector.broadcast %196 : vector<1x128xf32> to vector<32x128xf32>
    %198 = arith.addf %194, %197 : vector<32x128xf32>
    %199 = arith.addf %198, %123 : vector<32x128xf32>
    %c0_126 = arith.constant 0 : index
    %c0_127 = arith.constant 0 : index
    %200 = vector.load %arg22[%c0_126, %c0_127] : memref<32x128xf32, #tpu.memory_space<vmem>>, vector<32x128xf32>
    tpu.vector_store %arg22[%c0_126, %c0_127], %199 {strides = array<i32>} : memref<32x128xf32, #tpu.memory_space<vmem>>, vector<32x128xf32>,
    return
  }
}

</mosaic_0001>

<llo_original>
// kernel: up_block_forward.1
$region0: #{up_block_forward.1}
  #allocation0 [shape = 'u32[]', space=smem, size = 0x4, offset = 0x4, fixed_abs, tag = 'smem constant byte address 0x4 - core index']
  #allocation1 [shape = 'u32[144,128]{1,0:T(1,128)}', space=vmem, size = 0x12000, scoped, tag = 'internal scratch']
  %s0 = inlined_call_operand.hbm [shape: s32[64,1], index: 0, kind: input, shape index: {}]
  %s1 = inlined_call_operand.hbm [shape: s32[64,1], index: 1, kind: input, shape index: {}]
  %s2 = inlined_call_operand.hbm [shape: f32[32,1], index: 2, kind: input, shape index: {}]
  %s3 = inlined_call_operand.hbm [shape: f32[32,128], index: 3, kind: input, shape index: {}]
  %s4 = inlined_call_operand.hbm [shape: f32[32,1], index: 4, kind: input, shape index: {}]
  %s5 = inlined_call_operand.hbm [shape: f32[32,128], index: 5, kind: input, shape index: {}]
  %s6 = inlined_call_operand.hbm [shape: f32[64,128], index: 6, kind: input, shape index: {}]
  %s7 = inlined_call_operand.hbm [shape: bf16[128,128], index: 7, kind: input, shape index: {}]
  %s8 = inlined_call_operand.hbm [shape: f32[1,128], index: 8, kind: input, shape index: {}]
  %s9 = inlined_call_operand.hbm [shape: f32[1,128], index: 9, kind: input, shape index: {}]
  %s10 = inlined_call_operand.hbm [shape: bf16[128,128], index: 10, kind: input, shape index: {}]
  %s11 = inlined_call_operand.hbm [shape: f32[1,128], index: 11, kind: input, shape index: {}]
  %s12 = inlined_call_operand.hbm [shape: bf16[2,128,128], index: 12, kind: input, shape index: {}]
  %s13 = inlined_call_operand.hbm [shape: bf16[2,128,128], index: 13, kind: input, shape index: {}]
  %s14 = inlined_call_operand.hbm [shape: bf16[2,128,128], index: 14, kind: input, shape index: {}]
  %s15 = inlined_call_operand.hbm [shape: f32[2,1,128], index: 15, kind: input, shape index: {}]
  %s16 = inlined_call_operand.hbm [shape: bf16[2,128,128], index: 16, kind: input, shape index: {}]
  %s17 = inlined_call_operand.hbm [shape: f32[2,1,128], index: 17, kind: input, shape index: {}]
  %s18 = inlined_call_operand.hbm [shape: bf16[2,256,128], index: 18, kind: input, shape index: {}]
  %s19 = inlined_call_operand.hbm [shape: f32[2,1,128], index: 19, kind: input, shape index: {}]
  %s20 = inlined_call_operand.hbm [shape: bf16[2,128,128], index: 20, kind: input, shape index: {}]
  %s21 = inlined_call_operand.hbm [shape: f32[2,1,128], index: 21, kind: input, shape index: {}]
  %s22 = inlined_call_operand.hbm [shape: f32[32,128], index: 22, kind: output, shape index: {}]
  %s23 = sld [smem:[#allocation0]]
  $region186: #{up_block_forward.1} parent=0
    _
  %s25 = ssub.s32 1, %s23
  %s26 = scalar_select 0, %s25, %s23
  $region1: #{up_block_forward.1} parent=0
    #allocation2 [shape = 'u8[32768]{0}', space=vmem, size = 0x8000, scoped, tag = 'input window, operand 0, single buffered']
    #allocation3 [shape = 's32[1]{0}', space=sflag, size = 0x4, scoped, tag = 'scoped memory for up_block_forward.1']
    #allocation4 [shape = 's32[1]{0}', space=sflag, size = 0x4, scoped, tag = 'scoped memory for up_block_forward.1']
    #allocation5 [shape = 'u8[32768]{0}', space=vmem, size = 0x8000, scoped, tag = 'input window, operand 1, single buffered']
    #allocation6 [shape = 's32[1]{0}', space=sflag, size = 0x4, scoped, tag = 'scoped memory for up_block_forward.1']
    #allocation7 [shape = 'u8[16384]{0}', space=vmem, size = 0x4000, scoped, tag = 'input window, operand 2, single buffered']
    #allocation8 [shape = 'u8[16384]{0}', space=vmem, size = 0x4000, scoped, tag = 'input window, operand 3, single buffered']
    #allocation9 [shape = 's32[1]{0}', space=sflag, size = 0x4, scoped, tag = 'scoped memory for up_block_forward.1']
    #allocation10 [shape = 'u8[16384]{0}', space=vmem, size = 0x4000, scoped, tag = 'input window, operand 4, single buffered']
    #allocation11 [shape = 'u8[16384]{0}', space=vmem, size = 0x4000, scoped, tag = 'input window, operand 5, single buffered']
    #allocation12 [shape = 's32[1]{0}', space=sflag, size = 0x4, scoped, tag = 'scoped memory for up_block_forward.1']
    #allocation13 [shape = 'u8[32768]{0}', space=vmem, size = 0x8000, scoped, tag = 'input window, operand 6, single buffered']
    #allocation14 [shape = 'u8[32768]{0}', space=vmem, size = 0x8000, scoped, tag = 'input window, operand 7, single buffered']
    #allocation15 [shape = 's32[1]{0}', space=sflag, size = 0x4, scoped, tag = 'scoped memory for up_block_forward.1']
    #allocation16 [shape = 'u8[512]{0}', space=vmem, size = 0x400, scoped, tag = 'input window, operand 8, single buffered']
    #allocation17 [shape = 'u8[512]{0}', space=vmem, size = 0x400, scoped, tag = 'input window, operand 9, single buffered']
    #allocation18 [shape = 's32[1]{0}', space=sflag, size = 0x4, scoped, tag = 'scoped memory for up_block_forward.1']
    #allocation19 [shape = 'u8[32768]{0}', space=vmem, size = 0x8000, scoped, tag = 'input window, operand 10, single buffered']
    #allocation20 [shape = 'u8[512]{0}', space=vmem, size = 0x400, scoped, tag = 'input window, operand 11, single buffered']
    #allocation21 [shape = 's32[1]{0}', space=sflag, size = 0x4, scoped, tag = 'scoped memory for up_block_forward.1']
    #allocation22 [shape = 'u8[65536]{0}', space=vmem, size = 0x10000, scoped, tag = 'input window, operand 12, single buffered']
    #allocation23 [shape = 'u8[65536]{0}', space=vmem, size = 0x10000, scoped, tag = 'input window, operand 13, single buffered']
    #allocation24 [shape = 's32[1]{0}', space=sflag, size = 0x4, scoped, tag = 'scoped memory for up_block_forward.1']
    #allocation25 [shape = 'u8[65536]{0}', space=vmem, size = 0x10000, scoped, tag = 'input window, operand 14, single buffered']
    #allocation26 [shape = 'u8[1024]{0}', space=vmem, size = 0x400, scoped, tag = 'input window, operand 15, single buffered']
    #allocation27 [shape = 's32[1]{0}', space=sflag, size = 0x4, scoped, tag = 'scoped memory for up_block_forward.1']
    #allocation28 [shape = 'u8[65536]{0}', space=vmem, size = 0x10000, scoped, tag = 'input window, operand 16, single buffered']
    #allocation29 [shape = 'u8[1024]{0}', space=vmem, size = 0x400, scoped, tag = 'input window, operand 17, single buffered']
    #allocation30 [shape = 's32[1]{0}', space=sflag, size = 0x4, scoped, tag = 'scoped memory for up_block_forward.1']
    #allocation31 [shape = 'u8[131072]{0}', space=vmem, size = 0x20000, scoped, tag = 'input window, operand 18, single buffered']
    #allocation32 [shape = 'u8[1024]{0}', space=vmem, size = 0x400, scoped, tag = 'input window, operand 19, single buffered']
    #allocation33 [shape = 's32[1]{0}', space=sflag, size = 0x4, scoped, tag = 'scoped memory for up_block_forward.1']
    #allocation34 [shape = 'u8[65536]{0}', space=vmem, size = 0x10000, scoped, tag = 'input window, operand 20, single buffered']
    #allocation35 [shape = 'u8[1024]{0}', space=vmem, size = 0x400, scoped, tag = 'input window, operand 21, single buffered']
    #allocation36 [shape = 's32[1]{0}', space=sflag, size = 0x4, scoped, tag = 'scoped memory for up_block_forward.1']
    #allocation37 [shape = 'u8[16384]{0}', space=vmem, size = 0x4000, scoped, tag = 'output window, operand 0, single buffered']
    %27 = vsyncpa [#allocation3], 0
    %28 = vsyncpa [#allocation6], 0
    %29 = vsyncpa [#allocation9], 0
    %30 = vsyncpa [#allocation12], 0
    %31 = vsyncpa [#allocation15], 0
    %32 = vsyncpa [#allocation18], 0
    %33 = vsyncpa [#allocation21], 0
    %34 = vsyncpa [#allocation24], 0
    %35 = vsyncpa [#allocation27], 0
    %36 = vsyncpa [#allocation30], 0
    %37 = vsyncpa [#allocation33], 0
    %38 = vsyncpa [#allocation36], 0
    %39 = vsyncpa [#allocation4], 0
    // Predicated region
    $region2: #{up_block_forward.1} parent=1 // pred_check
      _
    $region3: #{up_block_forward.1} parent=1 // pred_check_branch
      %41 = sbr.rel (0) target = $region5
    $region4: #{up_block_forward.1} parent=1 // pred_region
      %s43 = ssub.s32 1024, 1024
      %44 = vsyncadd [#allocation3], %s43
      %s45 = sshll.u32 [#allocation2], 4
      %s46 = int_to_ptr.vmem [resolvable:$true] %s45
      %51 = dma.hbm_to_vmem [thread:$0]  %s0, 1024, %s46, [#allocation3], 128, 128, 8
    $region5: #{up_block_forward.1} parent=1 // pred_fallthru
      _
    // Predicated region
    $region6: #{up_block_forward.1} parent=1 // pred_check
      _
    $region7: #{up_block_forward.1} parent=1 // pred_check_branch
      %53 = sbr.rel (0) target = $region9
    $region8: #{up_block_forward.1} parent=1 // pred_region
      %s55 = ssub.s32 1024, 1024
      %56 = vsyncadd [#allocation6], %s55
      %s57 = sshll.u32 [#allocation5], 4
      %s58 = int_to_ptr.vmem [resolvable:$true] %s57
      %63 = dma.hbm_to_vmem [thread:$0]  %s1, 1024, %s58, [#allocation6], 128, 128, 8
    $region9: #{up_block_forward.1} parent=1 // pred_fallthru
      _
    // Predicated region
    $region10: #{up_block_forward.1} parent=1 // pred_check
      _
    $region11: #{up_block_forward.1} parent=1 // pred_check_branch
      %65 = sbr.rel (0) target = $region13
    $region12: #{up_block_forward.1} parent=1 // pred_region
      %s67 = ssub.s32 512, 512
      %68 = vsyncadd [#allocation6], %s67
      %s69 = sshll.u32 [#allocation7], 4
      %s70 = int_to_ptr.vmem [resolvable:$true] %s69
      %75 = dma.hbm_to_vmem [thread:$0]  %s2, 512, %s70, [#allocation6], 128, 128, 8
    $region13: #{up_block_forward.1} parent=1 // pred_fallthru
      _
    // Predicated region
    $region14: #{up_block_forward.1} parent=1 // pred_check
      _
    $region15: #{up_block_forward.1} parent=1 // pred_check_branch
      %77 = sbr.rel (0) target = $region17
    $region16: #{up_block_forward.1} parent=1 // pred_region
      %s79 = ssub.s32 512, 512
      %80 = vsyncadd [#allocation9], %s79
      %s81 = sshll.u32 [#allocation8], 4
      %s82 = int_to_ptr.vmem [resolvable:$true] %s81
      %87 = dma.hbm_to_vmem [thread:$0]  %s3, 512, %s82, [#allocation9], 128, 128, 8
    $region17: #{up_block_forward.1} parent=1 // pred_fallthru
      _
    // Predicated region
    $region18: #{up_block_forward.1} parent=1 // pred_check
      _
    $region19: #{up_block_forward.1} parent=1 // pred_check_branch
      %89 = sbr.rel (0) target = $region21
    $region20: #{up_block_forward.1} parent=1 // pred_region
      %s91 = ssub.s32 512, 512
      %92 = vsyncadd [#allocation9], %s91
      %s93 = sshll.u32 [#allocation10], 4
      %s94 = int_to_ptr.vmem [resolvable:$true] %s93
      %99 = dma.hbm_to_vmem [thread:$0]  %s4, 512, %s94, [#allocation9], 128, 128, 8
    $region21: #{up_block_forward.1} parent=1 // pred_fallthru
      _
    // Predicated region
    $region22: #{up_block_forward.1} parent=1 // pred_check
      _
    $region23: #{up_block_forward.1} parent=1 // pred_check_branch
      %101 = sbr.rel (0) target = $region25
    $region24: #{up_block_forward.1} parent=1 // pred_region
      %s103 = ssub.s32 512, 512
      %104 = vsyncadd [#allocation12], %s103
      %s105 = sshll.u32 [#allocation11], 4
      %s106 = int_to_ptr.vmem [resolvable:$true] %s105
      %111 = dma.hbm_to_vmem [thread:$0]  %s5, 512, %s106, [#allocation12], 128, 128, 8
    $region25: #{up_block_forward.1} parent=1 // pred_fallthru
      _
    // Predicated region
    $region26: #{up_block_forward.1} parent=1 // pred_check
      _
    $region27: #{up_block_forward.1} parent=1 // pred_check_branch
      %113 = sbr.rel (0) target = $region29
    $region28: #{up_block_forward.1} parent=1 // pred_region
      %s115 = ssub.s32 1024, 1024
      %116 = vsyncadd [#allocation12], %s115
      %s117 = sshll.u32 [#allocation13], 4
      %s118 = int_to_ptr.vmem [resolvable:$true] %s117
      %123 = dma.hbm_to_vmem [thread:$0]  %s6, 1024, %s118, [#allocation12], 128, 128, 8
    $region29: #{up_block_forward.1} parent=1 // pred_fallthru
      _
    // Predicated region
    $region30: #{up_block_forward.1} parent=1 // pred_check
      _
    $region31: #{up_block_forward.1} parent=1 // pred_check_branch
      %125 = sbr.rel (0) target = $region33
    $region32: #{up_block_forward.1} parent=1 // pred_region
      %s127 = ssub.s32 1024, 1024
      %128 = vsyncadd [#allocation15], %s127
      %s129 = sshll.u32 [#allocation14], 4
      %s130 = int_to_ptr.vmem [resolvable:$true] %s129
      %135 = dma.hbm_to_vmem [thread:$0]  %s7, 1024, %s130, [#allocation15], 64, 64, 4
    $region33: #{up_block_forward.1} parent=1 // pred_fallthru
      _
    // Predicated region
    $region34: #{up_block_forward.1} parent=1 // pred_check
      _
    $region35: #{up_block_forward.1} parent=1 // pred_check_branch
      %137 = sbr.rel (0) target = $region37
    $region36: #{up_block_forward.1} parent=1 // pred_region
      %s139 = ssub.s32 16, 16
      %140 = vsyncadd [#allocation15], %s139
      %s142 = sshll.u32 [#allocation16], 4
      %s143 = int_to_ptr.vmem [resolvable:$true] %s142
      %145 = dma.hbm_to_vmem [thread:$0]  %s8, 16, %s143, [#allocation15]
    $region37: #{up_block_forward.1} parent=1 // pred_fallthru
      _
    // Predicated region
    $region38: #{up_block_forward.1} parent=1 // pred_check
      _
    $region39: #{up_block_forward.1} parent=1 // pred_check_branch
      %147 = sbr.rel (0) target = $region41
    $region40: #{up_block_forward.1} parent=1 // pred_region
      %s149 = ssub.s32 16, 16
      %150 = vsyncadd [#allocation18], %s149
      %s152 = sshll.u32 [#allocation17], 4
      %s153 = int_to_ptr.vmem [resolvable:$true] %s152
      %155 = dma.hbm_to_vmem [thread:$0]  %s9, 16, %s153, [#allocation18]
    $region41: #{up_block_forward.1} parent=1 // pred_fallthru
      _
    // Predicated region
    $region42: #{up_block_forward.1} parent=1 // pred_check
      _
    $region43: #{up_block_forward.1} parent=1 // pred_check_branch
      %157 = sbr.rel (0) target = $region45
    $region44: #{up_block_forward.1} parent=1 // pred_region
      %s159 = ssub.s32 1024, 1024
      %160 = vsyncadd [#allocation18], %s159
      %s161 = sshll.u32 [#allocation19], 4
      %s162 = int_to_ptr.vmem [resolvable:$true] %s161
      %167 = dma.hbm_to_vmem [thread:$0]  %s10, 1024, %s162, [#allocation18], 64, 64, 4
    $region45: #{up_block_forward.1} parent=1 // pred_fallthru
      _
    // Predicated region
    $region46: #{up_block_forward.1} parent=1 // pred_check
      _
    $region47: #{up_block_forward.1} parent=1 // pred_check_branch
      %169 = sbr.rel (0) target = $region49
    $region48: #{up_block_forward.1} parent=1 // pred_region
      %s171 = ssub.s32 16, 16
      %172 = vsyncadd [#allocation21], %s171
      %s174 = sshll.u32 [#allocation20], 4
      %s175 = int_to_ptr.vmem [resolvable:$true] %s174
      %177 = dma.hbm_to_vmem [thread:$0]  %s11, 16, %s175, [#allocation21]
    $region49: #{up_block_forward.1} parent=1 // pred_fallthru
      _
    // Predicated region
    $region50: #{up_block_forward.1} parent=1 // pred_check
      _
    $region51: #{up_block_forward.1} parent=1 // pred_check_branch
      %179 = sbr.rel (0) target = $region53
    $region52: #{up_block_forward.1} parent=1 // pred_region
      %s181 = ssub.s32 2048, 2048
      %182 = vsyncadd [#allocation21], %s181
      %s183 = sshll.u32 [#allocation22], 4
      %s184 = int_to_ptr.vmem [resolvable:$true] %s183
      %189 = dma.hbm_to_vmem [thread:$0]  %s12, 2048, %s184, [#allocation21], 64, 64, 4
    $region53: #{up_block_forward.1} parent=1 // pred_fallthru
      _
    // Predicated region
    $region54: #{up_block_forward.1} parent=1 // pred_check
      _
    $region55: #{up_block_forward.1} parent=1 // pred_check_branch
      %191 = sbr.rel (0) target = $region57
    $region56: #{up_block_forward.1} parent=1 // pred_region
      %s193 = ssub.s32 2048, 2048
      %194 = vsyncadd [#allocation24], %s193
      %s195 = sshll.u32 [#allocation23], 4
      %s196 = int_to_ptr.vmem [resolvable:$true] %s195
      %201 = dma.hbm_to_vmem [thread:$0]  %s13, 2048, %s196, [#allocation24], 64, 64, 4
    $region57: #{up_block_forward.1} parent=1 // pred_fallthru
      _
    // Predicated region
    $region58: #{up_block_forward.1} parent=1 // pred_check
      _
    $region59: #{up_block_forward.1} parent=1 // pred_check_branch
      %203 = sbr.rel (0) target = $region61
    $region60: #{up_block_forward.1} parent=1 // pred_region
      %s205 = ssub.s32 2048, 2048
      %206 = vsyncadd [#allocation24], %s205
      %s207 = sshll.u32 [#allocation25], 4
      %s208 = int_to_ptr.vmem [resolvable:$true] %s207
      %213 = dma.hbm_to_vmem [thread:$0]  %s14, 2048, %s208, [#allocation24], 64, 64, 4
    $region61: #{up_block_forward.1} parent=1 // pred_fallthru
      _
    // Predicated region
    $region62: #{up_block_forward.1} parent=1 // pred_check
      _
    $region63: #{up_block_forward.1} parent=1 // pred_check_branch
      %215 = sbr.rel (0) target = $region65
    $region64: #{up_block_forward.1} parent=1 // pred_region
      %s217 = ssub.s32 32, 32
      %218 = vsyncadd [#allocation27], %s217
      %s219 = sshll.u32 [#allocation26], 4
      %s220 = int_to_ptr.vmem [resolvable:$true] %s219
      %225 = dma.hbm_to_vmem [thread:$0]  %s15, 32, %s220, [#allocation27], 16, 16, 1
    $region65: #{up_block_forward.1} parent=1 // pred_fallthru
      _
    // Predicated region
    $region66: #{up_block_forward.1} parent=1 // pred_check
      _
    $region67: #{up_block_forward.1} parent=1 // pred_check_branch
      %227 = sbr.rel (0) target = $region69
    $region68: #{up_block_forward.1} parent=1 // pred_region
      %s229 = ssub.s32 2048, 2048
      %230 = vsyncadd [#allocation27], %s229
      %s231 = sshll.u32 [#allocation28], 4
      %s232 = int_to_ptr.vmem [resolvable:$true] %s231
      %237 = dma.hbm_to_vmem [thread:$0]  %s16, 2048, %s232, [#allocation27], 64, 64, 4
    $region69: #{up_block_forward.1} parent=1 // pred_fallthru
      _
    // Predicated region
    $region70: #{up_block_forward.1} parent=1 // pred_check
      _
    $region71: #{up_block_forward.1} parent=1 // pred_check_branch
      %239 = sbr.rel (0) target = $region73
    $region72: #{up_block_forward.1} parent=1 // pred_region
      %s241 = ssub.s32 32, 32
      %242 = vsyncadd [#allocation30], %s241
      %s243 = sshll.u32 [#allocation29], 4
      %s244 = int_to_ptr.vmem [resolvable:$true] %s243
      %249 = dma.hbm_to_vmem [thread:$0]  %s17, 32, %s244, [#allocation30], 16, 16, 1
    $region73: #{up_block_forward.1} parent=1 // pred_fallthru
      _
    // Predicated region
    $region74: #{up_block_forward.1} parent=1 // pred_check
      _
    $region75: #{up_block_forward.1} parent=1 // pred_check_branch
      %251 = sbr.rel (0) target = $region77
    $region76: #{up_block_forward.1} parent=1 // pred_region
      %s253 = ssub.s32 4096, 4096
      %254 = vsyncadd [#allocation30], %s253
      %s255 = sshll.u32 [#allocation31], 4
      %s256 = int_to_ptr.vmem [resolvable:$true] %s255
      %261 = dma.hbm_to_vmem [thread:$0]  %s18, 4096, %s256, [#allocation30], 64, 64, 4
    $region77: #{up_block_forward.1} parent=1 // pred_fallthru
      _
    // Predicated region
    $region78: #{up_block_forward.1} parent=1 // pred_check
      _
    $region79: #{up_block_forward.1} parent=1 // pred_check_branch
      %263 = sbr.rel (0) target = $region81
    $region80: #{up_block_forward.1} parent=1 // pred_region
      %s265 = ssub.s32 32, 32
      %266 = vsyncadd [#allocation33], %s265
      %s267 = sshll.u32 [#allocation32], 4
      %s268 = int_to_ptr.vmem [resolvable:$true] %s267
      %273 = dma.hbm_to_vmem [thread:$0]  %s19, 32, %s268, [#allocation33], 16, 16, 1
    $region81: #{up_block_forward.1} parent=1 // pred_fallthru
      _
    // Predicated region
    $region82: #{up_block_forward.1} parent=1 // pred_check
      _
    $region83: #{up_block_forward.1} parent=1 // pred_check_branch
      %275 = sbr.rel (0) target = $region85
    $region84: #{up_block_forward.1} parent=1 // pred_region
      %s277 = ssub.s32 2048, 2048
      %278 = vsyncadd [#allocation33], %s277
      %s279 = sshll.u32 [#allocation34], 4
      %s280 = int_to_ptr.vmem [resolvable:$true] %s279
      %285 = dma.hbm_to_vmem [thread:$0]  %s20, 2048, %s280, [#allocation33], 64, 64, 4
    $region85: #{up_block_forward.1} parent=1 // pred_fallthru
      _
    // Predicated region
    $region86: #{up_block_forward.1} parent=1 // pred_check
      _
    $region87: #{up_block_forward.1} parent=1 // pred_check_branch
      %287 = sbr.rel (0) target = $region89
    $region88: #{up_block_forward.1} parent=1 // pred_region
      %s289 = ssub.s32 32, 32
      %290 = vsyncadd [#allocation36], %s289
      %s291 = sshll.u32 [#allocation35], 4
      %s292 = int_to_ptr.vmem [resolvable:$true] %s291
      %297 = dma.hbm_to_vmem [thread:$0]  %s21, 32, %s292, [#allocation36], 16, 16, 1
    $region89: #{up_block_forward.1} parent=1 // pred_fallthru
      _
    // Predicated region
    $region90: #{up_block_forward.1} parent=1 // pred_check
      _
    $region91: #{up_block_forward.1} parent=1 // pred_check_branch
      %299 = sbr.rel (0) target = $region93
    $region92: #{up_block_forward.1} parent=1 // pred_region
      %300 = dma.done [#allocation3], 1024
    $region93: #{up_block_forward.1} parent=1 // pred_fallthru
      _
    // Predicated region
    $region94: #{up_block_forward.1} parent=1 // pred_check
      _
    $region95: #{up_block_forward.1} parent=1 // pred_check_branch
      %302 = sbr.rel (0) target = $region97
    $region96: #{up_block_forward.1} parent=1 // pred_region
      %303 = dma.done [#allocation6], 1024
    $region97: #{up_block_forward.1} parent=1 // pred_fallthru
      _
    // Predicated region
    $region98: #{up_block_forward.1} parent=1 // pred_check
      _
    $region99: #{up_block_forward.1} parent=1 // pred_check_branch
      %305 = sbr.rel (0) target = $region101
    $region100: #{up_block_forward.1} parent=1 // pred_region
      %306 = dma.done [#allocation6], 512
    $region101: #{up_block_forward.1} parent=1 // pred_fallthru
      _
    // Predicated region
    $region102: #{up_block_forward.1} parent=1 // pred_check
      _
    $region103: #{up_block_forward.1} parent=1 // pred_check_branch
      %308 = sbr.rel (0) target = $region105
    $region104: #{up_block_forward.1} parent=1 // pred_region
      %309 = dma.done [#allocation9], 512
    $region105: #{up_block_forward.1} parent=1 // pred_fallthru
      _
    // Predicated region
    $region106: #{up_block_forward.1} parent=1 // pred_check
      _
    $region107: #{up_block_forward.1} parent=1 // pred_check_branch
      %311 = sbr.rel (0) target = $region109
    $region108: #{up_block_forward.1} parent=1 // pred_region
      %312 = dma.done [#allocation9], 512
    $region109: #{up_block_forward.1} parent=1 // pred_fallthru
      _
    // Predicated region
    $region110: #{up_block_forward.1} parent=1 // pred_check
      _
    $region111: #{up_block_forward.1} parent=1 // pred_check_branch
      %314 = sbr.rel (0) target = $region113
    $region112: #{up_block_forward.1} parent=1 // pred_region
      %315 = dma.done [#allocation12], 512
    $region113: #{up_block_forward.1} parent=1 // pred_fallthru
      _
    // Predicated region
    $region114: #{up_block_forward.1} parent=1 // pred_check
      _
    $region115: #{up_block_forward.1} parent=1 // pred_check_branch
      %317 = sbr.rel (0) target = $region117
    $region116: #{up_block_forward.1} parent=1 // pred_region
      %318 = dma.done [#allocation12], 1024
    $region117: #{up_block_forward.1} parent=1 // pred_fallthru
      _
    // Predicated region
    $region118: #{up_block_forward.1} parent=1 // pred_check
      _
    $region119: #{up_block_forward.1} parent=1 // pred_check_branch
      %320 = sbr.rel (0) target = $region121
    $region120: #{up_block_forward.1} parent=1 // pred_region
      %321 = dma.done [#allocation15], 1024
    $region121: #{up_block_forward.1} parent=1 // pred_fallthru
      _
    // Predicated region
    $region122: #{up_block_forward.1} parent=1 // pred_check
      _
    $region123: #{up_block_forward.1} parent=1 // pred_check_branch
      %323 = sbr.rel (0) target = $region125
    $region124: #{up_block_forward.1} parent=1 // pred_region
      %324 = dma.done [#allocation15], 16
    $region125: #{up_block_forward.1} parent=1 // pred_fallthru
      _
    // Predicated region
    $region126: #{up_block_forward.1} parent=1 // pred_check
      _
    $region127: #{up_block_forward.1} parent=1 // pred_check_branch
      %326 = sbr.rel (0) target = $region129
    $region128: #{up_block_forward.1} parent=1 // pred_region
      %327 = dma.done [#allocation18], 16
    $region129: #{up_block_forward.1} parent=1 // pred_fallthru
      _
    // Predicated region
    $region130: #{up_block_forward.1} parent=1 // pred_check
      _
    $region131: #{up_block_forward.1} parent=1 // pred_check_branch
      %329 = sbr.rel (0) target = $region133
    $region132: #{up_block_forward.1} parent=1 // pred_region
      %330 = dma.done [#allocation18], 1024
    $region133: #{up_block_forward.1} parent=1 // pred_fallthru
      _
    // Predicated region
    $region134: #{up_block_forward.1} parent=1 // pred_check
      _
    $region135: #{up_block_forward.1} parent=1 // pred_check_branch
      %332 = sbr.rel (0) target = $region137
    $region136: #{up_block_forward.1} parent=1 // pred_region
      %333 = dma.done [#allocation21], 16
    $region137: #{up_block_forward.1} parent=1 // pred_fallthru
      _
    // Predicated region
    $region138: #{up_block_forward.1} parent=1 // pred_check
      _
    $region139: #{up_block_forward.1} parent=1 // pred_check_branch
      %335 = sbr.rel (0) target = $region141
    $region140: #{up_block_forward.1} parent=1 // pred_region
      %336 = dma.done [#allocation21], 2048
    $region141: #{up_block_forward.1} parent=1 // pred_fallthru
      _
    // Predicated region
    $region142: #{up_block_forward.1} parent=1 // pred_check
      _
    $region143: #{up_block_forward.1} parent=1 // pred_check_branch
      %338 = sbr.rel (0) target = $region145
    $region144: #{up_block_forward.1} parent=1 // pred_region
      %339 = dma.done [#allocation24], 2048
    $region145: #{up_block_forward.1} parent=1 // pred_fallthru
      _
    // Predicated region
    $region146: #{up_block_forward.1} parent=1 // pred_check
      _
    $region147: #{up_block_forward.1} parent=1 // pred_check_branch
      %341 = sbr.rel (0) target = $region149
    $region148: #{up_block_forward.1} parent=1 // pred_region
      %342 = dma.done [#allocation24], 2048
    $region149: #{up_block_forward.1} parent=1 // pred_fallthru
      _
    // Predicated region
    $region150: #{up_block_forward.1} parent=1 // pred_check
      _
    $region151: #{up_block_forward.1} parent=1 // pred_check_branch
      %344 = sbr.rel (0) target = $region153
    $region152: #{up_block_forward.1} parent=1 // pred_region
      %345 = dma.done [#allocation27], 32
    $region153: #{up_block_forward.1} parent=1 // pred_fallthru
      _
    // Predicated region
    $region154: #{up_block_forward.1} parent=1 // pred_check
      _
    $region155: #{up_block_forward.1} parent=1 // pred_check_branch
      %347 = sbr.rel (0) target = $region157
    $region156: #{up_block_forward.1} parent=1 // pred_region
      %348 = dma.done [#allocation27], 2048
    $region157: #{up_block_forward.1} parent=1 // pred_fallthru
      _
    // Predicated region
    $region158: #{up_block_forward.1} parent=1 // pred_check
      _
    $region159: #{up_block_forward.1} parent=1 // pred_check_branch
      %350 = sbr.rel (0) target = $region161
    $region160: #{up_block_forward.1} parent=1 // pred_region
      %351 = dma.done [#allocation30], 32
    $region161: #{up_block_forward.1} parent=1 // pred_fallthru
      _
    // Predicated region
    $region162: #{up_block_forward.1} parent=1 // pred_check
      _
    $region163: #{up_block_forward.1} parent=1 // pred_check_branch
      %353 = sbr.rel (0) target = $region165
    $region164: #{up_block_forward.1} parent=1 // pred_region
      %354 = dma.done [#allocation30], 4096
    $region165: #{up_block_forward.1} parent=1 // pred_fallthru
      _
    // Predicated region
    $region166: #{up_block_forward.1} parent=1 // pred_check
      _
    $region167: #{up_block_forward.1} parent=1 // pred_check_branch
      %356 = sbr.rel (0) target = $region169
    $region168: #{up_block_forward.1} parent=1 // pred_region
      %357 = dma.done [#allocation33], 32
    $region169: #{up_block_forward.1} parent=1 // pred_fallthru
      _
    // Predicated region
    $region170: #{up_block_forward.1} parent=1 // pred_check
      _
    $region171: #{up_block_forward.1} parent=1 // pred_check_branch
      %359 = sbr.rel (0) target = $region173
    $region172: #{up_block_forward.1} parent=1 // pred_region
      %360 = dma.done [#allocation33], 2048
    $region173: #{up_block_forward.1} parent=1 // pred_fallthru
      _
    // Predicated region
    $region174: #{up_block_forward.1} parent=1 // pred_check
      _
    $region175: #{up_block_forward.1} parent=1 // pred_check_branch
      %362 = sbr.rel (0) target = $region177
    $region176: #{up_block_forward.1} parent=1 // pred_region
      %363 = dma.done [#allocation36], 32
    $region177: #{up_block_forward.1} parent=1 // pred_fallthru
      _
    %v365 = vlaneseq
    %v366 = vand.u32 %v365, 127
    %v367 = vld [vmem:[#allocation2] sm:$0xff]
    %v368 = vld [vmem:[#allocation2 + $0x8] sm:$0xff]
    %v369 = vld [vmem:[#allocation2 + $0x10] sm:$0xff]
    %v370 = vld [vmem:[#allocation2 + $0x18] sm:$0xff]
    %v371 = vld [vmem:[#allocation2 + $0x20] sm:$0xff]
    %v372 = vld [vmem:[#allocation2 + $0x28] sm:$0xff]
    %v373 = vld [vmem:[#allocation2 + $0x30] sm:$0xff]
    %v374 = vld [vmem:[#allocation2 + $0x38] sm:$0xff]
    %375 = vset.pattern.permute.xlu0 0
    %376 = vperm.xlu0 %375, %v367
    %v377 = vpop.permute.xlu0 %376
    %378 = vset.pattern.permute.xlu0 0
    %379 = vperm.xlu0 %378, %v368
    %v380 = vpop.permute.xlu0 %379
    %381 = vset.pattern.permute.xlu0 0
    %382 = vperm.xlu0 %381, %v369
    %v383 = vpop.permute.xlu0 %382
    %384 = vset.pattern.permute.xlu0 0
    %385 = vperm.xlu0 %384, %v370
    %v386 = vpop.permute.xlu0 %385
    %387 = vset.pattern.permute.xlu0 0
    %388 = vperm.xlu0 %387, %v371
    %v389 = vpop.permute.xlu0 %388
    %390 = vset.pattern.permute.xlu0 0
    %391 = vperm.xlu0 %390, %v372
    %v392 = vpop.permute.xlu0 %391
    %393 = vset.pattern.permute.xlu0 0
    %394 = vperm.xlu0 %393, %v373
    %v395 = vpop.permute.xlu0 %394
    %396 = vset.pattern.permute.xlu0 0
    %397 = vperm.xlu0 %396, %v374
    %v398 = vpop.permute.xlu0 %397
    %vm399 = vcmp.eq.s32.totalorder %v377, %v366
    %vm400 = vcmp.eq.s32.totalorder %v380, %v366
    %vm401 = vcmp.eq.s32.totalorder %v383, %v366
    %vm402 = vcmp.eq.s32.totalorder %v386, %v366
    %vm403 = vcmp.eq.s32.totalorder %v389, %v366
    %vm404 = vcmp.eq.s32.totalorder %v392, %v366
    %vm405 = vcmp.eq.s32.totalorder %v395, %v366
    %vm406 = vcmp.eq.s32.totalorder %v398, %v366
    %v407 = vsel %vm399, 1, 0
    %v408 = vsel %vm400, 1, 0
    %v409 = vsel %vm401, 1, 0
    %v410 = vsel %vm402, 1, 0
    %v411 = vsel %vm403, 1, 0
    %v412 = vsel %vm404, 1, 0
    %v413 = vsel %vm405, 1, 0
    %v414 = vsel %vm406, 1, 0
    %v415 = vcvt.s32.f32 %v407
    %v416 = vcvt.s32.f32 %v408
    %v417 = vcvt.s32.f32 %v409
    %v418 = vcvt.s32.f32 %v410
    %v419 = vcvt.s32.f32 %v411
    %v420 = vcvt.s32.f32 %v412
    %v421 = vcvt.s32.f32 %v413
    %v422 = vcvt.s32.f32 %v414
    %v423 = vpack.c.bf16 %v416, %v415
    %v424 = vpack.c.bf16 %v418, %v417
    %v425 = vpack.c.bf16 %v420, %v419
    %v426 = vpack.c.bf16 %v422, %v421
    %v427 = vld [vmem:[#allocation5] sm:$0xff]
    %v428 = vld [vmem:[#allocation5 + $0x8] sm:$0xff]
    %v429 = vld [vmem:[#allocation5 + $0x10] sm:$0xff]
    %v430 = vld [vmem:[#allocation5 + $0x18] sm:$0xff]
    %v431 = vld [vmem:[#allocation5 + $0x20] sm:$0xff]
    %v432 = vld [vmem:[#allocation5 + $0x28] sm:$0xff]
    %v433 = vld [vmem:[#allocation5 + $0x30] sm:$0xff]
    %v434 = vld [vmem:[#allocation5 + $0x38] sm:$0xff]
    %435 = vset.pattern.permute.xlu0 0
    %436 = vperm.xlu0 %435, %v427
    %v437 = vpop.permute.xlu0 %436
    %438 = vset.pattern.permute.xlu0 0
    %439 = vperm.xlu0 %438, %v428
    %v440 = vpop.permute.xlu0 %439
    %441 = vset.pattern.permute.xlu0 0
    %442 = vperm.xlu0 %441, %v429
    %v443 = vpop.permute.xlu0 %442
    %444 = vset.pattern.permute.xlu0 0
    %445 = vperm.xlu0 %444, %v430
    %v446 = vpop.permute.xlu0 %445
    %447 = vset.pattern.permute.xlu0 0
    %448 = vperm.xlu0 %447, %v431
    %v449 = vpop.permute.xlu0 %448
    %450 = vset.pattern.permute.xlu0 0
    %451 = vperm.xlu0 %450, %v432
    %v452 = vpop.permute.xlu0 %451
    %453 = vset.pattern.permute.xlu0 0
    %454 = vperm.xlu0 %453, %v433
    %v455 = vpop.permute.xlu0 %454
    %456 = vset.pattern.permute.xlu0 0
    %457 = vperm.xlu0 %456, %v434
    %v458 = vpop.permute.xlu0 %457
    %vm459 = vcmp.eq.s32.totalorder %v437, %v366
    %vm460 = vcmp.eq.s32.totalorder %v440, %v366
    %vm461 = vcmp.eq.s32.totalorder %v443, %v366
    %vm462 = vcmp.eq.s32.totalorder %v446, %v366
    %vm463 = vcmp.eq.s32.totalorder %v449, %v366
    %vm464 = vcmp.eq.s32.totalorder %v452, %v366
    %vm465 = vcmp.eq.s32.totalorder %v455, %v366
    %vm466 = vcmp.eq.s32.totalorder %v458, %v366
    %v467 = vsel %vm459, 1, 0
    %v468 = vsel %vm460, 1, 0
    %v469 = vsel %vm461, 1, 0
    %v470 = vsel %vm462, 1, 0
    %v471 = vsel %vm463, 1, 0
    %v472 = vsel %vm464, 1, 0
    %v473 = vsel %vm465, 1, 0
    %v474 = vsel %vm466, 1, 0
    %v475 = vcvt.s32.f32 %v467
    %v476 = vcvt.s32.f32 %v468
    %v477 = vcvt.s32.f32 %v469
    %v478 = vcvt.s32.f32 %v470
    %v479 = vcvt.s32.f32 %v471
    %v480 = vcvt.s32.f32 %v472
    %v481 = vcvt.s32.f32 %v473
    %v482 = vcvt.s32.f32 %v474
    %v483 = vpack.c.bf16 %v476, %v475
    %v484 = vpack.c.bf16 %v478, %v477
    %v485 = vpack.c.bf16 %v480, %v479
    %v486 = vpack.c.bf16 %v482, %v481
    %v487 = vld [vmem:[#allocation7] sm:$0xff]
    %v488 = vld [vmem:[#allocation7 + $0x8] sm:$0xff]
    %v489 = vld [vmem:[#allocation7 + $0x10] sm:$0xff]
    %v490 = vld [vmem:[#allocation7 + $0x18] sm:$0xff]
    %v491 = vld [vmem:[#allocation8] sm:$0xff]
    %v492 = vld [vmem:[#allocation8 + $0x8] sm:$0xff]
    %v493 = vld [vmem:[#allocation8 + $0x10] sm:$0xff]
    %v494 = vld [vmem:[#allocation8 + $0x18] sm:$0xff]
    %v495 = vpack.c.bf16 %v492, %v491
    %v496 = vpack.c.bf16 %v494, %v493
    %v497 = vld [vmem:[#allocation14] sm:$0xf]
    %v498 = vld [vmem:[#allocation14 + $0x4] sm:$0xf]
    %v499 = vld [vmem:[#allocation14 + $0x8] sm:$0xf]
    %v500 = vld [vmem:[#allocation14 + $0xc] sm:$0xf]
    %v501 = vld [vmem:[#allocation14 + $0x10] sm:$0xf]
    %v502 = vld [vmem:[#allocation14 + $0x14] sm:$0xf]
    %v503 = vld [vmem:[#allocation14 + $0x18] sm:$0xf]
    %v504 = vld [vmem:[#allocation14 + $0x1c] sm:$0xf]
    %v505 = vld [vmem:[#allocation14 + $0x20] sm:$0xf]
    %v506 = vld [vmem:[#allocation14 + $0x24] sm:$0xf]
    %v507 = vld [vmem:[#allocation14 + $0x28] sm:$0xf]
    %v508 = vld [vmem:[#allocation14 + $0x2c] sm:$0xf]
    %v509 = vld [vmem:[#allocation14 + $0x30] sm:$0xf]
    %v510 = vld [vmem:[#allocation14 + $0x34] sm:$0xf]
    %v511 = vld [vmem:[#allocation14 + $0x38] sm:$0xf]
    %v512 = vld [vmem:[#allocation14 + $0x3c] sm:$0xf]
    %v513 = vld [vmem:[#allocation10] sm:$0xff]
    %v514 = vld [vmem:[#allocation10 + $0x8] sm:$0xff]
    %v515 = vld [vmem:[#allocation10 + $0x10] sm:$0xff]
    %v516 = vld [vmem:[#allocation10 + $0x18] sm:$0xff]
    %v517 = vld [vmem:[#allocation16] sm:$0x1]
    %519 = vset.pattern.permute.xlu0 0
    %520 = vperm.xlu0 %519, %v513
    %v521 = vpop.permute.xlu0 %520
    %524 = vset.pattern.permute.xlu0 0
    %525 = vperm.xlu0 %524, %v514
    %v526 = vpop.permute.xlu0 %525
    %529 = vset.pattern.permute.xlu0 0
    %530 = vperm.xlu0 %529, %v515
    %v531 = vpop.permute.xlu0 %530
    %534 = vset.pattern.permute.xlu0 0
    %535 = vperm.xlu0 %534, %v516
    %v536 = vpop.permute.xlu0 %535
    %v539 = vlaneseq
    %v540 = vshrl.u32 %v539, 7
    %v541 = vsub.s32 0, %v540
    %v542 = vrot.slane %v517, %v541
    %v544 = vmul.f32 %v521, %v542
    %v545 = vmul.f32 %v526, %v542
    %v546 = vmul.f32 %v531, %v542
    %v547 = vmul.f32 %v536, %v542
    %v564 = vunpack.c.l.b16 %v497
    %v565 = vunpack.c.l.b16 %v498
    %v566 = vunpack.c.l.b16 %v499
    %v567 = vunpack.c.l.b16 %v500
    %v568 = vunpack.c.l.b16 %v501
    %v569 = vunpack.c.l.b16 %v502
    %v570 = vunpack.c.l.b16 %v503
    %v571 = vunpack.c.l.b16 %v504
    %v572 = vunpack.c.l.b16 %v505
    %v573 = vunpack.c.l.b16 %v506
    %v574 = vunpack.c.l.b16 %v507
    %v575 = vunpack.c.l.b16 %v508
    %v576 = vunpack.c.l.b16 %v509
    %v577 = vunpack.c.l.b16 %v510
    %v578 = vunpack.c.l.b16 %v511
    %v579 = vunpack.c.l.b16 %v512
    %v580 = vpack.c.b16 %v565, %v564
    %v581 = vpack.c.b16 %v567, %v566
    %v582 = vpack.c.b16 %v569, %v568
    %v583 = vpack.c.b16 %v571, %v570
    %v584 = vpack.c.b16 %v573, %v572
    %v585 = vpack.c.b16 %v575, %v574
    %v586 = vpack.c.b16 %v577, %v576
    %v587 = vpack.c.b16 %v579, %v578
    %596 = vmatprep.subr.bf16.mxu0 0
    %597 = vmatpush1.bf16.msra.mxu0 %v580
    %598 = vmatprep.subr.bf16.mxu0 0
    %599 = vmatpush1.bf16.msra.mxu0 %v581
    %600 = vmatprep.subr.bf16.mxu0 0
    %601 = vmatpush1.bf16.msra.mxu0 %v582
    %602 = vmatprep.subr.bf16.mxu0 0
    %603 = vmatpush1.bf16.msra.mxu0 %v583
    %604 = vmatprep.subr.bf16.mxu0 0
    %605 = vmatpush1.bf16.msra.mxu0 %v584
    %606 = vmatprep.subr.bf16.mxu0 0
    %607 = vmatpush1.bf16.msra.mxu0 %v585
    %608 = vmatprep.subr.bf16.mxu0 0
    %609 = vmatpush1.bf16.msra.mxu0 %v586
    %610 = vmatprep.subr.bf16.mxu0 0
    %611 = vmatpush1.bf16.msra.mxu0 %v587
    %612 = vmatprep.subr.bf16.mxu0 0
    %613 = vmatpush1.bf16.msra.mxu0 0
    %614 = vmatprep.subr.bf16.mxu0 0
    %615 = vmatpush1.bf16.msra.mxu0 0
    %616 = vmatprep.subr.bf16.mxu0 0
    %617 = vmatpush1.bf16.msra.mxu0 0
    %618 = vmatprep.subr.bf16.mxu0 0
    %619 = vmatpush1.bf16.msra.mxu0 0
    %620 = vmatprep.subr.bf16.mxu0 0
    %621 = vmatpush1.bf16.msra.mxu0 0
    %622 = vmatprep.subr.bf16.mxu0 0
    %623 = vmatpush1.bf16.msra.mxu0 0
    %624 = vmatprep.subr.bf16.mxu0 0
    %625 = vmatpush1.bf16.msra.mxu0 0
    %626 = vmatprep.subr.bf16.mxu0 0
    %627 = vmatpush1.bf16.msra.mxu0 0
    %628 = vmatprep.mubr.bf16.mxu0 0
    %629 = vmatmul.mubr.bf16.gmra.mrb[0].mxu0 %v495
    %v630 = vpop.f32.mrb[0].mxu0
    %v631 = vadd.f32 %v544, %v630
    %v632 = vpop.f32.mrb[0].mxu0
    %v633 = vpop.f32.mrb[0].mxu0
    %v634 = vadd.f32 %v545, %v633
    %v635 = vpop.f32.mrb[0].mxu0
    %636 = vmatprep.mubr.bf16.mxu0 0
    %637 = vmatmul.mubr.bf16.gmra.mrb[0].mxu0 %v496
    %v638 = vpop.f32.mrb[0].mxu0
    %v639 = vadd.f32 %v546, %v638
    %v640 = vpop.f32.mrb[0].mxu0
    %v641 = vpop.f32.mrb[0].mxu0
    %v642 = vadd.f32 %v547, %v641
    %v643 = vpop.f32.mrb[0].mxu0
    %644 = vdwg.mxu0
    %v645 = vld [vmem:[#allocation17] sm:$0x1]
    %v647 = vlaneseq
    %v648 = vshrl.u32 %v647, 7
    %v649 = vsub.s32 0, %v648
    %v650 = vrot.slane %v645, %v649
    %v652 = vadd.f32 %v631, %v650
    %v653 = vadd.f32 %v634, %v650
    %v654 = vadd.f32 %v639, %v650
    %v655 = vadd.f32 %v642, %v650
    %v656 = vmin.f32 %v652, 0.0
    %v657 = vmin.f32 %v653, 0.0
    %v658 = vmin.f32 %v654, 0.0
    %v659 = vmin.f32 %v655, 0.0
    %v660 = vmul.f32 %v656, 1.442695
    %v661 = vpow.pop %v660
    %v662 = vmul.f32 %v657, 1.442695
    %v663 = vpow.pop %v662
    %v664 = vmul.f32 %v658, 1.442695
    %v665 = vpow.pop %v664
    %v666 = vmul.f32 %v659, 1.442695
    %v667 = vpow.pop %v666
    %v668 = vsub.f32 %v661, 1.0
    %v669 = vsub.f32 %v663, 1.0
    %v670 = vsub.f32 %v665, 1.0
    %v671 = vsub.f32 %v667, 1.0
    %v672 = vmul.f32 %v668, 1.6732632
    %v673 = vmul.f32 %v669, 1.6732632
    %v674 = vmul.f32 %v670, 1.6732632
    %v675 = vmul.f32 %v671, 1.6732632
    %vm676 = vcmp.gt.f32.partialorder %v652, 0.0
    %vm677 = vcmp.gt.f32.partialorder %v653, 0.0
    %vm678 = vcmp.gt.f32.partialorder %v654, 0.0
    %vm679 = vcmp.gt.f32.partialorder %v655, 0.0
    %v680 = vsel %vm676, %v652, %v672
    %v681 = vsel %vm677, %v653, %v673
    %v682 = vsel %vm678, %v654, %v674
    %v683 = vsel %vm679, %v655, %v675
    %v684 = vmul.f32 %v680, 1.050701
    %v685 = vmul.f32 %v681, 1.050701
    %v686 = vmul.f32 %v682, 1.050701
    %v687 = vmul.f32 %v683, 1.050701
    %v688 = vpack.c.bf16 %v685, %v684
    %v689 = vpack.c.bf16 %v687, %v686
    %v690 = vld [vmem:[#allocation19] sm:$0xf]
    %v691 = vld [vmem:[#allocation19 + $0x4] sm:$0xf]
    %v692 = vld [vmem:[#allocation19 + $0x8] sm:$0xf]
    %v693 = vld [vmem:[#allocation19 + $0xc] sm:$0xf]
    %v694 = vld [vmem:[#allocation19 + $0x10] sm:$0xf]
    %v695 = vld [vmem:[#allocation19 + $0x14] sm:$0xf]
    %v696 = vld [vmem:[#allocation19 + $0x18] sm:$0xf]
    %v697 = vld [vmem:[#allocation19 + $0x1c] sm:$0xf]
    %v698 = vld [vmem:[#allocation19 + $0x20] sm:$0xf]
    %v699 = vld [vmem:[#allocation19 + $0x24] sm:$0xf]
    %v700 = vld [vmem:[#allocation19 + $0x28] sm:$0xf]
    %v701 = vld [vmem:[#allocation19 + $0x2c] sm:$0xf]
    %v702 = vld [vmem:[#allocation19 + $0x30] sm:$0xf]
    %v703 = vld [vmem:[#allocation19 + $0x34] sm:$0xf]
    %v704 = vld [vmem:[#allocation19 + $0x38] sm:$0xf]
    %v705 = vld [vmem:[#allocation19 + $0x3c] sm:$0xf]
    %v706 = vld [vmem:[#allocation20] sm:$0x1]
    %v708 = vlaneseq
    %v709 = vshrl.u32 %v708, 7
    %v710 = vsub.s32 0, %v709
    %v711 = vrot.slane %v706, %v710
    %v729 = vunpack.c.l.b16 %v690
    %v730 = vunpack.c.l.b16 %v691
    %v731 = vunpack.c.l.b16 %v692
    %v732 = vunpack.c.l.b16 %v693
    %v733 = vunpack.c.l.b16 %v694
    %v734 = vunpack.c.l.b16 %v695
    %v735 = vunpack.c.l.b16 %v696
    %v736 = vunpack.c.l.b16 %v697
    %v737 = vunpack.c.l.b16 %v698
    %v738 = vunpack.c.l.b16 %v699
    %v739 = vunpack.c.l.b16 %v700
    %v740 = vunpack.c.l.b16 %v701
    %v741 = vunpack.c.l.b16 %v702
    %v742 = vunpack.c.l.b16 %v703
    %v743 = vunpack.c.l.b16 %v704
    %v744 = vunpack.c.l.b16 %v705
    %v745 = vpack.c.b16 %v730, %v729
    %v746 = vpack.c.b16 %v732, %v731
    %v747 = vpack.c.b16 %v734, %v733
    %v748 = vpack.c.b16 %v736, %v735
    %v749 = vpack.c.b16 %v738, %v737
    %v750 = vpack.c.b16 %v740, %v739
    %v751 = vpack.c.b16 %v742, %v741
    %v752 = vpack.c.b16 %v744, %v743
    %761 = vmatprep.subr.bf16.mxu0 0
    %762 = vmatpush1.bf16.msra.mxu0 %v745
    %763 = vmatprep.subr.bf16.mxu0 0
    %764 = vmatpush1.bf16.msra.mxu0 %v746
    %765 = vmatprep.subr.bf16.mxu0 0
    %766 = vmatpush1.bf16.msra.mxu0 %v747
    %767 = vmatprep.subr.bf16.mxu0 0
    %768 = vmatpush1.bf16.msra.mxu0 %v748
    %769 = vmatprep.subr.bf16.mxu0 0
    %770 = vmatpush1.bf16.msra.mxu0 %v749
    %771 = vmatprep.subr.bf16.mxu0 0
    %772 = vmatpush1.bf16.msra.mxu0 %v750
    %773 = vmatprep.subr.bf16.mxu0 0
    %774 = vmatpush1.bf16.msra.mxu0 %v751
    %775 = vmatprep.subr.bf16.mxu0 0
    %776 = vmatpush1.bf16.msra.mxu0 %v752
    %777 = vmatprep.subr.bf16.mxu0 0
    %778 = vmatpush1.bf16.msra.mxu0 0
    %779 = vmatprep.subr.bf16.mxu0 0
    %780 = vmatpush1.bf16.msra.mxu0 0
    %781 = vmatprep.subr.bf16.mxu0 0
    %782 = vmatpush1.bf16.msra.mxu0 0
    %783 = vmatprep.subr.bf16.mxu0 0
    %784 = vmatpush1.bf16.msra.mxu0 0
    %785 = vmatprep.subr.bf16.mxu0 0
    %786 = vmatpush1.bf16.msra.mxu0 0
    %787 = vmatprep.subr.bf16.mxu0 0
    %788 = vmatpush1.bf16.msra.mxu0 0
    %789 = vmatprep.subr.bf16.mxu0 0
    %790 = vmatpush1.bf16.msra.mxu0 0
    %791 = vmatprep.subr.bf16.mxu0 0
    %792 = vmatpush1.bf16.msra.mxu0 0
    %793 = vmatprep.mubr.bf16.mxu0 0
    %794 = vmatmul.mubr.bf16.gmra.mrb[0].mxu0 %v688
    %v795 = vpop.f32.mrb[0].mxu0
    %v796 = vadd.f32 %v711, %v795
    %v797 = vpop.f32.mrb[0].mxu0
    %v798 = vpop.f32.mrb[0].mxu0
    %v799 = vadd.f32 %v711, %v798
    %v800 = vpop.f32.mrb[0].mxu0
    %801 = vmatprep.mubr.bf16.mxu0 0
    %802 = vmatmul.mubr.bf16.gmra.mrb[0].mxu0 %v689
    %v803 = vpop.f32.mrb[0].mxu0
    %v804 = vadd.f32 %v711, %v803
    %v805 = vpop.f32.mrb[0].mxu0
    %v806 = vpop.f32.mrb[0].mxu0
    %v807 = vadd.f32 %v711, %v806
    %v808 = vpop.f32.mrb[0].mxu0
    %809 = vdwg.mxu0
    %v810 = vld [vmem:[#allocation11] sm:$0xff]
    %v811 = vld [vmem:[#allocation11 + $0x8] sm:$0xff]
    %v812 = vld [vmem:[#allocation11 + $0x10] sm:$0xff]
    %v813 = vld [vmem:[#allocation11 + $0x18] sm:$0xff]
    %v814 = vadd.f32 %v796, %v810
    %v815 = vadd.f32 %v799, %v811
    %v816 = vadd.f32 %v804, %v812
    %v817 = vadd.f32 %v807, %v813
    %v818 = vld [vmem:[#allocation13] sm:$0xff]
    %v819 = vld [vmem:[#allocation13 + $0x8] sm:$0xff]
    %v820 = vld [vmem:[#allocation13 + $0x10] sm:$0xff]
    %v821 = vld [vmem:[#allocation13 + $0x18] sm:$0xff]
    %v822 = vld [vmem:[#allocation13 + $0x20] sm:$0xff]
    %v823 = vld [vmem:[#allocation13 + $0x28] sm:$0xff]
    %v824 = vld [vmem:[#allocation13 + $0x30] sm:$0xff]
    %v825 = vld [vmem:[#allocation13 + $0x38] sm:$0xff]
    %v826 = vpack.c.bf16 %v815, %v814
    %v827 = vpack.c.bf16 %v817, %v816
    %v828 = vpack.c.bf16 %v819, %v818
    %v829 = vpack.c.bf16 %v821, %v820
    %v830 = vpack.c.bf16 %v823, %v822
    %v831 = vpack.c.bf16 %v825, %v824
    %v832 = vld [vmem:[#allocation23] sm:$0xf]
    %v833 = vld [vmem:[#allocation23 + $0x4] sm:$0xf]
    %v834 = vld [vmem:[#allocation23 + $0x8] sm:$0xf]
    %v835 = vld [vmem:[#allocation23 + $0xc] sm:$0xf]
    %v836 = vld [vmem:[#allocation23 + $0x10] sm:$0xf]
    %v837 = vld [vmem:[#allocation23 + $0x14] sm:$0xf]
    %v838 = vld [vmem:[#allocation23 + $0x18] sm:$0xf]
    %v839 = vld [vmem:[#allocation23 + $0x1c] sm:$0xf]
    %v840 = vld [vmem:[#allocation23 + $0x20] sm:$0xf]
    %v841 = vld [vmem:[#allocation23 + $0x24] sm:$0xf]
    %v842 = vld [vmem:[#allocation23 + $0x28] sm:$0xf]
    %v843 = vld [vmem:[#allocation23 + $0x2c] sm:$0xf]
    %v844 = vld [vmem:[#allocation23 + $0x30] sm:$0xf]
    %v845 = vld [vmem:[#allocation23 + $0x34] sm:$0xf]
    %v846 = vld [vmem:[#allocation23 + $0x38] sm:$0xf]
    %v847 = vld [vmem:[#allocation23 + $0x3c] sm:$0xf]
    %v864 = vunpack.c.l.b16 %v832
    %v865 = vunpack.c.l.b16 %v833
    %v866 = vunpack.c.l.b16 %v834
    %v867 = vunpack.c.l.b16 %v835
    %v868 = vunpack.c.l.b16 %v836
    %v869 = vunpack.c.l.b16 %v837
    %v870 = vunpack.c.l.b16 %v838
    %v871 = vunpack.c.l.b16 %v839
    %v872 = vunpack.c.l.b16 %v840
    %v873 = vunpack.c.l.b16 %v841
    %v874 = vunpack.c.l.b16 %v842
    %v875 = vunpack.c.l.b16 %v843
    %v876 = vunpack.c.l.b16 %v844
    %v877 = vunpack.c.l.b16 %v845
    %v878 = vunpack.c.l.b16 %v846
    %v879 = vunpack.c.l.b16 %v847
    %v880 = vpack.c.b16 %v865, %v864
    %v881 = vpack.c.b16 %v867, %v866
    %v882 = vpack.c.b16 %v869, %v868
    %v883 = vpack.c.b16 %v871, %v870
    %v884 = vpack.c.b16 %v873, %v872
    %v885 = vpack.c.b16 %v875, %v874
    %v886 = vpack.c.b16 %v877, %v876
    %v887 = vpack.c.b16 %v879, %v878
    %896 = vmatprep.subr.bf16.mxu0 0
    %897 = vmatpush1.bf16.msra.mxu0 %v880
    %898 = vmatprep.subr.bf16.mxu0 0
    %899 = vmatpush1.bf16.msra.mxu0 %v881
    %900 = vmatprep.subr.bf16.mxu0 0
    %901 = vmatpush1.bf16.msra.mxu0 %v882
    %902 = vmatprep.subr.bf16.mxu0 0
    %903 = vmatpush1.bf16.msra.mxu0 %v883
    %904 = vmatprep.subr.bf16.mxu0 0
    %905 = vmatpush1.bf16.msra.mxu0 %v884
    %906 = vmatprep.subr.bf16.mxu0 0
    %907 = vmatpush1.bf16.msra.mxu0 %v885
    %908 = vmatprep.subr.bf16.mxu0 0
    %909 = vmatpush1.bf16.msra.mxu0 %v886
    %910 = vmatprep.subr.bf16.mxu0 0
    %911 = vmatpush1.bf16.msra.mxu0 %v887
    %912 = vmatprep.subr.bf16.mxu0 0
    %913 = vmatpush1.bf16.msra.mxu0 0
    %914 = vmatprep.subr.bf16.mxu0 0
    %915 = vmatpush1.bf16.msra.mxu0 0
    %916 = vmatprep.subr.bf16.mxu0 0
    %917 = vmatpush1.bf16.msra.mxu0 0
    %918 = vmatprep.subr.bf16.mxu0 0
    %919 = vmatpush1.bf16.msra.mxu0 0
    %920 = vmatprep.subr.bf16.mxu0 0
    %921 = vmatpush1.bf16.msra.mxu0 0
    %922 = vmatprep.subr.bf16.mxu0 0
    %923 = vmatpush1.bf16.msra.mxu0 0
    %924 = vmatprep.subr.bf16.mxu0 0
    %925 = vmatpush1.bf16.msra.mxu0 0
    %926 = vmatprep.subr.bf16.mxu0 0
    %927 = vmatpush1.bf16.msra.mxu0 0
    %928 = vmatprep.mubr.bf16.mxu0 0
    %929 = vmatmul.mubr.bf16.gmra.mrb[0].mxu0 %v826
    %v930 = vpop.f32.mrb[0].mxu0
    %v931 = vadd.f32 0.0, %v930
    %v932 = vpop.f32.mrb[0].mxu0
    %v933 = vpop.f32.mrb[0].mxu0
    %v934 = vadd.f32 0.0, %v933
    %v935 = vpop.f32.mrb[0].mxu0
    %936 = vmatprep.mubr.bf16.mxu0 0
    %937 = vmatmul.mubr.bf16.gmra.mrb[0].mxu0 %v827
    %v938 = vpop.f32.mrb[0].mxu0
    %v939 = vadd.f32 0.0, %v938
    %v940 = vpop.f32.mrb[0].mxu0
    %v941 = vpop.f32.mrb[0].mxu0
    %v942 = vadd.f32 0.0, %v941
    %v943 = vpop.f32.mrb[0].mxu0
    %944 = vdwg.mxu0
    %v945 = vpack.c.bf16 %v934, %v931
    %v946 = vpack.c.bf16 %v942, %v939
    %v947 = vld [vmem:[#allocation25] sm:$0xf]
    %v948 = vld [vmem:[#allocation25 + $0x4] sm:$0xf]
    %v949 = vld [vmem:[#allocation25 + $0x8] sm:$0xf]
    %v950 = vld [vmem:[#allocation25 + $0xc] sm:$0xf]
    %v951 = vld [vmem:[#allocation25 + $0x10] sm:$0xf]
    %v952 = vld [vmem:[#allocation25 + $0x14] sm:$0xf]
    %v953 = vld [vmem:[#allocation25 + $0x18] sm:$0xf]
    %v954 = vld [vmem:[#allocation25 + $0x1c] sm:$0xf]
    %v955 = vld [vmem:[#allocation25 + $0x20] sm:$0xf]
    %v956 = vld [vmem:[#allocation25 + $0x24] sm:$0xf]
    %v957 = vld [vmem:[#allocation25 + $0x28] sm:$0xf]
    %v958 = vld [vmem:[#allocation25 + $0x2c] sm:$0xf]
    %v959 = vld [vmem:[#allocation25 + $0x30] sm:$0xf]
    %v960 = vld [vmem:[#allocation25 + $0x34] sm:$0xf]
    %v961 = vld [vmem:[#allocation25 + $0x38] sm:$0xf]
    %v962 = vld [vmem:[#allocation25 + $0x3c] sm:$0xf]
    %v979 = vunpack.c.l.b16 %v947
    %v980 = vunpack.c.l.b16 %v948
    %v981 = vunpack.c.l.b16 %v949
    %v982 = vunpack.c.l.b16 %v950
    %v983 = vunpack.c.l.b16 %v951
    %v984 = vunpack.c.l.b16 %v952
    %v985 = vunpack.c.l.b16 %v953
    %v986 = vunpack.c.l.b16 %v954
    %v987 = vunpack.c.l.b16 %v955
    %v988 = vunpack.c.l.b16 %v956
    %v989 = vunpack.c.l.b16 %v957
    %v990 = vunpack.c.l.b16 %v958
    %v991 = vunpack.c.l.b16 %v959
    %v992 = vunpack.c.l.b16 %v960
    %v993 = vunpack.c.l.b16 %v961
    %v994 = vunpack.c.l.b16 %v962
    %v995 = vpack.c.b16 %v980, %v979
    %v996 = vpack.c.b16 %v982, %v981
    %v997 = vpack.c.b16 %v984, %v983
    %v998 = vpack.c.b16 %v986, %v985
    %v999 = vpack.c.b16 %v988, %v987
    %v1000 = vpack.c.b16 %v990, %v989
    %v1001 = vpack.c.b16 %v992, %v991
    %v1002 = vpack.c.b16 %v994, %v993
    %1011 = vmatprep.subr.bf16.mxu0 0
    %1012 = vmatpush1.bf16.msra.mxu0 %v995
    %1013 = vmatprep.subr.bf16.mxu0 0
    %1014 = vmatpush1.bf16.msra.mxu0 %v996
    %1015 = vmatprep.subr.bf16.mxu0 0
    %1016 = vmatpush1.bf16.msra.mxu0 %v997
    %1017 = vmatprep.subr.bf16.mxu0 0
    %1018 = vmatpush1.bf16.msra.mxu0 %v998
    %1019 = vmatprep.subr.bf16.mxu0 0
    %1020 = vmatpush1.bf16.msra.mxu0 %v999
    %1021 = vmatprep.subr.bf16.mxu0 0
    %1022 = vmatpush1.bf16.msra.mxu0 %v1000
    %1023 = vmatprep.subr.bf16.mxu0 0
    %1024 = vmatpush1.bf16.msra.mxu0 %v1001
    %1025 = vmatprep.subr.bf16.mxu0 0
    %1026 = vmatpush1.bf16.msra.mxu0 %v1002
    %1027 = vmatprep.subr.bf16.mxu0 0
    %1028 = vmatpush1.bf16.msra.mxu0 0
    %1029 = vmatprep.subr.bf16.mxu0 0
    %1030 = vmatpush1.bf16.msra.mxu0 0
    %1031 = vmatprep.subr.bf16.mxu0 0
    %1032 = vmatpush1.bf16.msra.mxu0 0
    %1033 = vmatprep.subr.bf16.mxu0 0
    %1034 = vmatpush1.bf16.msra.mxu0 0
    %1035 = vmatprep.subr.bf16.mxu0 0
    %1036 = vmatpush1.bf16.msra.mxu0 0
    %1037 = vmatprep.subr.bf16.mxu0 0
    %1038 = vmatpush1.bf16.msra.mxu0 0
    %1039 = vmatprep.subr.bf16.mxu0 0
    %1040 = vmatpush1.bf16.msra.mxu0 0
    %1041 = vmatprep.subr.bf16.mxu0 0
    %1042 = vmatpush1.bf16.msra.mxu0 0
    %1043 = vmatprep.mubr.bf16.mxu0 0
    %1044 = vmatmul.mubr.bf16.gmra.mrb[0].mxu0 %v826
    %v1045 = vpop.f32.mrb[0].mxu0
    %v1046 = vadd.f32 0.0, %v1045
    %v1047 = vpop.f32.mrb[0].mxu0
    %v1048 = vpop.f32.mrb[0].mxu0
    %v1049 = vadd.f32 0.0, %v1048
    %v1050 = vpop.f32.mrb[0].mxu0
    %1051 = vmatprep.mubr.bf16.mxu0 0
    %1052 = vmatmul.mubr.bf16.gmra.mrb[0].mxu0 %v827
    %v1053 = vpop.f32.mrb[0].mxu0
    %v1054 = vadd.f32 0.0, %v1053
    %v1055 = vpop.f32.mrb[0].mxu0
    %v1056 = vpop.f32.mrb[0].mxu0
    %v1057 = vadd.f32 0.0, %v1056
    %v1058 = vpop.f32.mrb[0].mxu0
    %1059 = vdwg.mxu0
    %v1060 = vpack.c.bf16 %v1049, %v1046
    %v1061 = vpack.c.bf16 %v1057, %v1054
    %v1062 = vld [vmem:[#allocation22] sm:$0xf]
    %v1063 = vld [vmem:[#allocation22 + $0x4] sm:$0xf]
    %v1064 = vld [vmem:[#allocation22 + $0x8] sm:$0xf]
    %v1065 = vld [vmem:[#allocation22 + $0xc] sm:$0xf]
    %v1066 = vld [vmem:[#allocation22 + $0x10] sm:$0xf]
    %v1067 = vld [vmem:[#allocation22 + $0x14] sm:$0xf]
    %v1068 = vld [vmem:[#allocation22 + $0x18] sm:$0xf]
    %v1069 = vld [vmem:[#allocation22 + $0x1c] sm:$0xf]
    %v1070 = vld [vmem:[#allocation22 + $0x20] sm:$0xf]
    %v1071 = vld [vmem:[#allocation22 + $0x24] sm:$0xf]
    %v1072 = vld [vmem:[#allocation22 + $0x28] sm:$0xf]
    %v1073 = vld [vmem:[#allocation22 + $0x2c] sm:$0xf]
    %v1074 = vld [vmem:[#allocation22 + $0x30] sm:$0xf]
    %v1075 = vld [vmem:[#allocation22 + $0x34] sm:$0xf]
    %v1076 = vld [vmem:[#allocation22 + $0x38] sm:$0xf]
    %v1077 = vld [vmem:[#allocation22 + $0x3c] sm:$0xf]
    %vm1078 = vcmask 261120
    %v1080 = vsel %vm1078, %v423, 0
    %v1083 = vsel %vm1078, %v424, 0
    %v1086 = vsel %vm1078, %v425, 0
    %v1089 = vsel %vm1078, %v426, 0
    %1091 = vmatprep.subr.bf16.mxu0 0
    %1092 = vmatpush1.bf16.msra.mxu0 %v945
    %1093 = vmatprep.subr.bf16.mxu0 0
    %1094 = vmatpush1.bf16.msra.mxu0 %v946
    %1095 = vmatprep.subr.bf16.mxu0 0
    %1096 = vmatpush1.bf16.msra.mxu0 0
    %1097 = vmatprep.subr.bf16.mxu0 0
    %1098 = vmatpush1.bf16.msra.mxu0 0
    %1099 = vmatprep.subr.bf16.mxu0 0
    %1100 = vmatpush1.bf16.msra.mxu0 0
    %1101 = vmatprep.subr.bf16.mxu0 0
    %1102 = vmatpush1.bf16.msra.mxu0 0
    %1103 = vmatprep.subr.bf16.mxu0 0
    %1104 = vmatpush1.bf16.msra.mxu0 0
    %1105 = vmatprep.subr.bf16.mxu0 0
    %1106 = vmatpush1.bf16.msra.mxu0 0
    %1107 = vmatprep.subr.bf16.mxu0 0
    %1108 = vmatpush1.bf16.msra.mxu0 0
    %1109 = vmatprep.subr.bf16.mxu0 0
    %1110 = vmatpush1.bf16.msra.mxu0 0
    %1111 = vmatprep.subr.bf16.mxu0 0
    %1112 = vmatpush1.bf16.msra.mxu0 0
    %1113 = vmatprep.subr.bf16.mxu0 0
    %1114 = vmatpush1.bf16.msra.mxu0 0
    %1115 = vmatprep.subr.bf16.mxu0 0
    %1116 = vmatpush1.bf16.msra.mxu0 0
    %1117 = vmatprep.subr.bf16.mxu0 0
    %1118 = vmatpush1.bf16.msra.mxu0 0
    %1119 = vmatprep.subr.bf16.mxu0 0
    %1120 = vmatpush1.bf16.msra.mxu0 0
    %1121 = vmatprep.subr.bf16.mxu0 0
    %1122 = vmatpush1.bf16.msra.mxu0 0
    %1123 = vmatprep.mubr.bf16.mxu0 0
    %1124 = vmatmul.mubr.bf16.gmra.mrb[0].mxu0 %v1080
    %v1125 = vpop.f32.mrb[0].mxu0
    %v1126 = vadd.f32 0.0, %v1125
    %v1127 = vpop.f32.mrb[0].mxu0
    %v1128 = vpop.f32.mrb[0].mxu0
    %v1129 = vadd.f32 0.0, %v1128
    %v1130 = vpop.f32.mrb[0].mxu0
    %1131 = vmatprep.mubr.bf16.mxu0 0
    %1132 = vmatmul.mubr.bf16.gmra.mrb[0].mxu0 %v1083
    %v1133 = vpop.f32.mrb[0].mxu0
    %v1134 = vadd.f32 0.0, %v1133
    %v1135 = vpop.f32.mrb[0].mxu0
    %v1136 = vpop.f32.mrb[0].mxu0
    %v1137 = vadd.f32 0.0, %v1136
    %v1138 = vpop.f32.mrb[0].mxu0
    %1139 = vmatprep.mubr.bf16.mxu0 0
    %1140 = vmatmul.mubr.bf16.gmra.mrb[0].mxu0 %v1086
    %v1141 = vpop.f32.mrb[0].mxu0
    %v1142 = vadd.f32 0.0, %v1141
    %v1143 = vpop.f32.mrb[0].mxu0
    %v1144 = vpop.f32.mrb[0].mxu0
    %v1145 = vadd.f32 0.0, %v1144
    %v1146 = vpop.f32.mrb[0].mxu0
    %1147 = vmatprep.mubr.bf16.mxu0 0
    %1148 = vmatmul.mubr.bf16.gmra.mrb[0].mxu0 %v1089
    %v1149 = vpop.f32.mrb[0].mxu0
    %v1150 = vadd.f32 0.0, %v1149
    %v1151 = vpop.f32.mrb[0].mxu0
    %v1152 = vpop.f32.mrb[0].mxu0
    %v1153 = vadd.f32 0.0, %v1152
    %v1154 = vpop.f32.mrb[0].mxu0
    %1155 = vdwg.mxu0
    %v1172 = vunpack.c.l.b16 %v1062
    %v1173 = vunpack.c.l.b16 %v1063
    %v1174 = vunpack.c.l.b16 %v1064
    %v1175 = vunpack.c.l.b16 %v1065
    %v1176 = vunpack.c.l.b16 %v1066
    %v1177 = vunpack.c.l.b16 %v1067
    %v1178 = vunpack.c.l.b16 %v1068
    %v1179 = vunpack.c.l.b16 %v1069
    %v1180 = vunpack.c.l.b16 %v1070
    %v1181 = vunpack.c.l.b16 %v1071
    %v1182 = vunpack.c.l.b16 %v1072
    %v1183 = vunpack.c.l.b16 %v1073
    %v1184 = vunpack.c.l.b16 %v1074
    %v1185 = vunpack.c.l.b16 %v1075
    %v1186 = vunpack.c.l.b16 %v1076
    %v1187 = vunpack.c.l.b16 %v1077
    %v1188 = vpack.c.b16 %v1173, %v1172
    %v1189 = vpack.c.b16 %v1175, %v1174
    %v1190 = vpack.c.b16 %v1177, %v1176
    %v1191 = vpack.c.b16 %v1179, %v1178
    %v1192 = vpack.c.b16 %v1181, %v1180
    %v1193 = vpack.c.b16 %v1183, %v1182
    %v1194 = vpack.c.b16 %v1185, %v1184
    %v1195 = vpack.c.b16 %v1187, %v1186
    %1204 = vmatprep.subr.bf16.mxu0 0
    %1205 = vmatpush1.bf16.msra.mxu0 %v1188
    %1206 = vmatprep.subr.bf16.mxu0 0
    %1207 = vmatpush1.bf16.msra.mxu0 %v1189
    %1208 = vmatprep.subr.bf16.mxu0 0
    %1209 = vmatpush1.bf16.msra.mxu0 %v1190
    %1210 = vmatprep.subr.bf16.mxu0 0
    %1211 = vmatpush1.bf16.msra.mxu0 %v1191
    %1212 = vmatprep.subr.bf16.mxu0 0
    %1213 = vmatpush1.bf16.msra.mxu0 %v1192
    %1214 = vmatprep.subr.bf16.mxu0 0
    %1215 = vmatpush1.bf16.msra.mxu0 %v1193
    %1216 = vmatprep.subr.bf16.mxu0 0
    %1217 = vmatpush1.bf16.msra.mxu0 %v1194
    %1218 = vmatprep.subr.bf16.mxu0 0
    %1219 = vmatpush1.bf16.msra.mxu0 %v1195
    %1220 = vmatprep.subr.bf16.mxu0 0
    %1221 = vmatpush1.bf16.msra.mxu0 0
    %1222 = vmatprep.subr.bf16.mxu0 0
    %1223 = vmatpush1.bf16.msra.mxu0 0
    %1224 = vmatprep.subr.bf16.mxu0 0
    %1225 = vmatpush1.bf16.msra.mxu0 0
    %1226 = vmatprep.subr.bf16.mxu0 0
    %1227 = vmatpush1.bf16.msra.mxu0 0
    %1228 = vmatprep.subr.bf16.mxu0 0
    %1229 = vmatpush1.bf16.msra.mxu0 0
    %1230 = vmatprep.subr.bf16.mxu0 0
    %1231 = vmatpush1.bf16.msra.mxu0 0
    %1232 = vmatprep.subr.bf16.mxu0 0
    %1233 = vmatpush1.bf16.msra.mxu0 0
    %1234 = vmatprep.subr.bf16.mxu0 0
    %1235 = vmatpush1.bf16.msra.mxu0 0
    %1236 = vmatprep.mubr.bf16.mxu0 0
    %1237 = vmatmul.mubr.bf16.gmra.mrb[0].mxu0 %v828
    %v1238 = vpop.f32.mrb[0].mxu0
    %v1239 = vadd.f32 %v1126, %v1238
    %v1240 = vpop.f32.mrb[0].mxu0
    %v1241 = vpop.f32.mrb[0].mxu0
    %v1242 = vadd.f32 %v1129, %v1241
    %v1243 = vpop.f32.mrb[0].mxu0
    %1244 = vmatprep.mubr.bf16.mxu0 0
    %1245 = vmatmul.mubr.bf16.gmra.mrb[0].mxu0 %v829
    %v1246 = vpop.f32.mrb[0].mxu0
    %v1247 = vadd.f32 %v1134, %v1246
    %v1248 = vpop.f32.mrb[0].mxu0
    %v1249 = vpop.f32.mrb[0].mxu0
    %v1250 = vadd.f32 %v1137, %v1249
    %v1251 = vpop.f32.mrb[0].mxu0
    %1252 = vmatprep.mubr.bf16.mxu0 0
    %1253 = vmatmul.mubr.bf16.gmra.mrb[0].mxu0 %v830
    %v1254 = vpop.f32.mrb[0].mxu0
    %v1255 = vadd.f32 %v1142, %v1254
    %v1256 = vpop.f32.mrb[0].mxu0
    %v1257 = vpop.f32.mrb[0].mxu0
    %v1258 = vadd.f32 %v1145, %v1257
    %v1259 = vpop.f32.mrb[0].mxu0
    %1260 = vmatprep.mubr.bf16.mxu0 0
    %1261 = vmatmul.mubr.bf16.gmra.mrb[0].mxu0 %v831
    %v1262 = vpop.f32.mrb[0].mxu0
    %v1263 = vadd.f32 %v1150, %v1262
    %v1264 = vpop.f32.mrb[0].mxu0
    %v1265 = vpop.f32.mrb[0].mxu0
    %v1266 = vadd.f32 %v1153, %v1265
    %v1267 = vpop.f32.mrb[0].mxu0
    %1268 = vdwg.mxu0
    %v1270 = vsel %vm1078, %v483, 0
    %v1273 = vsel %vm1078, %v484, 0
    %v1276 = vsel %vm1078, %v485, 0
    %v1279 = vsel %vm1078, %v486, 0
    %1281 = vmatprep.subr.bf16.mxu0 0
    %1282 = vmatpush1.bf16.msra.mxu0 %v1060
    %1283 = vmatprep.subr.bf16.mxu0 0
    %1284 = vmatpush1.bf16.msra.mxu0 %v1061
    %1285 = vmatprep.subr.bf16.mxu0 0
    %1286 = vmatpush1.bf16.msra.mxu0 0
    %1287 = vmatprep.subr.bf16.mxu0 0
    %1288 = vmatpush1.bf16.msra.mxu0 0
    %1289 = vmatprep.subr.bf16.mxu0 0
    %1290 = vmatpush1.bf16.msra.mxu0 0
    %1291 = vmatprep.subr.bf16.mxu0 0
    %1292 = vmatpush1.bf16.msra.mxu0 0
    %1293 = vmatprep.subr.bf16.mxu0 0
    %1294 = vmatpush1.bf16.msra.mxu0 0
    %1295 = vmatprep.subr.bf16.mxu0 0
    %1296 = vmatpush1.bf16.msra.mxu0 0
    %1297 = vmatprep.subr.bf16.mxu0 0
    %1298 = vmatpush1.bf16.msra.mxu0 0
    %1299 = vmatprep.subr.bf16.mxu0 0
    %1300 = vmatpush1.bf16.msra.mxu0 0
    %1301 = vmatprep.subr.bf16.mxu0 0
    %1302 = vmatpush1.bf16.msra.mxu0 0
    %1303 = vmatprep.subr.bf16.mxu0 0
    %1304 = vmatpush1.bf16.msra.mxu0 0
    %1305 = vmatprep.subr.bf16.mxu0 0
    %1306 = vmatpush1.bf16.msra.mxu0 0
    %1307 = vmatprep.subr.bf16.mxu0 0
    %1308 = vmatpush1.bf16.msra.mxu0 0
    %1309 = vmatprep.subr.bf16.mxu0 0
    %1310 = vmatpush1.bf16.msra.mxu0 0
    %1311 = vmatprep.subr.bf16.mxu0 0
    %1312 = vmatpush1.bf16.msra.mxu0 0
    %1313 = vmatprep.mubr.bf16.mxu0 0
    %1314 = vmatmul.mubr.bf16.gmra.mrb[0].mxu0 %v1270
    %v1315 = vpop.f32.mrb[0].mxu0
    %v1316 = vadd.f32 0.0, %v1315
    %v1317 = vpop.f32.mrb[0].mxu0
    %v1318 = vpop.f32.mrb[0].mxu0
    %v1319 = vadd.f32 0.0, %v1318
    %v1320 = vpop.f32.mrb[0].mxu0
    %1321 = vmatprep.mubr.bf16.mxu0 0
    %1322 = vmatmul.mubr.bf16.gmra.mrb[0].mxu0 %v1273
    %v1323 = vpop.f32.mrb[0].mxu0
    %v1324 = vadd.f32 0.0, %v1323
    %v1325 = vpop.f32.mrb[0].mxu0
    %v1326 = vpop.f32.mrb[0].mxu0
    %v1327 = vadd.f32 0.0, %v1326
    %v1328 = vpop.f32.mrb[0].mxu0
    %1329 = vmatprep.mubr.bf16.mxu0 0
    %1330 = vmatmul.mubr.bf16.gmra.mrb[0].mxu0 %v1276
    %v1331 = vpop.f32.mrb[0].mxu0
    %v1332 = vadd.f32 0.0, %v1331
    %v1333 = vpop.f32.mrb[0].mxu0
    %v1334 = vpop.f32.mrb[0].mxu0
    %v1335 = vadd.f32 0.0, %v1334
    %v1336 = vpop.f32.mrb[0].mxu0
    %1337 = vmatprep.mubr.bf16.mxu0 0
    %1338 = vmatmul.mubr.bf16.gmra.mrb[0].mxu0 %v1279
    %v1339 = vpop.f32.mrb[0].mxu0
    %v1340 = vadd.f32 0.0, %v1339
    %v1341 = vpop.f32.mrb[0].mxu0
    %v1342 = vpop.f32.mrb[0].mxu0
    %v1343 = vadd.f32 0.0, %v1342
    %v1344 = vpop.f32.mrb[0].mxu0
    %1345 = vdwg.mxu0
    %v1346 = vadd.f32 %v1239, %v1316
    %v1347 = vadd.f32 %v1242, %v1319
    %v1348 = vadd.f32 %v1247, %v1324
    %v1349 = vadd.f32 %v1250, %v1327
    %v1350 = vadd.f32 %v1255, %v1332
    %v1351 = vadd.f32 %v1258, %v1335
    %v1352 = vadd.f32 %v1263, %v1340
    %v1353 = vadd.f32 %v1266, %v1343
    %v1354 = vld [vmem:[#allocation26] sm:$0x1]
    %v1356 = vlaneseq
    %v1357 = vshrl.u32 %v1356, 7
    %v1358 = vsub.s32 0, %v1357
    %v1359 = vrot.slane %v1354, %v1358
    %v1361 = vadd.f32 %v1346, %v1359
    %v1362 = vadd.f32 %v1347, %v1359
    %v1363 = vadd.f32 %v1348, %v1359
    %v1364 = vadd.f32 %v1349, %v1359
    %v1365 = vadd.f32 %v1350, %v1359
    %v1366 = vadd.f32 %v1351, %v1359
    %v1367 = vadd.f32 %v1352, %v1359
    %v1368 = vadd.f32 %v1353, %v1359
    %v1369 = vmin.f32 %v1361, 0.0
    %v1370 = vmin.f32 %v1362, 0.0
    %v1371 = vmin.f32 %v1363, 0.0
    %v1372 = vmin.f32 %v1364, 0.0
    %v1373 = vmin.f32 %v1365, 0.0
    %v1374 = vmin.f32 %v1366, 0.0
    %v1375 = vmin.f32 %v1367, 0.0
    %v1376 = vmin.f32 %v1368, 0.0
    %v1377 = vmul.f32 %v1369, 1.442695
    %v1378 = vpow.pop %v1377
    %v1379 = vmul.f32 %v1370, 1.442695
    %v1380 = vpow.pop %v1379
    %v1381 = vmul.f32 %v1371, 1.442695
    %v1382 = vpow.pop %v1381
    %v1383 = vmul.f32 %v1372, 1.442695
    %v1384 = vpow.pop %v1383
    %v1385 = vmul.f32 %v1373, 1.442695
    %v1386 = vpow.pop %v1385
    %v1387 = vmul.f32 %v1374, 1.442695
    %v1388 = vpow.pop %v1387
    %v1389 = vmul.f32 %v1375, 1.442695
    %v1390 = vpow.pop %v1389
    %v1391 = vmul.f32 %v1376, 1.442695
    %v1392 = vpow.pop %v1391
    %v1393 = vsub.f32 %v1378, 1.0
    %v1394 = vsub.f32 %v1380, 1.0
    %v1395 = vsub.f32 %v1382, 1.0
    %v1396 = vsub.f32 %v1384, 1.0
    %v1397 = vsub.f32 %v1386, 1.0
    %v1398 = vsub.f32 %v1388, 1.0
    %v1399 = vsub.f32 %v1390, 1.0
    %v1400 = vsub.f32 %v1392, 1.0
    %v1401 = vmul.f32 %v1393, 1.6732632
    %v1402 = vmul.f32 %v1394, 1.6732632
    %v1403 = vmul.f32 %v1395, 1.6732632
    %v1404 = vmul.f32 %v1396, 1.6732632
    %v1405 = vmul.f32 %v1397, 1.6732632
    %v1406 = vmul.f32 %v1398, 1.6732632
    %v1407 = vmul.f32 %v1399, 1.6732632
    %v1408 = vmul.f32 %v1400, 1.6732632
    %vm1409 = vcmp.gt.f32.partialorder %v1361, 0.0
    %vm1410 = vcmp.gt.f32.partialorder %v1362, 0.0
    %vm1411 = vcmp.gt.f32.partialorder %v1363, 0.0
    %vm1412 = vcmp.gt.f32.partialorder %v1364, 0.0
    %vm1413 = vcmp.gt.f32.partialorder %v1365, 0.0
    %vm1414 = vcmp.gt.f32.partialorder %v1366, 0.0
    %vm1415 = vcmp.gt.f32.partialorder %v1367, 0.0
    %vm1416 = vcmp.gt.f32.partialorder %v1368, 0.0
    %v1417 = vsel %vm1409, %v1361, %v1401
    %v1418 = vsel %vm1410, %v1362, %v1402
    %v1419 = vsel %vm1411, %v1363, %v1403
    %v1420 = vsel %vm1412, %v1364, %v1404
    %v1421 = vsel %vm1413, %v1365, %v1405
    %v1422 = vsel %vm1414, %v1366, %v1406
    %v1423 = vsel %vm1415, %v1367, %v1407
    %v1424 = vsel %vm1416, %v1368, %v1408
    %v1425 = vmul.f32 %v1417, 1.050701
    %v1426 = vmul.f32 %v1418, 1.050701
    %v1427 = vmul.f32 %v1419, 1.050701
    %v1428 = vmul.f32 %v1420, 1.050701
    %v1429 = vmul.f32 %v1421, 1.050701
    %v1430 = vmul.f32 %v1422, 1.050701
    %v1431 = vmul.f32 %v1423, 1.050701
    %v1432 = vmul.f32 %v1424, 1.050701
    %v1433 = vpack.c.bf16 %v1426, %v1425
    %v1434 = vpack.c.bf16 %v1428, %v1427
    %v1435 = vpack.c.bf16 %v1430, %v1429
    %v1436 = vpack.c.bf16 %v1432, %v1431
    %v1437 = vld [vmem:[#allocation28] sm:$0xf]
    %v1438 = vld [vmem:[#allocation28 + $0x4] sm:$0xf]
    %v1439 = vld [vmem:[#allocation28 + $0x8] sm:$0xf]
    %v1440 = vld [vmem:[#allocation28 + $0xc] sm:$0xf]
    %v1441 = vld [vmem:[#allocation28 + $0x10] sm:$0xf]
    %v1442 = vld [vmem:[#allocation28 + $0x14] sm:$0xf]
    %v1443 = vld [vmem:[#allocation28 + $0x18] sm:$0xf]
    %v1444 = vld [vmem:[#allocation28 + $0x1c] sm:$0xf]
    %v1445 = vld [vmem:[#allocation28 + $0x20] sm:$0xf]
    %v1446 = vld [vmem:[#allocation28 + $0x24] sm:$0xf]
    %v1447 = vld [vmem:[#allocation28 + $0x28] sm:$0xf]
    %v1448 = vld [vmem:[#allocation28 + $0x2c] sm:$0xf]
    %v1449 = vld [vmem:[#allocation28 + $0x30] sm:$0xf]
    %v1450 = vld [vmem:[#allocation28 + $0x34] sm:$0xf]
    %v1451 = vld [vmem:[#allocation28 + $0x38] sm:$0xf]
    %v1452 = vld [vmem:[#allocation28 + $0x3c] sm:$0xf]
    %v1453 = vld [vmem:[#allocation29] sm:$0x1]
    %v1455 = vlaneseq
    %v1456 = vshrl.u32 %v1455, 7
    %v1457 = vsub.s32 0, %v1456
    %v1458 = vrot.slane %v1453, %v1457
    %v1476 = vunpack.c.l.b16 %v1437
    %v1477 = vunpack.c.l.b16 %v1438
    %v1478 = vunpack.c.l.b16 %v1439
    %v1479 = vunpack.c.l.b16 %v1440
    %v1480 = vunpack.c.l.b16 %v1441
    %v1481 = vunpack.c.l.b16 %v1442
    %v1482 = vunpack.c.l.b16 %v1443
    %v1483 = vunpack.c.l.b16 %v1444
    %v1484 = vunpack.c.l.b16 %v1445
    %v1485 = vunpack.c.l.b16 %v1446
    %v1486 = vunpack.c.l.b16 %v1447
    %v1487 = vunpack.c.l.b16 %v1448
    %v1488 = vunpack.c.l.b16 %v1449
    %v1489 = vunpack.c.l.b16 %v1450
    %v1490 = vunpack.c.l.b16 %v1451
    %v1491 = vunpack.c.l.b16 %v1452
    %v1492 = vpack.c.b16 %v1477, %v1476
    %v1493 = vpack.c.b16 %v1479, %v1478
    %v1494 = vpack.c.b16 %v1481, %v1480
    %v1495 = vpack.c.b16 %v1483, %v1482
    %v1496 = vpack.c.b16 %v1485, %v1484
    %v1497 = vpack.c.b16 %v1487, %v1486
    %v1498 = vpack.c.b16 %v1489, %v1488
    %v1499 = vpack.c.b16 %v1491, %v1490
    %1508 = vmatprep.subr.bf16.mxu0 0
    %1509 = vmatpush1.bf16.msra.mxu0 %v1492
    %1510 = vmatprep.subr.bf16.mxu0 0
    %1511 = vmatpush1.bf16.msra.mxu0 %v1493
    %1512 = vmatprep.subr.bf16.mxu0 0
    %1513 = vmatpush1.bf16.msra.mxu0 %v1494
    %1514 = vmatprep.subr.bf16.mxu0 0
    %1515 = vmatpush1.bf16.msra.mxu0 %v1495
    %1516 = vmatprep.subr.bf16.mxu0 0
    %1517 = vmatpush1.bf16.msra.mxu0 %v1496
    %1518 = vmatprep.subr.bf16.mxu0 0
    %1519 = vmatpush1.bf16.msra.mxu0 %v1497
    %1520 = vmatprep.subr.bf16.mxu0 0
    %1521 = vmatpush1.bf16.msra.mxu0 %v1498
    %1522 = vmatprep.subr.bf16.mxu0 0
    %1523 = vmatpush1.bf16.msra.mxu0 %v1499
    %1524 = vmatprep.subr.bf16.mxu0 0
    %1525 = vmatpush1.bf16.msra.mxu0 0
    %1526 = vmatprep.subr.bf16.mxu0 0
    %1527 = vmatpush1.bf16.msra.mxu0 0
    %1528 = vmatprep.subr.bf16.mxu0 0
    %1529 = vmatpush1.bf16.msra.mxu0 0
    %1530 = vmatprep.subr.bf16.mxu0 0
    %1531 = vmatpush1.bf16.msra.mxu0 0
    %1532 = vmatprep.subr.bf16.mxu0 0
    %1533 = vmatpush1.bf16.msra.mxu0 0
    %1534 = vmatprep.subr.bf16.mxu0 0
    %1535 = vmatpush1.bf16.msra.mxu0 0
    %1536 = vmatprep.subr.bf16.mxu0 0
    %1537 = vmatpush1.bf16.msra.mxu0 0
    %1538 = vmatprep.subr.bf16.mxu0 0
    %1539 = vmatpush1.bf16.msra.mxu0 0
    %1540 = vmatprep.mubr.bf16.mxu0 0
    %1541 = vmatmul.mubr.bf16.gmra.mrb[0].mxu0 %v1433
    %v1542 = vpop.f32.mrb[0].mxu0
    %v1543 = vadd.f32 %v1458, %v1542
    %v1544 = vpop.f32.mrb[0].mxu0
    %v1545 = vpop.f32.mrb[0].mxu0
    %v1546 = vadd.f32 %v1458, %v1545
    %v1547 = vpop.f32.mrb[0].mxu0
    %1548 = vmatprep.mubr.bf16.mxu0 0
    %1549 = vmatmul.mubr.bf16.gmra.mrb[0].mxu0 %v1434
    %v1550 = vpop.f32.mrb[0].mxu0
    %v1551 = vadd.f32 %v1458, %v1550
    %v1552 = vpop.f32.mrb[0].mxu0
    %v1553 = vpop.f32.mrb[0].mxu0
    %v1554 = vadd.f32 %v1458, %v1553
    %v1555 = vpop.f32.mrb[0].mxu0
    %1556 = vmatprep.mubr.bf16.mxu0 0
    %1557 = vmatmul.mubr.bf16.gmra.mrb[0].mxu0 %v1435
    %v1558 = vpop.f32.mrb[0].mxu0
    %v1559 = vadd.f32 %v1458, %v1558
    %v1560 = vpop.f32.mrb[0].mxu0
    %v1561 = vpop.f32.mrb[0].mxu0
    %v1562 = vadd.f32 %v1458, %v1561
    %v1563 = vpop.f32.mrb[0].mxu0
    %1564 = vmatprep.mubr.bf16.mxu0 0
    %1565 = vmatmul.mubr.bf16.gmra.mrb[0].mxu0 %v1436
    %v1566 = vpop.f32.mrb[0].mxu0
    %v1567 = vadd.f32 %v1458, %v1566
    %v1568 = vpop.f32.mrb[0].mxu0
    %v1569 = vpop.f32.mrb[0].mxu0
    %v1570 = vadd.f32 %v1458, %v1569
    %v1571 = vpop.f32.mrb[0].mxu0
    %1572 = vdwg.mxu0
    %v1573 = vadd.f32 %v1543, %v818
    %v1574 = vadd.f32 %v1546, %v819
    %v1575 = vadd.f32 %v1551, %v820
    %v1576 = vadd.f32 %v1554, %v821
    %v1577 = vadd.f32 %v1559, %v822
    %v1578 = vadd.f32 %v1562, %v823
    %v1579 = vadd.f32 %v1567, %v824
    %v1580 = vadd.f32 %v1570, %v825
    %v1581 = vpack.c.bf16 %v1574, %v1573
    %v1582 = vpack.c.bf16 %v1576, %v1575
    %v1583 = vpack.c.bf16 %v1578, %v1577
    %v1584 = vpack.c.bf16 %v1580, %v1579
    %1585 = vxpose.xlu0.c.b16.start [1/8] %v483, 128
    %1586 = vxpose.xlu0.c.b16.cont [2/8] %v484, 128
    %1587 = vxpose.xlu0.c.b16.cont [3/8] %v485, 128
    %1588 = vxpose.xlu0.c.b16.cont [4/8] %v486, 128
    %1589 = vxpose.xlu0.c.b16.cont [5/8] 0, 128
    %1590 = vxpose.xlu0.c.b16.cont [6/8] 0, 128
    %1591 = vxpose.xlu0.c.b16.cont [7/8] 0, 128
    %1592 = vxpose.xlu0.c.b16.end [8/8] 0, 128
    %v1593 = vpop.trf.xlu0
    %v1594 = vpop.trf.xlu0
    %v1595 = vpop.trf.xlu0
    %v1596 = vpop.trf.xlu0
    %v1597 = vpop.trf.xlu0
    %v1598 = vpop.trf.xlu0
    %v1599 = vpop.trf.xlu0
    %v1600 = vpop.trf.xlu0
    %vm1601 = vcmask 523264
    %v1603 = vsel %vm1601, %v1593, 0
    %v1606 = vsel %vm1601, %v1594, 0
    %1608 = vmatprep.subr.bf16.mxu0 0
    %1609 = vmatpush1.bf16.msra.mxu0 %v1581
    %1610 = vmatprep.subr.bf16.mxu0 0
    %1611 = vmatpush1.bf16.msra.mxu0 %v1582
    %1612 = vmatprep.subr.bf16.mxu0 0
    %1613 = vmatpush1.bf16.msra.mxu0 %v1583
    %1614 = vmatprep.subr.bf16.mxu0 0
    %1615 = vmatpush1.bf16.msra.mxu0 %v1584
    %1616 = vmatprep.subr.bf16.mxu0 0
    %1617 = vmatpush1.bf16.msra.mxu0 0
    %1618 = vmatprep.subr.bf16.mxu0 0
    %1619 = vmatpush1.bf16.msra.mxu0 0
    %1620 = vmatprep.subr.bf16.mxu0 0
    %1621 = vmatpush1.bf16.msra.mxu0 0
    %1622 = vmatprep.subr.bf16.mxu0 0
    %1623 = vmatpush1.bf16.msra.mxu0 0
    %1624 = vmatprep.subr.bf16.mxu0 0
    %1625 = vmatpush1.bf16.msra.mxu0 0
    %1626 = vmatprep.subr.bf16.mxu0 0
    %1627 = vmatpush1.bf16.msra.mxu0 0
    %1628 = vmatprep.subr.bf16.mxu0 0
    %1629 = vmatpush1.bf16.msra.mxu0 0
    %1630 = vmatprep.subr.bf16.mxu0 0
    %1631 = vmatpush1.bf16.msra.mxu0 0
    %1632 = vmatprep.subr.bf16.mxu0 0
    %1633 = vmatpush1.bf16.msra.mxu0 0
    %1634 = vmatprep.subr.bf16.mxu0 0
    %1635 = vmatpush1.bf16.msra.mxu0 0
    %1636 = vmatprep.subr.bf16.mxu0 0
    %1637 = vmatpush1.bf16.msra.mxu0 0
    %1638 = vmatprep.subr.bf16.mxu0 0
    %1639 = vmatpush1.bf16.msra.mxu0 0
    %1640 = vmatprep.mubr.bf16.mxu0 0
    %1641 = vmatmul.mubr.bf16.gmra.mrb[0].mxu0 %v1603
    %v1642 = vpop.f32.mrb[0].mxu0
    %v1643 = vadd.f32 0.0, %v1642
    %v1644 = vpop.f32.mrb[0].mxu0
    %v1645 = vpop.f32.mrb[0].mxu0
    %v1646 = vadd.f32 0.0, %v1645
    %v1647 = vpop.f32.mrb[0].mxu0
    %1648 = vmatprep.mubr.bf16.mxu0 0
    %1649 = vmatmul.mubr.bf16.gmra.mrb[0].mxu0 %v1606
    %v1650 = vpop.f32.mrb[0].mxu0
    %v1651 = vadd.f32 0.0, %v1650
    %v1652 = vpop.f32.mrb[0].mxu0
    %v1653 = vpop.f32.mrb[0].mxu0
    %v1654 = vadd.f32 0.0, %v1653
    %v1655 = vpop.f32.mrb[0].mxu0
    %1656 = vdwg.mxu0
    %1658 = vset.pattern.permute.xlu0 0
    %1659 = vperm.xlu0 %1658, %v487
    %v1660 = vpop.permute.xlu0 %1659
    %1663 = vset.pattern.permute.xlu0 0
    %1664 = vperm.xlu0 %1663, %v488
    %v1665 = vpop.permute.xlu0 %1664
    %1668 = vset.pattern.permute.xlu0 0
    %1669 = vperm.xlu0 %1668, %v489
    %v1670 = vpop.permute.xlu0 %1669
    %1673 = vset.pattern.permute.xlu0 0
    %1674 = vperm.xlu0 %1673, %v490
    %v1675 = vpop.permute.xlu0 %1674
    %v1677 = vmul.f32 %v1643, %v1660
    %v1678 = vmul.f32 %v1646, %v1665
    %v1679 = vmul.f32 %v1651, %v1670
    %v1680 = vmul.f32 %v1654, %v1675
    %v1681 = vpack.c.bf16 %v1678, %v1677
    %v1682 = vpack.c.bf16 %v1680, %v1679
    %v1683 = vld [vmem:[#allocation31] sm:$0xf]
    %v1684 = vld [vmem:[#allocation31 + $0x4] sm:$0xf]
    %v1685 = vld [vmem:[#allocation31 + $0x8] sm:$0xf]
    %v1686 = vld [vmem:[#allocation31 + $0xc] sm:$0xf]
    %v1687 = vld [vmem:[#allocation31 + $0x10] sm:$0xf]
    %v1688 = vld [vmem:[#allocation31 + $0x14] sm:$0xf]
    %v1689 = vld [vmem:[#allocation31 + $0x18] sm:$0xf]
    %v1690 = vld [vmem:[#allocation31 + $0x1c] sm:$0xf]
    %v1691 = vld [vmem:[#allocation31 + $0x20] sm:$0xf]
    %v1692 = vld [vmem:[#allocation31 + $0x24] sm:$0xf]
    %v1693 = vld [vmem:[#allocation31 + $0x28] sm:$0xf]
    %v1694 = vld [vmem:[#allocation31 + $0x2c] sm:$0xf]
    %v1695 = vld [vmem:[#allocation31 + $0x30] sm:$0xf]
    %v1696 = vld [vmem:[#allocation31 + $0x34] sm:$0xf]
    %v1697 = vld [vmem:[#allocation31 + $0x38] sm:$0xf]
    %v1698 = vld [vmem:[#allocation31 + $0x3c] sm:$0xf]
    %v1699 = vld [vmem:[#allocation31 + $0x40] sm:$0xf]
    %v1700 = vld [vmem:[#allocation31 + $0x44] sm:$0xf]
    %v1701 = vld [vmem:[#allocation31 + $0x48] sm:$0xf]
    %v1702 = vld [vmem:[#allocation31 + $0x4c] sm:$0xf]
    %v1703 = vld [vmem:[#allocation31 + $0x50] sm:$0xf]
    %v1704 = vld [vmem:[#allocation31 + $0x54] sm:$0xf]
    %v1705 = vld [vmem:[#allocation31 + $0x58] sm:$0xf]
    %v1706 = vld [vmem:[#allocation31 + $0x5c] sm:$0xf]
    %v1707 = vld [vmem:[#allocation31 + $0x60] sm:$0xf]
    %v1708 = vld [vmem:[#allocation31 + $0x64] sm:$0xf]
    %v1709 = vld [vmem:[#allocation31 + $0x68] sm:$0xf]
    %v1710 = vld [vmem:[#allocation31 + $0x6c] sm:$0xf]
    %v1711 = vld [vmem:[#allocation31 + $0x70] sm:$0xf]
    %v1712 = vld [vmem:[#allocation31 + $0x74] sm:$0xf]
    %v1713 = vld [vmem:[#allocation31 + $0x78] sm:$0xf]
    %v1714 = vld [vmem:[#allocation31 + $0x7c] sm:$0xf]
    %v1715 = vld [vmem:[#allocation32] sm:$0x1]
    %v1717 = vlaneseq
    %v1718 = vshrl.u32 %v1717, 7
    %v1719 = vsub.s32 0, %v1718
    %v1720 = vrot.slane %v1715, %v1719
    %v1754 = vunpack.c.l.b16 %v1683
    %v1755 = vunpack.c.l.b16 %v1684
    %v1756 = vunpack.c.l.b16 %v1685
    %v1757 = vunpack.c.l.b16 %v1686
    %v1758 = vunpack.c.l.b16 %v1687
    %v1759 = vunpack.c.l.b16 %v1688
    %v1760 = vunpack.c.l.b16 %v1689
    %v1761 = vunpack.c.l.b16 %v1690
    %v1762 = vunpack.c.l.b16 %v1691
    %v1763 = vunpack.c.l.b16 %v1692
    %v1764 = vunpack.c.l.b16 %v1693
    %v1765 = vunpack.c.l.b16 %v1694
    %v1766 = vunpack.c.l.b16 %v1695
    %v1767 = vunpack.c.l.b16 %v1696
    %v1768 = vunpack.c.l.b16 %v1697
    %v1769 = vunpack.c.l.b16 %v1698
    %v1770 = vunpack.c.l.b16 %v1699
    %v1771 = vunpack.c.l.b16 %v1700
    %v1772 = vunpack.c.l.b16 %v1701
    %v1773 = vunpack.c.l.b16 %v1702
    %v1774 = vunpack.c.l.b16 %v1703
    %v1775 = vunpack.c.l.b16 %v1704
    %v1776 = vunpack.c.l.b16 %v1705
    %v1777 = vunpack.c.l.b16 %v1706
    %v1778 = vunpack.c.l.b16 %v1707
    %v1779 = vunpack.c.l.b16 %v1708
    %v1780 = vunpack.c.l.b16 %v1709
    %v1781 = vunpack.c.l.b16 %v1710
    %v1782 = vunpack.c.l.b16 %v1711
    %v1783 = vunpack.c.l.b16 %v1712
    %v1784 = vunpack.c.l.b16 %v1713
    %v1785 = vunpack.c.l.b16 %v1714
    %v1786 = vpack.c.b16 %v1755, %v1754
    %v1787 = vpack.c.b16 %v1757, %v1756
    %v1788 = vpack.c.b16 %v1759, %v1758
    %v1789 = vpack.c.b16 %v1761, %v1760
    %v1790 = vpack.c.b16 %v1763, %v1762
    %v1791 = vpack.c.b16 %v1765, %v1764
    %v1792 = vpack.c.b16 %v1767, %v1766
    %v1793 = vpack.c.b16 %v1769, %v1768
    %v1794 = vpack.c.b16 %v1771, %v1770
    %v1795 = vpack.c.b16 %v1773, %v1772
    %v1796 = vpack.c.b16 %v1775, %v1774
    %v1797 = vpack.c.b16 %v1777, %v1776
    %v1798 = vpack.c.b16 %v1779, %v1778
    %v1799 = vpack.c.b16 %v1781, %v1780
    %v1800 = vpack.c.b16 %v1783, %v1782
    %v1801 = vpack.c.b16 %v1785, %v1784
    %1818 = vmatprep.subr.bf16.mxu0 0
    %1819 = vmatpush1.bf16.msra.mxu0 %v1786
    %1820 = vmatprep.subr.bf16.mxu0 0
    %1821 = vmatpush1.bf16.msra.mxu0 %v1787
    %1822 = vmatprep.subr.bf16.mxu0 0
    %1823 = vmatpush1.bf16.msra.mxu0 %v1788
    %1824 = vmatprep.subr.bf16.mxu0 0
    %1825 = vmatpush1.bf16.msra.mxu0 %v1789
    %1826 = vmatprep.subr.bf16.mxu0 0
    %1827 = vmatpush1.bf16.msra.mxu0 %v1790
    %1828 = vmatprep.subr.bf16.mxu0 0
    %1829 = vmatpush1.bf16.msra.mxu0 %v1791
    %1830 = vmatprep.subr.bf16.mxu0 0
    %1831 = vmatpush1.bf16.msra.mxu0 %v1792
    %1832 = vmatprep.subr.bf16.mxu0 0
    %1833 = vmatpush1.bf16.msra.mxu0 %v1793
    %1834 = vmatprep.subr.bf16.mxu0 0
    %1835 = vmatpush1.bf16.msra.mxu0 %v1794
    %1836 = vmatprep.subr.bf16.mxu0 0
    %1837 = vmatpush1.bf16.msra.mxu0 %v1795
    %1838 = vmatprep.subr.bf16.mxu0 0
    %1839 = vmatpush1.bf16.msra.mxu0 %v1796
    %1840 = vmatprep.subr.bf16.mxu0 0
    %1841 = vmatpush1.bf16.msra.mxu0 %v1797
    %1842 = vmatprep.subr.bf16.mxu0 0
    %1843 = vmatpush1.bf16.msra.mxu0 %v1798
    %1844 = vmatprep.subr.bf16.mxu0 0
    %1845 = vmatpush1.bf16.msra.mxu0 %v1799
    %1846 = vmatprep.subr.bf16.mxu0 0
    %1847 = vmatpush1.bf16.msra.mxu0 %v1800
    %1848 = vmatprep.subr.bf16.mxu0 0
    %1849 = vmatpush1.bf16.msra.mxu0 %v1801
    %1850 = vmatprep.mubr.bf16.mxu0 %v1681
    %1851 = vmatmul.mubr.bf16.gmra.mrb[0].mxu0 %v826
    %v1852 = vpop.f32.mrb[0].mxu0
    %v1853 = vadd.f32 %v1720, %v1852
    %v1854 = vpop.f32.mrb[0].mxu0
    %v1855 = vpop.f32.mrb[0].mxu0
    %v1856 = vadd.f32 %v1720, %v1855
    %v1857 = vpop.f32.mrb[0].mxu0
    %1858 = vmatprep.mubr.bf16.mxu0 %v1682
    %1859 = vmatmul.mubr.bf16.gmra.mrb[0].mxu0 %v827
    %v1860 = vpop.f32.mrb[0].mxu0
    %v1861 = vadd.f32 %v1720, %v1860
    %v1862 = vpop.f32.mrb[0].mxu0
    %v1863 = vpop.f32.mrb[0].mxu0
    %v1864 = vadd.f32 %v1720, %v1863
    %v1865 = vpop.f32.mrb[0].mxu0
    %1866 = vdwg.mxu0
    %v1867 = vmin.f32 %v1853, 0.0
    %v1868 = vmin.f32 %v1856, 0.0
    %v1869 = vmin.f32 %v1861, 0.0
    %v1870 = vmin.f32 %v1864, 0.0
    %v1871 = vmul.f32 %v1867, 1.442695
    %v1872 = vpow.pop %v1871
    %v1873 = vmul.f32 %v1868, 1.442695
    %v1874 = vpow.pop %v1873
    %v1875 = vmul.f32 %v1869, 1.442695
    %v1876 = vpow.pop %v1875
    %v1877 = vmul.f32 %v1870, 1.442695
    %v1878 = vpow.pop %v1877
    %v1879 = vsub.f32 %v1872, 1.0
    %v1880 = vsub.f32 %v1874, 1.0
    %v1881 = vsub.f32 %v1876, 1.0
    %v1882 = vsub.f32 %v1878, 1.0
    %v1883 = vmul.f32 %v1879, 1.6732632
    %v1884 = vmul.f32 %v1880, 1.6732632
    %v1885 = vmul.f32 %v1881, 1.6732632
    %v1886 = vmul.f32 %v1882, 1.6732632
    %vm1887 = vcmp.gt.f32.partialorder %v1853, 0.0
    %vm1888 = vcmp.gt.f32.partialorder %v1856, 0.0
    %vm1889 = vcmp.gt.f32.partialorder %v1861, 0.0
    %vm1890 = vcmp.gt.f32.partialorder %v1864, 0.0
    %v1891 = vsel %vm1887, %v1853, %v1883
    %v1892 = vsel %vm1888, %v1856, %v1884
    %v1893 = vsel %vm1889, %v1861, %v1885
    %v1894 = vsel %vm1890, %v1864, %v1886
    %v1895 = vmul.f32 %v1891, 1.050701
    %v1896 = vmul.f32 %v1892, 1.050701
    %v1897 = vmul.f32 %v1893, 1.050701
    %v1898 = vmul.f32 %v1894, 1.050701
    %v1899 = vpack.c.bf16 %v1896, %v1895
    %v1900 = vpack.c.bf16 %v1898, %v1897
    %v1901 = vld [vmem:[#allocation34] sm:$0xf]
    %v1902 = vld [vmem:[#allocation34 + $0x4] sm:$0xf]
    %v1903 = vld [vmem:[#allocation34 + $0x8] sm:$0xf]
    %v1904 = vld [vmem:[#allocation34 + $0xc] sm:$0xf]
    %v1905 = vld [vmem:[#allocation34 + $0x10] sm:$0xf]
    %v1906 = vld [vmem:[#allocation34 + $0x14] sm:$0xf]
    %v1907 = vld [vmem:[#allocation34 + $0x18] sm:$0xf]
    %v1908 = vld [vmem:[#allocation34 + $0x1c] sm:$0xf]
    %v1909 = vld [vmem:[#allocation34 + $0x20] sm:$0xf]
    %v1910 = vld [vmem:[#allocation34 + $0x24] sm:$0xf]
    %v1911 = vld [vmem:[#allocation34 + $0x28] sm:$0xf]
    %v1912 = vld [vmem:[#allocation34 + $0x2c] sm:$0xf]
    %v1913 = vld [vmem:[#allocation34 + $0x30] sm:$0xf]
    %v1914 = vld [vmem:[#allocation34 + $0x34] sm:$0xf]
    %v1915 = vld [vmem:[#allocation34 + $0x38] sm:$0xf]
    %v1916 = vld [vmem:[#allocation34 + $0x3c] sm:$0xf]
    %v1917 = vld [vmem:[#allocation35] sm:$0x1]
    %v1919 = vlaneseq
    %v1920 = vshrl.u32 %v1919, 7
    %v1921 = vsub.s32 0, %v1920
    %v1922 = vrot.slane %v1917, %v1921
    %v1940 = vunpack.c.l.b16 %v1901
    %v1941 = vunpack.c.l.b16 %v1902
    %v1942 = vunpack.c.l.b16 %v1903
    %v1943 = vunpack.c.l.b16 %v1904
    %v1944 = vunpack.c.l.b16 %v1905
    %v1945 = vunpack.c.l.b16 %v1906
    %v1946 = vunpack.c.l.b16 %v1907
    %v1947 = vunpack.c.l.b16 %v1908
    %v1948 = vunpack.c.l.b16 %v1909
    %v1949 = vunpack.c.l.b16 %v1910
    %v1950 = vunpack.c.l.b16 %v1911
    %v1951 = vunpack.c.l.b16 %v1912
    %v1952 = vunpack.c.l.b16 %v1913
    %v1953 = vunpack.c.l.b16 %v1914
    %v1954 = vunpack.c.l.b16 %v1915
    %v1955 = vunpack.c.l.b16 %v1916
    %v1956 = vpack.c.b16 %v1941, %v1940
    %v1957 = vpack.c.b16 %v1943, %v1942
    %v1958 = vpack.c.b16 %v1945, %v1944
    %v1959 = vpack.c.b16 %v1947, %v1946
    %v1960 = vpack.c.b16 %v1949, %v1948
    %v1961 = vpack.c.b16 %v1951, %v1950
    %v1962 = vpack.c.b16 %v1953, %v1952
    %v1963 = vpack.c.b16 %v1955, %v1954
    %1972 = vmatprep.subr.bf16.mxu0 0
    %1973 = vmatpush1.bf16.msra.mxu0 %v1956
    %1974 = vmatprep.subr.bf16.mxu0 0
    %1975 = vmatpush1.bf16.msra.mxu0 %v1957
    %1976 = vmatprep.subr.bf16.mxu0 0
    %1977 = vmatpush1.bf16.msra.mxu0 %v1958
    %1978 = vmatprep.subr.bf16.mxu0 0
    %1979 = vmatpush1.bf16.msra.mxu0 %v1959
    %1980 = vmatprep.subr.bf16.mxu0 0
    %1981 = vmatpush1.bf16.msra.mxu0 %v1960
    %1982 = vmatprep.subr.bf16.mxu0 0
    %1983 = vmatpush1.bf16.msra.mxu0 %v1961
    %1984 = vmatprep.subr.bf16.mxu0 0
    %1985 = vmatpush1.bf16.msra.mxu0 %v1962
    %1986 = vmatprep.subr.bf16.mxu0 0
    %1987 = vmatpush1.bf16.msra.mxu0 %v1963
    %1988 = vmatprep.subr.bf16.mxu0 0
    %1989 = vmatpush1.bf16.msra.mxu0 0
    %1990 = vmatprep.subr.bf16.mxu0 0
    %1991 = vmatpush1.bf16.msra.mxu0 0
    %1992 = vmatprep.subr.bf16.mxu0 0
    %1993 = vmatpush1.bf16.msra.mxu0 0
    %1994 = vmatprep.subr.bf16.mxu0 0
    %1995 = vmatpush1.bf16.msra.mxu0 0
    %1996 = vmatprep.subr.bf16.mxu0 0
    %1997 = vmatpush1.bf16.msra.mxu0 0
    %1998 = vmatprep.subr.bf16.mxu0 0
    %1999 = vmatpush1.bf16.msra.mxu0 0
    %2000 = vmatprep.subr.bf16.mxu0 0
    %2001 = vmatpush1.bf16.msra.mxu0 0
    %2002 = vmatprep.subr.bf16.mxu0 0
    %2003 = vmatpush1.bf16.msra.mxu0 0
    %2004 = vmatprep.mubr.bf16.mxu0 0
    %2005 = vmatmul.mubr.bf16.gmra.mrb[0].mxu0 %v1899
    %v2006 = vpop.f32.mrb[0].mxu0
    %v2007 = vadd.f32 %v1922, %v2006
    %v2008 = vpop.f32.mrb[0].mxu0
    %v2009 = vpop.f32.mrb[0].mxu0
    %v2010 = vadd.f32 %v1922, %v2009
    %v2011 = vpop.f32.mrb[0].mxu0
    %2012 = vmatprep.mubr.bf16.mxu0 0
    %2013 = vmatmul.mubr.bf16.gmra.mrb[0].mxu0 %v1900
    %v2014 = vpop.f32.mrb[0].mxu0
    %v2015 = vadd.f32 %v1922, %v2014
    %v2016 = vpop.f32.mrb[0].mxu0
    %v2017 = vpop.f32.mrb[0].mxu0
    %v2018 = vadd.f32 %v1922, %v2017
    %v2019 = vpop.f32.mrb[0].mxu0
    %2020 = vdwg.mxu0
    %v2021 = vadd.f32 %v2007, %v814
    %v2022 = vadd.f32 %v2010, %v815
    %v2023 = vadd.f32 %v2015, %v816
    %v2024 = vadd.f32 %v2018, %v817
    %v2025 = vpack.c.bf16 %v2022, %v2021
    %v2026 = vpack.c.bf16 %v2024, %v2023
    %s2027 = scalar_lea.vmem [#allocation23], 64
    %v2028 = vld [vmem:[%s2027] sm:$0xf]
    %v2029 = vld [vmem:[%s2027 + $0x4] sm:$0xf]
    %v2030 = vld [vmem:[%s2027 + $0x8] sm:$0xf]
    %v2031 = vld [vmem:[%s2027 + $0xc] sm:$0xf]
    %v2032 = vld [vmem:[%s2027 + $0x10] sm:$0xf]
    %v2033 = vld [vmem:[%s2027 + $0x14] sm:$0xf]
    %v2034 = vld [vmem:[%s2027 + $0x18] sm:$0xf]
    %v2035 = vld [vmem:[%s2027 + $0x1c] sm:$0xf]
    %v2036 = vld [vmem:[%s2027 + $0x20] sm:$0xf]
    %v2037 = vld [vmem:[%s2027 + $0x24] sm:$0xf]
    %v2038 = vld [vmem:[%s2027 + $0x28] sm:$0xf]
    %v2039 = vld [vmem:[%s2027 + $0x2c] sm:$0xf]
    %v2040 = vld [vmem:[%s2027 + $0x30] sm:$0xf]
    %v2041 = vld [vmem:[%s2027 + $0x34] sm:$0xf]
    %v2042 = vld [vmem:[%s2027 + $0x38] sm:$0xf]
    %v2043 = vld [vmem:[%s2027 + $0x3c] sm:$0xf]
    %v2060 = vunpack.c.l.b16 %v2028
    %v2061 = vunpack.c.l.b16 %v2029
    %v2062 = vunpack.c.l.b16 %v2030
    %v2063 = vunpack.c.l.b16 %v2031
    %v2064 = vunpack.c.l.b16 %v2032
    %v2065 = vunpack.c.l.b16 %v2033
    %v2066 = vunpack.c.l.b16 %v2034
    %v2067 = vunpack.c.l.b16 %v2035
    %v2068 = vunpack.c.l.b16 %v2036
    %v2069 = vunpack.c.l.b16 %v2037
    %v2070 = vunpack.c.l.b16 %v2038
    %v2071 = vunpack.c.l.b16 %v2039
    %v2072 = vunpack.c.l.b16 %v2040
    %v2073 = vunpack.c.l.b16 %v2041
    %v2074 = vunpack.c.l.b16 %v2042
    %v2075 = vunpack.c.l.b16 %v2043
    %v2076 = vpack.c.b16 %v2061, %v2060
    %v2077 = vpack.c.b16 %v2063, %v2062
    %v2078 = vpack.c.b16 %v2065, %v2064
    %v2079 = vpack.c.b16 %v2067, %v2066
    %v2080 = vpack.c.b16 %v2069, %v2068
    %v2081 = vpack.c.b16 %v2071, %v2070
    %v2082 = vpack.c.b16 %v2073, %v2072
    %v2083 = vpack.c.b16 %v2075, %v2074
    %2092 = vmatprep.subr.bf16.mxu0 0
    %2093 = vmatpush1.bf16.msra.mxu0 %v2076
    %2094 = vmatprep.subr.bf16.mxu0 0
    %2095 = vmatpush1.bf16.msra.mxu0 %v2077
    %2096 = vmatprep.subr.bf16.mxu0 0
    %2097 = vmatpush1.bf16.msra.mxu0 %v2078
    %2098 = vmatprep.subr.bf16.mxu0 0
    %2099 = vmatpush1.bf16.msra.mxu0 %v2079
    %2100 = vmatprep.subr.bf16.mxu0 0
    %2101 = vmatpush1.bf16.msra.mxu0 %v2080
    %2102 = vmatprep.subr.bf16.mxu0 0
    %2103 = vmatpush1.bf16.msra.mxu0 %v2081
    %2104 = vmatprep.subr.bf16.mxu0 0
    %2105 = vmatpush1.bf16.msra.mxu0 %v2082
    %2106 = vmatprep.subr.bf16.mxu0 0
    %2107 = vmatpush1.bf16.msra.mxu0 %v2083
    %2108 = vmatprep.subr.bf16.mxu0 0
    %2109 = vmatpush1.bf16.msra.mxu0 0
    %2110 = vmatprep.subr.bf16.mxu0 0
    %2111 = vmatpush1.bf16.msra.mxu0 0
    %2112 = vmatprep.subr.bf16.mxu0 0
    %2113 = vmatpush1.bf16.msra.mxu0 0
    %2114 = vmatprep.subr.bf16.mxu0 0
    %2115 = vmatpush1.bf16.msra.mxu0 0
    %2116 = vmatprep.subr.bf16.mxu0 0
    %2117 = vmatpush1.bf16.msra.mxu0 0
    %2118 = vmatprep.subr.bf16.mxu0 0
    %2119 = vmatpush1.bf16.msra.mxu0 0
    %2120 = vmatprep.subr.bf16.mxu0 0
    %2121 = vmatpush1.bf16.msra.mxu0 0
    %2122 = vmatprep.subr.bf16.mxu0 0
    %2123 = vmatpush1.bf16.msra.mxu0 0
    %2124 = vmatprep.mubr.bf16.mxu0 0
    %2125 = vmatmul.mubr.bf16.gmra.mrb[0].mxu0 %v2025
    %v2126 = vpop.f32.mrb[0].mxu0
    %v2127 = vadd.f32 0.0, %v2126
    %v2128 = vpop.f32.mrb[0].mxu0
    %v2129 = vpop.f32.mrb[0].mxu0
    %v2130 = vadd.f32 0.0, %v2129
    %v2131 = vpop.f32.mrb[0].mxu0
    %2132 = vmatprep.mubr.bf16.mxu0 0
    %2133 = vmatmul.mubr.bf16.gmra.mrb[0].mxu0 %v2026
    %v2134 = vpop.f32.mrb[0].mxu0
    %v2135 = vadd.f32 0.0, %v2134
    %v2136 = vpop.f32.mrb[0].mxu0
    %v2137 = vpop.f32.mrb[0].mxu0
    %v2138 = vadd.f32 0.0, %v2137
    %v2139 = vpop.f32.mrb[0].mxu0
    %2140 = vdwg.mxu0
    %v2141 = vpack.c.bf16 %v2130, %v2127
    %v2142 = vpack.c.bf16 %v2138, %v2135
    %s2143 = scalar_lea.vmem [#allocation25], 64
    %v2144 = vld [vmem:[%s2143] sm:$0xf]
    %v2145 = vld [vmem:[%s2143 + $0x4] sm:$0xf]
    %v2146 = vld [vmem:[%s2143 + $0x8] sm:$0xf]
    %v2147 = vld [vmem:[%s2143 + $0xc] sm:$0xf]
    %v2148 = vld [vmem:[%s2143 + $0x10] sm:$0xf]
    %v2149 = vld [vmem:[%s2143 + $0x14] sm:$0xf]
    %v2150 = vld [vmem:[%s2143 + $0x18] sm:$0xf]
    %v2151 = vld [vmem:[%s2143 + $0x1c] sm:$0xf]
    %v2152 = vld [vmem:[%s2143 + $0x20] sm:$0xf]
    %v2153 = vld [vmem:[%s2143 + $0x24] sm:$0xf]
    %v2154 = vld [vmem:[%s2143 + $0x28] sm:$0xf]
    %v2155 = vld [vmem:[%s2143 + $0x2c] sm:$0xf]
    %v2156 = vld [vmem:[%s2143 + $0x30] sm:$0xf]
    %v2157 = vld [vmem:[%s2143 + $0x34] sm:$0xf]
    %v2158 = vld [vmem:[%s2143 + $0x38] sm:$0xf]
    %v2159 = vld [vmem:[%s2143 + $0x3c] sm:$0xf]
    %v2176 = vunpack.c.l.b16 %v2144
    %v2177 = vunpack.c.l.b16 %v2145
    %v2178 = vunpack.c.l.b16 %v2146
    %v2179 = vunpack.c.l.b16 %v2147
    %v2180 = vunpack.c.l.b16 %v2148
    %v2181 = vunpack.c.l.b16 %v2149
    %v2182 = vunpack.c.l.b16 %v2150
    %v2183 = vunpack.c.l.b16 %v2151
    %v2184 = vunpack.c.l.b16 %v2152
    %v2185 = vunpack.c.l.b16 %v2153
    %v2186 = vunpack.c.l.b16 %v2154
    %v2187 = vunpack.c.l.b16 %v2155
    %v2188 = vunpack.c.l.b16 %v2156
    %v2189 = vunpack.c.l.b16 %v2157
    %v2190 = vunpack.c.l.b16 %v2158
    %v2191 = vunpack.c.l.b16 %v2159
    %v2192 = vpack.c.b16 %v2177, %v2176
    %v2193 = vpack.c.b16 %v2179, %v2178
    %v2194 = vpack.c.b16 %v2181, %v2180
    %v2195 = vpack.c.b16 %v2183, %v2182
    %v2196 = vpack.c.b16 %v2185, %v2184
    %v2197 = vpack.c.b16 %v2187, %v2186
    %v2198 = vpack.c.b16 %v2189, %v2188
    %v2199 = vpack.c.b16 %v2191, %v2190
    %2208 = vmatprep.subr.bf16.mxu0 0
    %2209 = vmatpush1.bf16.msra.mxu0 %v2192
    %2210 = vmatprep.subr.bf16.mxu0 0
    %2211 = vmatpush1.bf16.msra.mxu0 %v2193
    %2212 = vmatprep.subr.bf16.mxu0 0
    %2213 = vmatpush1.bf16.msra.mxu0 %v2194
    %2214 = vmatprep.subr.bf16.mxu0 0
    %2215 = vmatpush1.bf16.msra.mxu0 %v2195
    %2216 = vmatprep.subr.bf16.mxu0 0
    %2217 = vmatpush1.bf16.msra.mxu0 %v2196
    %2218 = vmatprep.subr.bf16.mxu0 0
    %2219 = vmatpush1.bf16.msra.mxu0 %v2197
    %2220 = vmatprep.subr.bf16.mxu0 0
    %2221 = vmatpush1.bf16.msra.mxu0 %v2198
    %2222 = vmatprep.subr.bf16.mxu0 0
    %2223 = vmatpush1.bf16.msra.mxu0 %v2199
    %2224 = vmatprep.subr.bf16.mxu0 0
    %2225 = vmatpush1.bf16.msra.mxu0 0
    %2226 = vmatprep.subr.bf16.mxu0 0
    %2227 = vmatpush1.bf16.msra.mxu0 0
    %2228 = vmatprep.subr.bf16.mxu0 0
    %2229 = vmatpush1.bf16.msra.mxu0 0
    %2230 = vmatprep.subr.bf16.mxu0 0
    %2231 = vmatpush1.bf16.msra.mxu0 0
    %2232 = vmatprep.subr.bf16.mxu0 0
    %2233 = vmatpush1.bf16.msra.mxu0 0
    %2234 = vmatprep.subr.bf16.mxu0 0
    %2235 = vmatpush1.bf16.msra.mxu0 0
    %2236 = vmatprep.subr.bf16.mxu0 0
    %2237 = vmatpush1.bf16.msra.mxu0 0
    %2238 = vmatprep.subr.bf16.mxu0 0
    %2239 = vmatpush1.bf16.msra.mxu0 0
    %2240 = vmatprep.mubr.bf16.mxu0 0
    %2241 = vmatmul.mubr.bf16.gmra.mrb[0].mxu0 %v2025
    %v2242 = vpop.f32.mrb[0].mxu0
    %v2243 = vadd.f32 0.0, %v2242
    %v2244 = vpop.f32.mrb[0].mxu0
    %v2245 = vpop.f32.mrb[0].mxu0
    %v2246 = vadd.f32 0.0, %v2245
    %v2247 = vpop.f32.mrb[0].mxu0
    %2248 = vmatprep.mubr.bf16.mxu0 0
    %2249 = vmatmul.mubr.bf16.gmra.mrb[0].mxu0 %v2026
    %v2250 = vpop.f32.mrb[0].mxu0
    %v2251 = vadd.f32 0.0, %v2250
    %v2252 = vpop.f32.mrb[0].mxu0
    %v2253 = vpop.f32.mrb[0].mxu0
    %v2254 = vadd.f32 0.0, %v2253
    %v2255 = vpop.f32.mrb[0].mxu0
    %2256 = vdwg.mxu0
    %v2257 = vpack.c.bf16 %v2246, %v2243
    %v2258 = vpack.c.bf16 %v2254, %v2251
    %s2259 = scalar_lea.vmem [#allocation22], 64
    %v2260 = vld [vmem:[%s2259] sm:$0xf]
    %v2261 = vld [vmem:[%s2259 + $0x4] sm:$0xf]
    %v2262 = vld [vmem:[%s2259 + $0x8] sm:$0xf]
    %v2263 = vld [vmem:[%s2259 + $0xc] sm:$0xf]
    %v2264 = vld [vmem:[%s2259 + $0x10] sm:$0xf]
    %v2265 = vld [vmem:[%s2259 + $0x14] sm:$0xf]
    %v2266 = vld [vmem:[%s2259 + $0x18] sm:$0xf]
    %v2267 = vld [vmem:[%s2259 + $0x1c] sm:$0xf]
    %v2268 = vld [vmem:[%s2259 + $0x20] sm:$0xf]
    %v2269 = vld [vmem:[%s2259 + $0x24] sm:$0xf]
    %v2270 = vld [vmem:[%s2259 + $0x28] sm:$0xf]
    %v2271 = vld [vmem:[%s2259 + $0x2c] sm:$0xf]
    %v2272 = vld [vmem:[%s2259 + $0x30] sm:$0xf]
    %v2273 = vld [vmem:[%s2259 + $0x34] sm:$0xf]
    %v2274 = vld [vmem:[%s2259 + $0x38] sm:$0xf]
    %v2275 = vld [vmem:[%s2259 + $0x3c] sm:$0xf]
    %2276 = vmatprep.subr.bf16.mxu0 0
    %2277 = vmatpush1.bf16.msra.mxu0 %v2141
    %2278 = vmatprep.subr.bf16.mxu0 0
    %2279 = vmatpush1.bf16.msra.mxu0 %v2142
    %2280 = vmatprep.subr.bf16.mxu0 0
    %2281 = vmatpush1.bf16.msra.mxu0 0
    %2282 = vmatprep.subr.bf16.mxu0 0
    %2283 = vmatpush1.bf16.msra.mxu0 0
    %2284 = vmatprep.subr.bf16.mxu0 0
    %2285 = vmatpush1.bf16.msra.mxu0 0
    %2286 = vmatprep.subr.bf16.mxu0 0
    %2287 = vmatpush1.bf16.msra.mxu0 0
    %2288 = vmatprep.subr.bf16.mxu0 0
    %2289 = vmatpush1.bf16.msra.mxu0 0
    %2290 = vmatprep.subr.bf16.mxu0 0
    %2291 = vmatpush1.bf16.msra.mxu0 0
    %2292 = vmatprep.subr.bf16.mxu0 0
    %2293 = vmatpush1.bf16.msra.mxu0 0
    %2294 = vmatprep.subr.bf16.mxu0 0
    %2295 = vmatpush1.bf16.msra.mxu0 0
    %2296 = vmatprep.subr.bf16.mxu0 0
    %2297 = vmatpush1.bf16.msra.mxu0 0
    %2298 = vmatprep.subr.bf16.mxu0 0
    %2299 = vmatpush1.bf16.msra.mxu0 0
    %2300 = vmatprep.subr.bf16.mxu0 0
    %2301 = vmatpush1.bf16.msra.mxu0 0
    %2302 = vmatprep.subr.bf16.mxu0 0
    %2303 = vmatpush1.bf16.msra.mxu0 0
    %2304 = vmatprep.subr.bf16.mxu0 0
    %2305 = vmatpush1.bf16.msra.mxu0 0
    %2306 = vmatprep.subr.bf16.mxu0 0
    %2307 = vmatpush1.bf16.msra.mxu0 0
    %2308 = vmatprep.mubr.bf16.mxu0 0
    %2309 = vmatmul.mubr.bf16.gmra.mrb[0].mxu0 %v1080
    %v2310 = vpop.f32.mrb[0].mxu0
    %v2311 = vadd.f32 0.0, %v2310
    %v2312 = vpop.f32.mrb[0].mxu0
    %v2313 = vpop.f32.mrb[0].mxu0
    %v2314 = vadd.f32 0.0, %v2313
    %v2315 = vpop.f32.mrb[0].mxu0
    %2316 = vmatprep.mubr.bf16.mxu0 0
    %2317 = vmatmul.mubr.bf16.gmra.mrb[0].mxu0 %v1083
    %v2318 = vpop.f32.mrb[0].mxu0
    %v2319 = vadd.f32 0.0, %v2318
    %v2320 = vpop.f32.mrb[0].mxu0
    %v2321 = vpop.f32.mrb[0].mxu0
    %v2322 = vadd.f32 0.0, %v2321
    %v2323 = vpop.f32.mrb[0].mxu0
    %2324 = vmatprep.mubr.bf16.mxu0 0
    %2325 = vmatmul.mubr.bf16.gmra.mrb[0].mxu0 %v1086
    %v2326 = vpop.f32.mrb[0].mxu0
    %v2327 = vadd.f32 0.0, %v2326
    %v2328 = vpop.f32.mrb[0].mxu0
    %v2329 = vpop.f32.mrb[0].mxu0
    %v2330 = vadd.f32 0.0, %v2329
    %v2331 = vpop.f32.mrb[0].mxu0
    %2332 = vmatprep.mubr.bf16.mxu0 0
    %2333 = vmatmul.mubr.bf16.gmra.mrb[0].mxu0 %v1089
    %v2334 = vpop.f32.mrb[0].mxu0
    %v2335 = vadd.f32 0.0, %v2334
    %v2336 = vpop.f32.mrb[0].mxu0
    %v2337 = vpop.f32.mrb[0].mxu0
    %v2338 = vadd.f32 0.0, %v2337
    %v2339 = vpop.f32.mrb[0].mxu0
    %2340 = vdwg.mxu0
    %v2357 = vunpack.c.l.b16 %v2260
    %v2358 = vunpack.c.l.b16 %v2261
    %v2359 = vunpack.c.l.b16 %v2262
    %v2360 = vunpack.c.l.b16 %v2263
    %v2361 = vunpack.c.l.b16 %v2264
    %v2362 = vunpack.c.l.b16 %v2265
    %v2363 = vunpack.c.l.b16 %v2266
    %v2364 = vunpack.c.l.b16 %v2267
    %v2365 = vunpack.c.l.b16 %v2268
    %v2366 = vunpack.c.l.b16 %v2269
    %v2367 = vunpack.c.l.b16 %v2270
    %v2368 = vunpack.c.l.b16 %v2271
    %v2369 = vunpack.c.l.b16 %v2272
    %v2370 = vunpack.c.l.b16 %v2273
    %v2371 = vunpack.c.l.b16 %v2274
    %v2372 = vunpack.c.l.b16 %v2275
    %v2373 = vpack.c.b16 %v2358, %v2357
    %v2374 = vpack.c.b16 %v2360, %v2359
    %v2375 = vpack.c.b16 %v2362, %v2361
    %v2376 = vpack.c.b16 %v2364, %v2363
    %v2377 = vpack.c.b16 %v2366, %v2365
    %v2378 = vpack.c.b16 %v2368, %v2367
    %v2379 = vpack.c.b16 %v2370, %v2369
    %v2380 = vpack.c.b16 %v2372, %v2371
    %2389 = vmatprep.subr.bf16.mxu0 0
    %2390 = vmatpush1.bf16.msra.mxu0 %v2373
    %2391 = vmatprep.subr.bf16.mxu0 0
    %2392 = vmatpush1.bf16.msra.mxu0 %v2374
    %2393 = vmatprep.subr.bf16.mxu0 0
    %2394 = vmatpush1.bf16.msra.mxu0 %v2375
    %2395 = vmatprep.subr.bf16.mxu0 0
    %2396 = vmatpush1.bf16.msra.mxu0 %v2376
    %2397 = vmatprep.subr.bf16.mxu0 0
    %2398 = vmatpush1.bf16.msra.mxu0 %v2377
    %2399 = vmatprep.subr.bf16.mxu0 0
    %2400 = vmatpush1.bf16.msra.mxu0 %v2378
    %2401 = vmatprep.subr.bf16.mxu0 0
    %2402 = vmatpush1.bf16.msra.mxu0 %v2379
    %2403 = vmatprep.subr.bf16.mxu0 0
    %2404 = vmatpush1.bf16.msra.mxu0 %v2380
    %2405 = vmatprep.subr.bf16.mxu0 0
    %2406 = vmatpush1.bf16.msra.mxu0 0
    %2407 = vmatprep.subr.bf16.mxu0 0
    %2408 = vmatpush1.bf16.msra.mxu0 0
    %2409 = vmatprep.subr.bf16.mxu0 0
    %2410 = vmatpush1.bf16.msra.mxu0 0
    %2411 = vmatprep.subr.bf16.mxu0 0
    %2412 = vmatpush1.bf16.msra.mxu0 0
    %2413 = vmatprep.subr.bf16.mxu0 0
    %2414 = vmatpush1.bf16.msra.mxu0 0
    %2415 = vmatprep.subr.bf16.mxu0 0
    %2416 = vmatpush1.bf16.msra.mxu0 0
    %2417 = vmatprep.subr.bf16.mxu0 0
    %2418 = vmatpush1.bf16.msra.mxu0 0
    %2419 = vmatprep.subr.bf16.mxu0 0
    %2420 = vmatpush1.bf16.msra.mxu0 0
    %2421 = vmatprep.mubr.bf16.mxu0 0
    %2422 = vmatmul.mubr.bf16.gmra.mrb[0].mxu0 %v1581
    %v2423 = vpop.f32.mrb[0].mxu0
    %v2424 = vadd.f32 %v2311, %v2423
    %v2425 = vpop.f32.mrb[0].mxu0
    %v2426 = vpop.f32.mrb[0].mxu0
    %v2427 = vadd.f32 %v2314, %v2426
    %v2428 = vpop.f32.mrb[0].mxu0
    %2429 = vmatprep.mubr.bf16.mxu0 0
    %2430 = vmatmul.mubr.bf16.gmra.mrb[0].mxu0 %v1582
    %v2431 = vpop.f32.mrb[0].mxu0
    %v2432 = vadd.f32 %v2319, %v2431
    %v2433 = vpop.f32.mrb[0].mxu0
    %v2434 = vpop.f32.mrb[0].mxu0
    %v2435 = vadd.f32 %v2322, %v2434
    %v2436 = vpop.f32.mrb[0].mxu0
    %2437 = vmatprep.mubr.bf16.mxu0 0
    %2438 = vmatmul.mubr.bf16.gmra.mrb[0].mxu0 %v1583
    %v2439 = vpop.f32.mrb[0].mxu0
    %v2440 = vadd.f32 %v2327, %v2439
    %v2441 = vpop.f32.mrb[0].mxu0
    %v2442 = vpop.f32.mrb[0].mxu0
    %v2443 = vadd.f32 %v2330, %v2442
    %v2444 = vpop.f32.mrb[0].mxu0
    %2445 = vmatprep.mubr.bf16.mxu0 0
    %2446 = vmatmul.mubr.bf16.gmra.mrb[0].mxu0 %v1584
    %v2447 = vpop.f32.mrb[0].mxu0
    %v2448 = vadd.f32 %v2335, %v2447
    %v2449 = vpop.f32.mrb[0].mxu0
    %v2450 = vpop.f32.mrb[0].mxu0
    %v2451 = vadd.f32 %v2338, %v2450
    %v2452 = vpop.f32.mrb[0].mxu0
    %2453 = vdwg.mxu0
    %2454 = vmatprep.subr.bf16.mxu0 0
    %2455 = vmatpush1.bf16.msra.mxu0 %v2257
    %2456 = vmatprep.subr.bf16.mxu0 0
    %2457 = vmatpush1.bf16.msra.mxu0 %v2258
    %2458 = vmatprep.subr.bf16.mxu0 0
    %2459 = vmatpush1.bf16.msra.mxu0 0
    %2460 = vmatprep.subr.bf16.mxu0 0
    %2461 = vmatpush1.bf16.msra.mxu0 0
    %2462 = vmatprep.subr.bf16.mxu0 0
    %2463 = vmatpush1.bf16.msra.mxu0 0
    %2464 = vmatprep.subr.bf16.mxu0 0
    %2465 = vmatpush1.bf16.msra.mxu0 0
    %2466 = vmatprep.subr.bf16.mxu0 0
    %2467 = vmatpush1.bf16.msra.mxu0 0
    %2468 = vmatprep.subr.bf16.mxu0 0
    %2469 = vmatpush1.bf16.msra.mxu0 0
    %2470 = vmatprep.subr.bf16.mxu0 0
    %2471 = vmatpush1.bf16.msra.mxu0 0
    %2472 = vmatprep.subr.bf16.mxu0 0
    %2473 = vmatpush1.bf16.msra.mxu0 0
    %2474 = vmatprep.subr.bf16.mxu0 0
    %2475 = vmatpush1.bf16.msra.mxu0 0
    %2476 = vmatprep.subr.bf16.mxu0 0
    %2477 = vmatpush1.bf16.msra.mxu0 0
    %2478 = vmatprep.subr.bf16.mxu0 0
    %2479 = vmatpush1.bf16.msra.mxu0 0
    %2480 = vmatprep.subr.bf16.mxu0 0
    %2481 = vmatpush1.bf16.msra.mxu0 0
    %2482 = vmatprep.subr.bf16.mxu0 0
    %2483 = vmatpush1.bf16.msra.mxu0 0
    %2484 = vmatprep.subr.bf16.mxu0 0
    %2485 = vmatpush1.bf16.msra.mxu0 0
    %2486 = vmatprep.mubr.bf16.mxu0 0
    %2487 = vmatmul.mubr.bf16.gmra.mrb[0].mxu0 %v1270
    %v2488 = vpop.f32.mrb[0].mxu0
    %v2489 = vadd.f32 0.0, %v2488
    %v2490 = vpop.f32.mrb[0].mxu0
    %v2491 = vpop.f32.mrb[0].mxu0
    %v2492 = vadd.f32 0.0, %v2491
    %v2493 = vpop.f32.mrb[0].mxu0
    %2494 = vmatprep.mubr.bf16.mxu0 0
    %2495 = vmatmul.mubr.bf16.gmra.mrb[0].mxu0 %v1273
    %v2496 = vpop.f32.mrb[0].mxu0
    %v2497 = vadd.f32 0.0, %v2496
    %v2498 = vpop.f32.mrb[0].mxu0
    %v2499 = vpop.f32.mrb[0].mxu0
    %v2500 = vadd.f32 0.0, %v2499
    %v2501 = vpop.f32.mrb[0].mxu0
    %2502 = vmatprep.mubr.bf16.mxu0 0
    %2503 = vmatmul.mubr.bf16.gmra.mrb[0].mxu0 %v1276
    %v2504 = vpop.f32.mrb[0].mxu0
    %v2505 = vadd.f32 0.0, %v2504
    %v2506 = vpop.f32.mrb[0].mxu0
    %v2507 = vpop.f32.mrb[0].mxu0
    %v2508 = vadd.f32 0.0, %v2507
    %v2509 = vpop.f32.mrb[0].mxu0
    %2510 = vmatprep.mubr.bf16.mxu0 0
    %2511 = vmatmul.mubr.bf16.gmra.mrb[0].mxu0 %v1279
    %v2512 = vpop.f32.mrb[0].mxu0
    %v2513 = vadd.f32 0.0, %v2512
    %v2514 = vpop.f32.mrb[0].mxu0
    %v2515 = vpop.f32.mrb[0].mxu0
    %v2516 = vadd.f32 0.0, %v2515
    %v2517 = vpop.f32.mrb[0].mxu0
    %2518 = vdwg.mxu0
    %v2519 = vadd.f32 %v2424, %v2489
    %v2520 = vadd.f32 %v2427, %v2492
    %v2521 = vadd.f32 %v2432, %v2497
    %v2522 = vadd.f32 %v2435, %v2500
    %v2523 = vadd.f32 %v2440, %v2505
    %v2524 = vadd.f32 %v2443, %v2508
    %v2525 = vadd.f32 %v2448, %v2513
    %v2526 = vadd.f32 %v2451, %v2516
    %s2527 = scalar_lea.vmem [#allocation26], 1
    %v2528 = vld [vmem:[%s2527] sm:$0x1]
    %v2530 = vlaneseq
    %v2531 = vshrl.u32 %v2530, 7
    %v2532 = vsub.s32 0, %v2531
    %v2533 = vrot.slane %v2528, %v2532
    %v2535 = vadd.f32 %v2519, %v2533
    %v2536 = vadd.f32 %v2520, %v2533
    %v2537 = vadd.f32 %v2521, %v2533
    %v2538 = vadd.f32 %v2522, %v2533
    %v2539 = vadd.f32 %v2523, %v2533
    %v2540 = vadd.f32 %v2524, %v2533
    %v2541 = vadd.f32 %v2525, %v2533
    %v2542 = vadd.f32 %v2526, %v2533
    %v2543 = vmin.f32 %v2535, 0.0
    %v2544 = vmin.f32 %v2536, 0.0
    %v2545 = vmin.f32 %v2537, 0.0
    %v2546 = vmin.f32 %v2538, 0.0
    %v2547 = vmin.f32 %v2539, 0.0
    %v2548 = vmin.f32 %v2540, 0.0
    %v2549 = vmin.f32 %v2541, 0.0
    %v2550 = vmin.f32 %v2542, 0.0
    %v2551 = vmul.f32 %v2543, 1.442695
    %v2552 = vpow.pop %v2551
    %v2553 = vmul.f32 %v2544, 1.442695
    %v2554 = vpow.pop %v2553
    %v2555 = vmul.f32 %v2545, 1.442695
    %v2556 = vpow.pop %v2555
    %v2557 = vmul.f32 %v2546, 1.442695
    %v2558 = vpow.pop %v2557
    %v2559 = vmul.f32 %v2547, 1.442695
    %v2560 = vpow.pop %v2559
    %v2561 = vmul.f32 %v2548, 1.442695
    %v2562 = vpow.pop %v2561
    %v2563 = vmul.f32 %v2549, 1.442695
    %v2564 = vpow.pop %v2563
    %v2565 = vmul.f32 %v2550, 1.442695
    %v2566 = vpow.pop %v2565
    %v2567 = vsub.f32 %v2552, 1.0
    %v2568 = vsub.f32 %v2554, 1.0
    %v2569 = vsub.f32 %v2556, 1.0
    %v2570 = vsub.f32 %v2558, 1.0
    %v2571 = vsub.f32 %v2560, 1.0
    %v2572 = vsub.f32 %v2562, 1.0
    %v2573 = vsub.f32 %v2564, 1.0
    %v2574 = vsub.f32 %v2566, 1.0
    %v2575 = vmul.f32 %v2567, 1.6732632
    %v2576 = vmul.f32 %v2568, 1.6732632
    %v2577 = vmul.f32 %v2569, 1.6732632
    %v2578 = vmul.f32 %v2570, 1.6732632
    %v2579 = vmul.f32 %v2571, 1.6732632
    %v2580 = vmul.f32 %v2572, 1.6732632
    %v2581 = vmul.f32 %v2573, 1.6732632
    %v2582 = vmul.f32 %v2574, 1.6732632
    %vm2583 = vcmp.gt.f32.partialorder %v2535, 0.0
    %vm2584 = vcmp.gt.f32.partialorder %v2536, 0.0
    %vm2585 = vcmp.gt.f32.partialorder %v2537, 0.0
    %vm2586 = vcmp.gt.f32.partialorder %v2538, 0.0
    %vm2587 = vcmp.gt.f32.partialorder %v2539, 0.0
    %vm2588 = vcmp.gt.f32.partialorder %v2540, 0.0
    %vm2589 = vcmp.gt.f32.partialorder %v2541, 0.0
    %vm2590 = vcmp.gt.f32.partialorder %v2542, 0.0
    %v2591 = vsel %vm2583, %v2535, %v2575
    %v2592 = vsel %vm2584, %v2536, %v2576
    %v2593 = vsel %vm2585, %v2537, %v2577
    %v2594 = vsel %vm2586, %v2538, %v2578
    %v2595 = vsel %vm2587, %v2539, %v2579
    %v2596 = vsel %vm2588, %v2540, %v2580
    %v2597 = vsel %vm2589, %v2541, %v2581
    %v2598 = vsel %vm2590, %v2542, %v2582
    %v2599 = vmul.f32 %v2591, 1.050701
    %v2600 = vmul.f32 %v2592, 1.050701
    %v2601 = vmul.f32 %v2593, 1.050701
    %v2602 = vmul.f32 %v2594, 1.050701
    %v2603 = vmul.f32 %v2595, 1.050701
    %v2604 = vmul.f32 %v2596, 1.050701
    %v2605 = vmul.f32 %v2597, 1.050701
    %v2606 = vmul.f32 %v2598, 1.050701
    %v2607 = vpack.c.bf16 %v2600, %v2599
    %v2608 = vpack.c.bf16 %v2602, %v2601
    %v2609 = vpack.c.bf16 %v2604, %v2603
    %v2610 = vpack.c.bf16 %v2606, %v2605
    %s2611 = scalar_lea.vmem [#allocation28], 64
    %v2612 = vld [vmem:[%s2611] sm:$0xf]
    %v2613 = vld [vmem:[%s2611 + $0x4] sm:$0xf]
    %v2614 = vld [vmem:[%s2611 + $0x8] sm:$0xf]
    %v2615 = vld [vmem:[%s2611 + $0xc] sm:$0xf]
    %v2616 = vld [vmem:[%s2611 + $0x10] sm:$0xf]
    %v2617 = vld [vmem:[%s2611 + $0x14] sm:$0xf]
    %v2618 = vld [vmem:[%s2611 + $0x18] sm:$0xf]
    %v2619 = vld [vmem:[%s2611 + $0x1c] sm:$0xf]
    %v2620 = vld [vmem:[%s2611 + $0x20] sm:$0xf]
    %v2621 = vld [vmem:[%s2611 + $0x24] sm:$0xf]
    %v2622 = vld [vmem:[%s2611 + $0x28] sm:$0xf]
    %v2623 = vld [vmem:[%s2611 + $0x2c] sm:$0xf]
    %v2624 = vld [vmem:[%s2611 + $0x30] sm:$0xf]
    %v2625 = vld [vmem:[%s2611 + $0x34] sm:$0xf]
    %v2626 = vld [vmem:[%s2611 + $0x38] sm:$0xf]
    %v2627 = vld [vmem:[%s2611 + $0x3c] sm:$0xf]
    %s2628 = scalar_lea.vmem [#allocation29], 1
    %v2629 = vld [vmem:[%s2628] sm:$0x1]
    %v2631 = vlaneseq
    %v2632 = vshrl.u32 %v2631, 7
    %v2633 = vsub.s32 0, %v2632
    %v2634 = vrot.slane %v2629, %v2633
    %v2652 = vunpack.c.l.b16 %v2612
    %v2653 = vunpack.c.l.b16 %v2613
    %v2654 = vunpack.c.l.b16 %v2614
    %v2655 = vunpack.c.l.b16 %v2615
    %v2656 = vunpack.c.l.b16 %v2616
    %v2657 = vunpack.c.l.b16 %v2617
    %v2658 = vunpack.c.l.b16 %v2618
    %v2659 = vunpack.c.l.b16 %v2619
    %v2660 = vunpack.c.l.b16 %v2620
    %v2661 = vunpack.c.l.b16 %v2621
    %v2662 = vunpack.c.l.b16 %v2622
    %v2663 = vunpack.c.l.b16 %v2623
    %v2664 = vunpack.c.l.b16 %v2624
    %v2665 = vunpack.c.l.b16 %v2625
    %v2666 = vunpack.c.l.b16 %v2626
    %v2667 = vunpack.c.l.b16 %v2627
    %v2668 = vpack.c.b16 %v2653, %v2652
    %v2669 = vpack.c.b16 %v2655, %v2654
    %v2670 = vpack.c.b16 %v2657, %v2656
    %v2671 = vpack.c.b16 %v2659, %v2658
    %v2672 = vpack.c.b16 %v2661, %v2660
    %v2673 = vpack.c.b16 %v2663, %v2662
    %v2674 = vpack.c.b16 %v2665, %v2664
    %v2675 = vpack.c.b16 %v2667, %v2666
    %2684 = vmatprep.subr.bf16.mxu0 0
    %2685 = vmatpush1.bf16.msra.mxu0 %v2668
    %2686 = vmatprep.subr.bf16.mxu0 0
    %2687 = vmatpush1.bf16.msra.mxu0 %v2669
    %2688 = vmatprep.subr.bf16.mxu0 0
    %2689 = vmatpush1.bf16.msra.mxu0 %v2670
    %2690 = vmatprep.subr.bf16.mxu0 0
    %2691 = vmatpush1.bf16.msra.mxu0 %v2671
    %2692 = vmatprep.subr.bf16.mxu0 0
    %2693 = vmatpush1.bf16.msra.mxu0 %v2672
    %2694 = vmatprep.subr.bf16.mxu0 0
    %2695 = vmatpush1.bf16.msra.mxu0 %v2673
    %2696 = vmatprep.subr.bf16.mxu0 0
    %2697 = vmatpush1.bf16.msra.mxu0 %v2674
    %2698 = vmatprep.subr.bf16.mxu0 0
    %2699 = vmatpush1.bf16.msra.mxu0 %v2675
    %2700 = vmatprep.subr.bf16.mxu0 0
    %2701 = vmatpush1.bf16.msra.mxu0 0
    %2702 = vmatprep.subr.bf16.mxu0 0
    %2703 = vmatpush1.bf16.msra.mxu0 0
    %2704 = vmatprep.subr.bf16.mxu0 0
    %2705 = vmatpush1.bf16.msra.mxu0 0
    %2706 = vmatprep.subr.bf16.mxu0 0
    %2707 = vmatpush1.bf16.msra.mxu0 0
    %2708 = vmatprep.subr.bf16.mxu0 0
    %2709 = vmatpush1.bf16.msra.mxu0 0
    %2710 = vmatprep.subr.bf16.mxu0 0
    %2711 = vmatpush1.bf16.msra.mxu0 0
    %2712 = vmatprep.subr.bf16.mxu0 0
    %2713 = vmatpush1.bf16.msra.mxu0 0
    %2714 = vmatprep.subr.bf16.mxu0 0
    %2715 = vmatpush1.bf16.msra.mxu0 0
    %2716 = vmatprep.mubr.bf16.mxu0 0
    %2717 = vmatmul.mubr.bf16.gmra.mrb[0].mxu0 %v2607
    %v2718 = vpop.f32.mrb[0].mxu0
    %v2719 = vadd.f32 %v2634, %v2718
    %v2720 = vpop.f32.mrb[0].mxu0
    %v2721 = vpop.f32.mrb[0].mxu0
    %v2722 = vadd.f32 %v2634, %v2721
    %v2723 = vpop.f32.mrb[0].mxu0
    %2724 = vmatprep.mubr.bf16.mxu0 0
    %2725 = vmatmul.mubr.bf16.gmra.mrb[0].mxu0 %v2608
    %v2726 = vpop.f32.mrb[0].mxu0
    %v2727 = vadd.f32 %v2634, %v2726
    %v2728 = vpop.f32.mrb[0].mxu0
    %v2729 = vpop.f32.mrb[0].mxu0
    %v2730 = vadd.f32 %v2634, %v2729
    %v2731 = vpop.f32.mrb[0].mxu0
    %2732 = vmatprep.mubr.bf16.mxu0 0
    %2733 = vmatmul.mubr.bf16.gmra.mrb[0].mxu0 %v2609
    %v2734 = vpop.f32.mrb[0].mxu0
    %v2735 = vadd.f32 %v2634, %v2734
    %v2736 = vpop.f32.mrb[0].mxu0
    %v2737 = vpop.f32.mrb[0].mxu0
    %v2738 = vadd.f32 %v2634, %v2737
    %v2739 = vpop.f32.mrb[0].mxu0
    %2740 = vmatprep.mubr.bf16.mxu0 0
    %2741 = vmatmul.mubr.bf16.gmra.mrb[0].mxu0 %v2610
    %v2742 = vpop.f32.mrb[0].mxu0
    %v2743 = vadd.f32 %v2634, %v2742
    %v2744 = vpop.f32.mrb[0].mxu0
    %v2745 = vpop.f32.mrb[0].mxu0
    %v2746 = vadd.f32 %v2634, %v2745
    %v2747 = vpop.f32.mrb[0].mxu0
    %2748 = vdwg.mxu0
    %v2749 = vadd.f32 %v2719, %v1573
    %v2750 = vadd.f32 %v2722, %v1574
    %v2751 = vadd.f32 %v2727, %v1575
    %v2752 = vadd.f32 %v2730, %v1576
    %v2753 = vadd.f32 %v2735, %v1577
    %v2754 = vadd.f32 %v2738, %v1578
    %v2755 = vadd.f32 %v2743, %v1579
    %v2756 = vadd.f32 %v2746, %v1580
    %v2757 = vpack.c.bf16 %v2750, %v2749
    %v2758 = vpack.c.bf16 %v2752, %v2751
    %v2759 = vpack.c.bf16 %v2754, %v2753
    %v2760 = vpack.c.bf16 %v2756, %v2755
    %2761 = vmatprep.subr.bf16.mxu0 0
    %2762 = vmatpush1.bf16.msra.mxu0 %v2757
    %2763 = vmatprep.subr.bf16.mxu0 0
    %2764 = vmatpush1.bf16.msra.mxu0 %v2758
    %2765 = vmatprep.subr.bf16.mxu0 0
    %2766 = vmatpush1.bf16.msra.mxu0 %v2759
    %2767 = vmatprep.subr.bf16.mxu0 0
    %2768 = vmatpush1.bf16.msra.mxu0 %v2760
    %2769 = vmatprep.subr.bf16.mxu0 0
    %2770 = vmatpush1.bf16.msra.mxu0 0
    %2771 = vmatprep.subr.bf16.mxu0 0
    %2772 = vmatpush1.bf16.msra.mxu0 0
    %2773 = vmatprep.subr.bf16.mxu0 0
    %2774 = vmatpush1.bf16.msra.mxu0 0
    %2775 = vmatprep.subr.bf16.mxu0 0
    %2776 = vmatpush1.bf16.msra.mxu0 0
    %2777 = vmatprep.subr.bf16.mxu0 0
    %2778 = vmatpush1.bf16.msra.mxu0 0
    %2779 = vmatprep.subr.bf16.mxu0 0
    %2780 = vmatpush1.bf16.msra.mxu0 0
    %2781 = vmatprep.subr.bf16.mxu0 0
    %2782 = vmatpush1.bf16.msra.mxu0 0
    %2783 = vmatprep.subr.bf16.mxu0 0
    %2784 = vmatpush1.bf16.msra.mxu0 0
    %2785 = vmatprep.subr.bf16.mxu0 0
    %2786 = vmatpush1.bf16.msra.mxu0 0
    %2787 = vmatprep.subr.bf16.mxu0 0
    %2788 = vmatpush1.bf16.msra.mxu0 0
    %2789 = vmatprep.subr.bf16.mxu0 0
    %2790 = vmatpush1.bf16.msra.mxu0 0
    %2791 = vmatprep.subr.bf16.mxu0 0
    %2792 = vmatpush1.bf16.msra.mxu0 0
    %2793 = vmatprep.mubr.bf16.mxu0 0
    %2794 = vmatmul.mubr.bf16.gmra.mrb[0].mxu0 %v1603
    %v2795 = vpop.f32.mrb[0].mxu0
    %v2796 = vadd.f32 0.0, %v2795
    %v2797 = vpop.f32.mrb[0].mxu0
    %v2798 = vpop.f32.mrb[0].mxu0
    %v2799 = vadd.f32 0.0, %v2798
    %v2800 = vpop.f32.mrb[0].mxu0
    %2801 = vmatprep.mubr.bf16.mxu0 0
    %2802 = vmatmul.mubr.bf16.gmra.mrb[0].mxu0 %v1606
    %v2803 = vpop.f32.mrb[0].mxu0
    %v2804 = vadd.f32 0.0, %v2803
    %v2805 = vpop.f32.mrb[0].mxu0
    %v2806 = vpop.f32.mrb[0].mxu0
    %v2807 = vadd.f32 0.0, %v2806
    %v2808 = vpop.f32.mrb[0].mxu0
    %2809 = vdwg.mxu0
    %v2810 = vmul.f32 %v2796, %v1660
    %v2811 = vmul.f32 %v2799, %v1665
    %v2812 = vmul.f32 %v2804, %v1670
    %v2813 = vmul.f32 %v2807, %v1675
    %v2814 = vpack.c.bf16 %v2811, %v2810
    %v2815 = vpack.c.bf16 %v2813, %v2812
    %s2816 = scalar_lea.vmem [#allocation31], 128
    %v2817 = vld [vmem:[%s2816] sm:$0xf]
    %v2818 = vld [vmem:[%s2816 + $0x4] sm:$0xf]
    %v2819 = vld [vmem:[%s2816 + $0x8] sm:$0xf]
    %v2820 = vld [vmem:[%s2816 + $0xc] sm:$0xf]
    %v2821 = vld [vmem:[%s2816 + $0x10] sm:$0xf]
    %v2822 = vld [vmem:[%s2816 + $0x14] sm:$0xf]
    %v2823 = vld [vmem:[%s2816 + $0x18] sm:$0xf]
    %v2824 = vld [vmem:[%s2816 + $0x1c] sm:$0xf]
    %v2825 = vld [vmem:[%s2816 + $0x20] sm:$0xf]
    %v2826 = vld [vmem:[%s2816 + $0x24] sm:$0xf]
    %v2827 = vld [vmem:[%s2816 + $0x28] sm:$0xf]
    %v2828 = vld [vmem:[%s2816 + $0x2c] sm:$0xf]
    %v2829 = vld [vmem:[%s2816 + $0x30] sm:$0xf]
    %v2830 = vld [vmem:[%s2816 + $0x34] sm:$0xf]
    %v2831 = vld [vmem:[%s2816 + $0x38] sm:$0xf]
    %v2832 = vld [vmem:[%s2816 + $0x3c] sm:$0xf]
    %v2833 = vld [vmem:[%s2816 + $0x40] sm:$0xf]
    %v2834 = vld [vmem:[%s2816 + $0x44] sm:$0xf]
    %v2835 = vld [vmem:[%s2816 + $0x48] sm:$0xf]
    %v2836 = vld [vmem:[%s2816 + $0x4c] sm:$0xf]
    %v2837 = vld [vmem:[%s2816 + $0x50] sm:$0xf]
    %v2838 = vld [vmem:[%s2816 + $0x54] sm:$0xf]
    %v2839 = vld [vmem:[%s2816 + $0x58] sm:$0xf]
    %v2840 = vld [vmem:[%s2816 + $0x5c] sm:$0xf]
    %v2841 = vld [vmem:[%s2816 + $0x60] sm:$0xf]
    %v2842 = vld [vmem:[%s2816 + $0x64] sm:$0xf]
    %v2843 = vld [vmem:[%s2816 + $0x68] sm:$0xf]
    %v2844 = vld [vmem:[%s2816 + $0x6c] sm:$0xf]
    %v2845 = vld [vmem:[%s2816 + $0x70] sm:$0xf]
    %v2846 = vld [vmem:[%s2816 + $0x74] sm:$0xf]
    %v2847 = vld [vmem:[%s2816 + $0x78] sm:$0xf]
    %v2848 = vld [vmem:[%s2816 + $0x7c] sm:$0xf]
    %s2849 = scalar_lea.vmem [#allocation32], 1
    %v2850 = vld [vmem:[%s2849] sm:$0x1]
    %v2852 = vlaneseq
    %v2853 = vshrl.u32 %v2852, 7
    %v2854 = vsub.s32 0, %v2853
    %v2855 = vrot.slane %v2850, %v2854
    %v2889 = vunpack.c.l.b16 %v2817
    %v2890 = vunpack.c.l.b16 %v2818
    %v2891 = vunpack.c.l.b16 %v2819
    %v2892 = vunpack.c.l.b16 %v2820
    %v2893 = vunpack.c.l.b16 %v2821
    %v2894 = vunpack.c.l.b16 %v2822
    %v2895 = vunpack.c.l.b16 %v2823
    %v2896 = vunpack.c.l.b16 %v2824
    %v2897 = vunpack.c.l.b16 %v2825
    %v2898 = vunpack.c.l.b16 %v2826
    %v2899 = vunpack.c.l.b16 %v2827
    %v2900 = vunpack.c.l.b16 %v2828
    %v2901 = vunpack.c.l.b16 %v2829
    %v2902 = vunpack.c.l.b16 %v2830
    %v2903 = vunpack.c.l.b16 %v2831
    %v2904 = vunpack.c.l.b16 %v2832
    %v2905 = vunpack.c.l.b16 %v2833
    %v2906 = vunpack.c.l.b16 %v2834
    %v2907 = vunpack.c.l.b16 %v2835
    %v2908 = vunpack.c.l.b16 %v2836
    %v2909 = vunpack.c.l.b16 %v2837
    %v2910 = vunpack.c.l.b16 %v2838
    %v2911 = vunpack.c.l.b16 %v2839
    %v2912 = vunpack.c.l.b16 %v2840
    %v2913 = vunpack.c.l.b16 %v2841
    %v2914 = vunpack.c.l.b16 %v2842
    %v2915 = vunpack.c.l.b16 %v2843
    %v2916 = vunpack.c.l.b16 %v2844
    %v2917 = vunpack.c.l.b16 %v2845
    %v2918 = vunpack.c.l.b16 %v2846
    %v2919 = vunpack.c.l.b16 %v2847
    %v2920 = vunpack.c.l.b16 %v2848
    %v2921 = vpack.c.b16 %v2890, %v2889
    %v2922 = vpack.c.b16 %v2892, %v2891
    %v2923 = vpack.c.b16 %v2894, %v2893
    %v2924 = vpack.c.b16 %v2896, %v2895
    %v2925 = vpack.c.b16 %v2898, %v2897
    %v2926 = vpack.c.b16 %v2900, %v2899
    %v2927 = vpack.c.b16 %v2902, %v2901
    %v2928 = vpack.c.b16 %v2904, %v2903
    %v2929 = vpack.c.b16 %v2906, %v2905
    %v2930 = vpack.c.b16 %v2908, %v2907
    %v2931 = vpack.c.b16 %v2910, %v2909
    %v2932 = vpack.c.b16 %v2912, %v2911
    %v2933 = vpack.c.b16 %v2914, %v2913
    %v2934 = vpack.c.b16 %v2916, %v2915
    %v2935 = vpack.c.b16 %v2918, %v2917
    %v2936 = vpack.c.b16 %v2920, %v2919
    %2953 = vmatprep.subr.bf16.mxu0 0
    %2954 = vmatpush1.bf16.msra.mxu0 %v2921
    %2955 = vmatprep.subr.bf16.mxu0 0
    %2956 = vmatpush1.bf16.msra.mxu0 %v2922
    %2957 = vmatprep.subr.bf16.mxu0 0
    %2958 = vmatpush1.bf16.msra.mxu0 %v2923
    %2959 = vmatprep.subr.bf16.mxu0 0
    %2960 = vmatpush1.bf16.msra.mxu0 %v2924
    %2961 = vmatprep.subr.bf16.mxu0 0
    %2962 = vmatpush1.bf16.msra.mxu0 %v2925
    %2963 = vmatprep.subr.bf16.mxu0 0
    %2964 = vmatpush1.bf16.msra.mxu0 %v2926
    %2965 = vmatprep.subr.bf16.mxu0 0
    %2966 = vmatpush1.bf16.msra.mxu0 %v2927
    %2967 = vmatprep.subr.bf16.mxu0 0
    %2968 = vmatpush1.bf16.msra.mxu0 %v2928
    %2969 = vmatprep.subr.bf16.mxu0 0
    %2970 = vmatpush1.bf16.msra.mxu0 %v2929
    %2971 = vmatprep.subr.bf16.mxu0 0
    %2972 = vmatpush1.bf16.msra.mxu0 %v2930
    %2973 = vmatprep.subr.bf16.mxu0 0
    %2974 = vmatpush1.bf16.msra.mxu0 %v2931
    %2975 = vmatprep.subr.bf16.mxu0 0
    %2976 = vmatpush1.bf16.msra.mxu0 %v2932
    %2977 = vmatprep.subr.bf16.mxu0 0
    %2978 = vmatpush1.bf16.msra.mxu0 %v2933
    %2979 = vmatprep.subr.bf16.mxu0 0
    %2980 = vmatpush1.bf16.msra.mxu0 %v2934
    %2981 = vmatprep.subr.bf16.mxu0 0
    %2982 = vmatpush1.bf16.msra.mxu0 %v2935
    %2983 = vmatprep.subr.bf16.mxu0 0
    %2984 = vmatpush1.bf16.msra.mxu0 %v2936
    %2985 = vmatprep.mubr.bf16.mxu0 %v2814
    %2986 = vmatmul.mubr.bf16.gmra.mrb[0].mxu0 %v2025
    %v2987 = vpop.f32.mrb[0].mxu0
    %v2988 = vadd.f32 %v2855, %v2987
    %v2989 = vpop.f32.mrb[0].mxu0
    %v2990 = vpop.f32.mrb[0].mxu0
    %v2991 = vadd.f32 %v2855, %v2990
    %v2992 = vpop.f32.mrb[0].mxu0
    %2993 = vmatprep.mubr.bf16.mxu0 %v2815
    %2994 = vmatmul.mubr.bf16.gmra.mrb[0].mxu0 %v2026
    %v2995 = vpop.f32.mrb[0].mxu0
    %v2996 = vadd.f32 %v2855, %v2995
    %v2997 = vpop.f32.mrb[0].mxu0
    %v2998 = vpop.f32.mrb[0].mxu0
    %v2999 = vadd.f32 %v2855, %v2998
    %v3000 = vpop.f32.mrb[0].mxu0
    %3001 = vdwg.mxu0
    %v3002 = vmin.f32 %v2988, 0.0
    %v3003 = vmin.f32 %v2991, 0.0
    %v3004 = vmin.f32 %v2996, 0.0
    %v3005 = vmin.f32 %v2999, 0.0
    %v3006 = vmul.f32 %v3002, 1.442695
    %v3007 = vpow.pop %v3006
    %v3008 = vmul.f32 %v3003, 1.442695
    %v3009 = vpow.pop %v3008
    %v3010 = vmul.f32 %v3004, 1.442695
    %v3011 = vpow.pop %v3010
    %v3012 = vmul.f32 %v3005, 1.442695
    %v3013 = vpow.pop %v3012
    %v3014 = vsub.f32 %v3007, 1.0
    %v3015 = vsub.f32 %v3009, 1.0
    %v3016 = vsub.f32 %v3011, 1.0
    %v3017 = vsub.f32 %v3013, 1.0
    %v3018 = vmul.f32 %v3014, 1.6732632
    %v3019 = vmul.f32 %v3015, 1.6732632
    %v3020 = vmul.f32 %v3016, 1.6732632
    %v3021 = vmul.f32 %v3017, 1.6732632
    %vm3022 = vcmp.gt.f32.partialorder %v2988, 0.0
    %vm3023 = vcmp.gt.f32.partialorder %v2991, 0.0
    %vm3024 = vcmp.gt.f32.partialorder %v2996, 0.0
    %vm3025 = vcmp.gt.f32.partialorder %v2999, 0.0
    %v3026 = vsel %vm3022, %v2988, %v3018
    %v3027 = vsel %vm3023, %v2991, %v3019
    %v3028 = vsel %vm3024, %v2996, %v3020
    %v3029 = vsel %vm3025, %v2999, %v3021
    %v3030 = vmul.f32 %v3026, 1.050701
    %v3031 = vmul.f32 %v3027, 1.050701
    %v3032 = vmul.f32 %v3028, 1.050701
    %v3033 = vmul.f32 %v3029, 1.050701
    %v3034 = vpack.c.bf16 %v3031, %v3030
    %v3035 = vpack.c.bf16 %v3033, %v3032
    %s3036 = scalar_lea.vmem [#allocation34], 64
    %v3037 = vld [vmem:[%s3036] sm:$0xf]
    %v3038 = vld [vmem:[%s3036 + $0x4] sm:$0xf]
    %v3039 = vld [vmem:[%s3036 + $0x8] sm:$0xf]
    %v3040 = vld [vmem:[%s3036 + $0xc] sm:$0xf]
    %v3041 = vld [vmem:[%s3036 + $0x10] sm:$0xf]
    %v3042 = vld [vmem:[%s3036 + $0x14] sm:$0xf]
    %v3043 = vld [vmem:[%s3036 + $0x18] sm:$0xf]
    %v3044 = vld [vmem:[%s3036 + $0x1c] sm:$0xf]
    %v3045 = vld [vmem:[%s3036 + $0x20] sm:$0xf]
    %v3046 = vld [vmem:[%s3036 + $0x24] sm:$0xf]
    %v3047 = vld [vmem:[%s3036 + $0x28] sm:$0xf]
    %v3048 = vld [vmem:[%s3036 + $0x2c] sm:$0xf]
    %v3049 = vld [vmem:[%s3036 + $0x30] sm:$0xf]
    %v3050 = vld [vmem:[%s3036 + $0x34] sm:$0xf]
    %v3051 = vld [vmem:[%s3036 + $0x38] sm:$0xf]
    %v3052 = vld [vmem:[%s3036 + $0x3c] sm:$0xf]
    %s3053 = scalar_lea.vmem [#allocation35], 1
    %v3054 = vld [vmem:[%s3053] sm:$0x1]
    %v3056 = vlaneseq
    %v3057 = vshrl.u32 %v3056, 7
    %v3058 = vsub.s32 0, %v3057
    %v3059 = vrot.slane %v3054, %v3058
    %v3077 = vunpack.c.l.b16 %v3037
    %v3078 = vunpack.c.l.b16 %v3038
    %v3079 = vunpack.c.l.b16 %v3039
    %v3080 = vunpack.c.l.b16 %v3040
    %v3081 = vunpack.c.l.b16 %v3041
    %v3082 = vunpack.c.l.b16 %v3042
    %v3083 = vunpack.c.l.b16 %v3043
    %v3084 = vunpack.c.l.b16 %v3044
    %v3085 = vunpack.c.l.b16 %v3045
    %v3086 = vunpack.c.l.b16 %v3046
    %v3087 = vunpack.c.l.b16 %v3047
    %v3088 = vunpack.c.l.b16 %v3048
    %v3089 = vunpack.c.l.b16 %v3049
    %v3090 = vunpack.c.l.b16 %v3050
    %v3091 = vunpack.c.l.b16 %v3051
    %v3092 = vunpack.c.l.b16 %v3052
    %v3093 = vpack.c.b16 %v3078, %v3077
    %v3094 = vpack.c.b16 %v3080, %v3079
    %v3095 = vpack.c.b16 %v3082, %v3081
    %v3096 = vpack.c.b16 %v3084, %v3083
    %v3097 = vpack.c.b16 %v3086, %v3085
    %v3098 = vpack.c.b16 %v3088, %v3087
    %v3099 = vpack.c.b16 %v3090, %v3089
    %v3100 = vpack.c.b16 %v3092, %v3091
    %3109 = vmatprep.subr.bf16.mxu0 0
    %3110 = vmatpush1.bf16.msra.mxu0 %v3093
    %3111 = vmatprep.subr.bf16.mxu0 0
    %3112 = vmatpush1.bf16.msra.mxu0 %v3094
    %3113 = vmatprep.subr.bf16.mxu0 0
    %3114 = vmatpush1.bf16.msra.mxu0 %v3095
    %3115 = vmatprep.subr.bf16.mxu0 0
    %3116 = vmatpush1.bf16.msra.mxu0 %v3096
    %3117 = vmatprep.subr.bf16.mxu0 0
    %3118 = vmatpush1.bf16.msra.mxu0 %v3097
    %3119 = vmatprep.subr.bf16.mxu0 0
    %3120 = vmatpush1.bf16.msra.mxu0 %v3098
    %3121 = vmatprep.subr.bf16.mxu0 0
    %3122 = vmatpush1.bf16.msra.mxu0 %v3099
    %3123 = vmatprep.subr.bf16.mxu0 0
    %3124 = vmatpush1.bf16.msra.mxu0 %v3100
    %3125 = vmatprep.subr.bf16.mxu0 0
    %3126 = vmatpush1.bf16.msra.mxu0 0
    %3127 = vmatprep.subr.bf16.mxu0 0
    %3128 = vmatpush1.bf16.msra.mxu0 0
    %3129 = vmatprep.subr.bf16.mxu0 0
    %3130 = vmatpush1.bf16.msra.mxu0 0
    %3131 = vmatprep.subr.bf16.mxu0 0
    %3132 = vmatpush1.bf16.msra.mxu0 0
    %3133 = vmatprep.subr.bf16.mxu0 0
    %3134 = vmatpush1.bf16.msra.mxu0 0
    %3135 = vmatprep.subr.bf16.mxu0 0
    %3136 = vmatpush1.bf16.msra.mxu0 0
    %3137 = vmatprep.subr.bf16.mxu0 0
    %3138 = vmatpush1.bf16.msra.mxu0 0
    %3139 = vmatprep.subr.bf16.mxu0 0
    %3140 = vmatpush1.bf16.msra.mxu0 0
    %3141 = vmatprep.mubr.bf16.mxu0 0
    %3142 = vmatmul.mubr.bf16.gmra.mrb[0].mxu0 %v3034
    %v3143 = vpop.f32.mrb[0].mxu0
    %v3144 = vadd.f32 %v3059, %v3143
    %v3145 = vpop.f32.mrb[0].mxu0
    %v3146 = vpop.f32.mrb[0].mxu0
    %v3147 = vadd.f32 %v3059, %v3146
    %v3148 = vpop.f32.mrb[0].mxu0
    %3149 = vmatprep.mubr.bf16.mxu0 0
    %3150 = vmatmul.mubr.bf16.gmra.mrb[0].mxu0 %v3035
    %v3151 = vpop.f32.mrb[0].mxu0
    %v3152 = vadd.f32 %v3059, %v3151
    %v3153 = vpop.f32.mrb[0].mxu0
    %v3154 = vpop.f32.mrb[0].mxu0
    %v3155 = vadd.f32 %v3059, %v3154
    %v3156 = vpop.f32.mrb[0].mxu0
    %3157 = vdwg.mxu0
    %v3158 = vadd.f32 %v3144, %v2021
    %v3159 = vadd.f32 %v3147, %v2022
    %v3160 = vadd.f32 %v3152, %v2023
    %v3161 = vadd.f32 %v3155, %v2024
    %3162 = vst [vmem:[#allocation37] sm:$0xff] %v3158
    %3163 = vst [vmem:[#allocation37 + $0x8] sm:$0xff] %v3159
    %3164 = vst [vmem:[#allocation37 + $0x10] sm:$0xff] %v3160
    %3165 = vst [vmem:[#allocation37 + $0x18] sm:$0xff] %v3161
    // Predicated region
    $region178: #{up_block_forward.1} parent=1 // pred_check
      _
    $region179: #{up_block_forward.1} parent=1 // pred_check_branch
      %3167 = sbr.rel (0) target = $region181
    $region180: #{up_block_forward.1} parent=1 // pred_region
      %s3169 = ssub.s32 512, 512
      %3170 = vsyncadd [#allocation4], %s3169
      %s3171 = sshll.u32 [#allocation37], 4
      %s3172 = int_to_ptr.vmem [resolvable:$true] %s3171
      %3177 = dma.vmem_to_hbm [thread:$0]  %s3172, 512, %s22, [#allocation4], 128, 128, 8
    $region181: #{up_block_forward.1} parent=1 // pred_fallthru
      _
    // Predicated region
    $region182: #{up_block_forward.1} parent=1 // pred_check
      _
    $region183: #{up_block_forward.1} parent=1 // pred_check_branch
      %3179 = sbr.rel (0) target = $region185
    $region184: #{up_block_forward.1} parent=1 // pred_region
      %3180 = dma.done [#allocation4], 512
    $region185: #{up_block_forward.1} parent=1 // pred_fallthru
      _
    %3181 = vsyncpa [#allocation3], 1
    %3182 = vsyncpa [#allocation6], 1
    %3183 = vsyncpa [#allocation9], 1
    %3184 = vsyncpa [#allocation12], 1
    %3185 = vsyncpa [#allocation15], 1
    %3186 = vsyncpa [#allocation18], 1
    %3187 = vsyncpa [#allocation21], 1
    %3188 = vsyncpa [#allocation24], 1
    %3189 = vsyncpa [#allocation27], 1
    %3190 = vsyncpa [#allocation30], 1
    %3191 = vsyncpa [#allocation33], 1
    %3192 = vsyncpa [#allocation36], 1
    %3193 = vsyncpa [#allocation4], 1

</llo_original>
